<compile_context>
chip_gen: v5e
topology: v5e:2x2
jax: 0.10.0
libtpu: 0.0.40
codegen_flags: <defaults>
</compile_context>

<pallas_src>
import functools

import jax
import jax.numpy as jnp
from jax.experimental import pallas as pl
from jax.experimental.pallas import tpu as pltpu


# indices into the stacked (4, E, E) weight array
W_BLK1, W_BLK2, W_CB1, W_CB2 = 0, 1, 2, 3
# indices into the stacked (12, E) f32 row array
(R_B_STEM, R_B_BLK1, R_B_BLK2, R_LN_G, R_LN_B, R_B_RED,
 R_B_CB1, R_B_CB2, R_LND_G, R_LND_B, R_W_DEC, R_B_DEC) = range(12)


# ---------------- small math helpers (usable inside and outside the kernel) -------

def _gelu(x):
    # tanh-approx GELU (EUP-friendly inside the kernel).
    return 0.5 * x * (1.0 + jnp.tanh(0.7978845608028654 * (x + 0.044715 * x * x * x)))


def _layernorm(x, g, b, eps=1e-6):
    mu = jnp.mean(x, axis=-1, keepdims=True)
    var = jnp.mean((x - mu) * (x - mu), axis=-1, keepdims=True)
    return (x - mu) * jax.lax.rsqrt(var + eps) * g + b


# ---------------------------------- kernel ----------------------------------------

def critic_kernel(feat_ref, w_stem_ref, w_stack_ref, w_fused_ref, rows_ref, out_ref):
    S, TB, F = feat_ref.shape
    E = w_stem_ref.shape[-1]

    rows = rows_ref[...]                                   # (12, E) f32

    def row(i):                                            # static slice -> (1, E)
        return rows[i:i + 1, :]

    # (S, TB, F) -> (S*TB, F): leading-dim merge (layout no-op); rows are s-major.
    x = feat_ref[...].reshape(S * TB, F)

    # stem_layer: Linear(F, E) — bf16 operands, f32 accumulation.
    x = jnp.dot(x.astype(jnp.bfloat16), w_stem_ref[...],
                preferred_element_type=jnp.float32) + row(R_B_STEM)

    # blocks (depth=2): Linear(E, E) + GELU (f32 elementwise).
    x = _gelu(jnp.dot(x.astype(jnp.bfloat16), w_stack_ref[W_BLK1],
                      preferred_element_type=jnp.float32) + row(R_B_BLK1))
    x = _gelu(jnp.dot(x.astype(jnp.bfloat16), w_stack_ref[W_BLK2],
                      preferred_element_type=jnp.float32) + row(R_B_BLK2))

    # norm: LayerNorm over embed dim (f32).
    x = _layernorm(x, row(R_LN_G), row(R_LN_B))            # (S*TB, E)

    # Fused reduce_seq + reduce_embed:
    #   z[b, f] = sum_{s,e} x[s*TB + b, e] * C[s, e, f]  + b_re_eff[f]
    # Static unroll over s: each term is a well-shaped (TB,E)x(E,E) MXU matmul on an
    # aligned contiguous row block of x (no zero-padded work, no lane concatenate).
    xb = x.astype(jnp.bfloat16)
    z = jnp.zeros((TB, E), jnp.float32)
    for s in range(S):
        z = z + jnp.dot(xb[s * TB:(s + 1) * TB, :], w_fused_ref[s],
                        preferred_element_type=jnp.float32)
    z = z + row(R_B_RED)                                   # (TB, E)

    # critic_blocks: Linear -> Tanh -> Linear
    h = jnp.tanh(jnp.dot(z.astype(jnp.bfloat16), w_stack_ref[W_CB1],
                         preferred_element_type=jnp.float32) + row(R_B_CB1))
    h = jnp.dot(h.astype(jnp.bfloat16), w_stack_ref[W_CB2],
                preferred_element_type=jnp.float32) + row(R_B_CB2)

    # norm_decoder
    h = _layernorm(h, row(R_LND_G), row(R_LND_B))          # (TB, E)

    # decoder_layer: Linear(E, 1), emitted lane-dense as w_dec @ h.T -> (1, TB).
    v = jax.lax.dot_general(row(R_W_DEC).astype(jnp.bfloat16), h.astype(jnp.bfloat16),
                            dimension_numbers=(((1,), (1,)), ((), ())),
                            preferred_element_type=jnp.float32)        # (1, TB)
    out_ref[0] = v + rows[R_B_DEC:R_B_DEC + 1, 0:1]


# ------------------------- one-time parameter packing -----------------------------

def pack_params(p, *, seq_len, feature_dim, embed_dim, middle_dim,
                matmul_dtype=jnp.bfloat16):
    """Hoisted one-time transforms: reduce fusion, bias folding, bf16 cast, stacking."""
    S, F, E, M = seq_len, feature_dim, embed_dim, middle_dim
    del F
    w_re3 = p["W_re"].reshape(M, E, E)                     # [m, e, f]

    # fused reduce weight: C[s, e, f] = sum_m W_rs[s, m] * W_re[m*E + e, f]
    w_fused = jnp.einsum("sm,mef->sef", p["W_rs"], w_re3)  # (S, E, E)
    # fold reduce_seq bias through reduce_embed: b_eff = b_re + sum_{m,e} b_rs[m]*W_re
    b_re_eff = p["b_re"] + jnp.einsum("m,mef->f", p["b_rs"], w_re3)

    rows = jnp.stack([
        p["b_stem"], p["b_b1"], p["b_b2"],
        p["ln_g"], p["ln_b"],
        b_re_eff,
        p["bc1"], p["bc2"],
        p["lnd_g"], p["lnd_b"],
        p["W_dec"][:, 0],
        jnp.full((E,), p["b_dec"][0]),
    ]).astype(jnp.float32)                                 # (12, E)

    return {
        "w_stem": p["W_stem"].astype(matmul_dtype),                        # (F, E)
        "w_stack": jnp.stack([p["W_b1"], p["W_b2"],
                              p["Wc1"], p["Wc2"]]).astype(matmul_dtype),   # (4, E, E)
        "w_fused": w_fused.astype(matmul_dtype),                           # (S, E, E)
        "rows": rows,                                                      # (12, E)
    }


# ---------------------------------- wrapper ---------------------------------------

def critic_forward(features, pk, *, batch_tile=None):
    B, S, F = features.shape
    E = pk["rows"].shape[-1]

    # Default TB=B (grid=1): best on single-TC v5e/v6e. Pass batch_tile=B//2 to get a
    # 2-step "parallel" grid that v7x shards across its two TensorCores.
    TB = batch_tile if batch_tile is not None else B
    assert B % TB == 0, "batch must be divisible by the batch tile"
    G = B // TB

    # s-major row order for the fused reduce matmuls (layout plumbing, one tiny copy).
    feats_t = jnp.swapaxes(features, 0, 1)                 # (S, B, F)

    out = pl.pallas_call(
        critic_kernel,
        out_shape=jax.ShapeDtypeStruct((G, 1, TB), jnp.float32),
        grid_spec=pltpu.PrefetchScalarGridSpec(
            num_scalar_prefetch=0,
            grid=(G,),
            in_specs=[
                pl.BlockSpec((S, TB, F), lambda b: (0, b, 0)),
                pl.BlockSpec(pk["w_stem"].shape, lambda b: (0, 0)),
                pl.BlockSpec(pk["w_stack"].shape, lambda b: (0, 0, 0)),
                pl.BlockSpec(pk["w_fused"].shape, lambda b: (0, 0, 0)),
                pl.BlockSpec(pk["rows"].shape, lambda b: (0, 0)),
            ],
            out_specs=pl.BlockSpec((1, 1, TB), lambda b: (b, 0, 0)),
        ),
        compiler_params=pltpu.CompilerParams(
            dimension_semantics=("parallel",),
            vmem_limit_bytes=32 * 1024 * 1024,             # generous; actual use ~2 MB
        ),
    )(feats_t, pk["w_stem"], pk["w_stack"], pk["w_fused"], pk["rows"])
    return out.reshape(B)                                  # (B,)


# ------------------------- pure-JAX reference (for validation) --------------------

def critic_reference(features, p, *, middle_dim, embed_dim):
    B = features.shape[0]
    E, M = embed_dim, middle_dim
    x = features @ p["W_stem"] + p["b_stem"]
    x = _gelu(x @ p["W_b1"] + p["b_b1"])
    x = _gelu(x @ p["W_b2"] + p["b_b2"])
    x = _layernorm(x, p["ln_g"], p["ln_b"])
    x = jnp.swapaxes(x, -1, -2)                            # '... d n -> ... n d'
    x = x @ p["W_rs"] + p["b_rs"]                          # (B, E, M)
    x = jnp.swapaxes(x, -1, -2).reshape(B, M * E)          # '... n d -> ... (d n)'
    x = x @ p["W_re"] + p["b_re"]
    h = jnp.tanh(x @ p["Wc1"] + p["bc1"])
    h = h @ p["Wc2"] + p["bc2"]
    h = _layernorm(h, p["lnd_g"], p["lnd_b"])
    v = h @ p["W_dec"] + p["b_dec"]
    return v.squeeze(-1)


# ---------------------------------- params ----------------------------------------

def init_params(key, *, seq_len, feature_dim, embed_dim, middle_dim, output_dim):
    S, F, E, M = seq_len, feature_dim, embed_dim, middle_dim
    keys = iter(jax.random.split(key, 32))

    def lin(fan_in, shape):
        bound = 1.0 / jnp.sqrt(jnp.float32(fan_in))
        return jax.random.uniform(next(keys), shape, jnp.float32, -bound, bound)

    return {
        "W_stem": lin(F, (F, E)), "b_stem": lin(F, (E,)),
        "W_b1": lin(E, (E, E)), "b_b1": lin(E, (E,)),
        "W_b2": lin(E, (E, E)), "b_b2": lin(E, (E,)),
        "ln_g": jnp.ones((E,), jnp.float32), "ln_b": jnp.zeros((E,), jnp.float32),
        "W_rs": lin(S, (S, M)), "b_rs": lin(S, (M,)),
        "W_re": lin(M * E, (M * E, E)), "b_re": lin(M * E, (E,)),
        "Wc1": lin(E, (E, E)), "bc1": lin(E, (E,)),
        "Wc2": lin(E, (E, E)), "bc2": lin(E, (E,)),
        "lnd_g": jnp.ones((E,), jnp.float32), "lnd_b": jnp.zeros((E,), jnp.float32),
        "W_dec": lin(E, (E, output_dim)), "b_dec": lin(E, (output_dim,)),
    }


# ------------------------------------ main -----------------------------------------

if __name__ == "__main__":
    # small but lane-dense shapes consistent with the module's forward
    B, SEQ_LEN, FEATURE_DIM, EMBED_DIM, MIDDLE_DIM, OUTPUT_DIM = 64, 8, 128, 128, 8, 1
    # grid=2 "parallel" -> shards across v7x's two TensorCores; on single-TC v5e/v6e
    # BATCH_TILE = B (grid=1) removes one ~0.35us grid-step overhead.
    BATCH_TILE = 32

    key = jax.random.PRNGKey(0)
    k_feat, k_par = jax.random.split(key)
    features = jax.random.normal(k_feat, (B, SEQ_LEN, FEATURE_DIM), jnp.float32)
    params = init_params(k_par, seq_len=SEQ_LEN, feature_dim=FEATURE_DIM,
                         embed_dim=EMBED_DIM, middle_dim=MIDDLE_DIM,
                         output_dim=OUTPUT_DIM)

    # one-time parameter packing (fusion / folding / bf16 cast), hoisted out of the call
    packed = pack_params(params, seq_len=SEQ_LEN, feature_dim=FEATURE_DIM,
                         embed_dim=EMBED_DIM, middle_dim=MIDDLE_DIM)

    fwd = jax.jit(functools.partial(critic_forward, batch_tile=BATCH_TILE))
    pred = jax.block_until_ready(fwd(features, packed))

    ref = jax.block_until_ready(
        critic_reference(features, params, middle_dim=MIDDLE_DIM, embed_dim=EMBED_DIM))

    assert pred.shape == (B,)
    # bf16 MXU operands (f32 accumulation) -> looser tolerance vs the pure-f32 reference
    assert jnp.allclose(pred, ref, atol=5e-2, rtol=5e-2), \
        float(jnp.max(jnp.abs(pred - ref)))
    print("KERNEL_OK")
</pallas_src>

<mosaic_0001>
module attributes {stable_mosaic.version = 11 : i64} {
  func.func @critic_kernel(%arg0: i32, %arg1: memref<8x32x128xf32, #tpu.memory_space<vmem>>, %arg2: memref<128x128xbf16, #tpu.memory_space<vmem>>, %arg3: memref<4x128x128xbf16, #tpu.memory_space<vmem>>, %arg4: memref<8x128x128xbf16, #tpu.memory_space<vmem>>, %arg5: memref<12x128xf32, #tpu.memory_space<vmem>>, %arg6: memref<1x1x32xf32, #tpu.memory_space<vmem>>) attributes {dimension_semantics = [#tpu.dimension_semantics<parallel>], iteration_bounds = array<i64: 2>, scalar_prefetch = 0 : i64, scratch_operands = 0 : i64, tpu.core_type = #tpu.core_type<tc>, window_params = [{transform_indices = @transform_0, window_bounds = array<i64: 8, 32, 128>}, {pipeline_mode = #tpu.pipeline_mode<synchronous>, transform_indices = @transform_1, window_bounds = array<i64: 128, 128>}, {pipeline_mode = #tpu.pipeline_mode<synchronous>, transform_indices = @transform_2, window_bounds = array<i64: 4, 128, 128>}, {pipeline_mode = #tpu.pipeline_mode<synchronous>, transform_indices = @transform_3, window_bounds = array<i64: 8, 128, 128>}, {pipeline_mode = #tpu.pipeline_mode<synchronous>, transform_indices = @transform_4, window_bounds = array<i64: 12, 128>}, {transform_indices = @transform_5, window_bounds = array<i64: 1, 1, 32>}]} {
    %c0 = arith.constant 0 : index
    %c0_0 = arith.constant 0 : index
    %0 = vector.load %arg5[%c0, %c0_0] : memref<12x128xf32, #tpu.memory_space<vmem>>, vector<12x128xf32>
    %c0_1 = arith.constant 0 : index
    %c0_2 = arith.constant 0 : index
    %c0_3 = arith.constant 0 : index
    %1 = vector.load %arg1[%c0_1, %c0_2, %c0_3] : memref<8x32x128xf32, #tpu.memory_space<vmem>>, vector<8x32x128xf32>
    %2 = vector.shape_cast %1 : vector<8x32x128xf32> to vector<256x128xf32>
    %3 = arith.truncf %2 : vector<256x128xf32> to vector<256x128xbf16>
    %c0_4 = arith.constant 0 : index
    %c0_5 = arith.constant 0 : index
    %4 = vector.load %arg2[%c0_4, %c0_5] : memref<128x128xbf16, #tpu.memory_space<vmem>>, vector<128x128xbf16>
    %cst = arith.constant dense<0.000000e+00> : vector<256x128xf32>
    %5 = tpu.matmul %3, %4, %cst {dimension_numbers = #tpu.dot_dimension_numbers<[1], [0], [0], [1], [0, 0, 1, 1], [], []>} : vector<256x128xbf16>, vector<128x128xbf16>, vector<256x128xf32> -> vector<256x128xf32>
    %6 = vector.extract_strided_slice %0 {offsets = [0, 0], sizes = [1, 128], strides = [1, 1]} : vector<12x128xf32> to vector<1x128xf32>
    %7 = vector.broadcast %6 : vector<1x128xf32> to vector<256x128xf32>
    %8 = arith.addf %5, %7 : vector<256x128xf32>
    %9 = arith.truncf %8 : vector<256x128xf32> to vector<256x128xbf16>
    %c0_6 = arith.constant 0 : index
    %c0_7 = arith.constant 0 : index
    %c0_8 = arith.constant 0 : index
    %10 = vector.load %arg3[%c0_6, %c0_7, %c0_8] : memref<4x128x128xbf16, #tpu.memory_space<vmem>>, vector<1x128x128xbf16>
    %11 = vector.shape_cast %10 : vector<1x128x128xbf16> to vector<128x128xbf16>
    %cst_9 = arith.constant dense<0.000000e+00> : vector<256x128xf32>
    %12 = tpu.matmul %9, %11, %cst_9 {dimension_numbers = #tpu.dot_dimension_numbers<[1], [0], [0], [1], [0, 0, 1, 1], [], []>} : vector<256x128xbf16>, vector<128x128xbf16>, vector<256x128xf32> -> vector<256x128xf32>
    %13 = vector.extract_strided_slice %0 {offsets = [1, 0], sizes = [1, 128], strides = [1, 1]} : vector<12x128xf32> to vector<1x128xf32>
    %14 = vector.broadcast %13 : vector<1x128xf32> to vector<256x128xf32>
    %15 = arith.addf %12, %14 : vector<256x128xf32>
    %cst_10 = arith.constant 5.000000e-01 : f32
    %16 = vector.broadcast %cst_10 : f32 to vector<256x128xf32>
    %17 = arith.mulf %16, %15 : vector<256x128xf32>
    %cst_11 = arith.constant 4.471500e-02 : f32
    %18 = vector.broadcast %cst_11 : f32 to vector<256x128xf32>
    %19 = arith.mulf %18, %15 : vector<256x128xf32>
    %20 = arith.mulf %19, %15 : vector<256x128xf32>
    %21 = arith.mulf %20, %15 : vector<256x128xf32>
    %22 = arith.addf %15, %21 : vector<256x128xf32>
    %cst_12 = arith.constant 0.797884583 : f32
    %23 = vector.broadcast %cst_12 : f32 to vector<256x128xf32>
    %24 = arith.mulf %23, %22 : vector<256x128xf32>
    %25 = math.tanh %24 : vector<256x128xf32>
    %cst_13 = arith.constant 1.000000e+00 : f32
    %26 = vector.broadcast %cst_13 : f32 to vector<256x128xf32>
    %27 = arith.addf %26, %25 : vector<256x128xf32>
    %28 = arith.mulf %17, %27 : vector<256x128xf32>
    %29 = arith.truncf %28 : vector<256x128xf32> to vector<256x128xbf16>
    %c1 = arith.constant 1 : index
    %c0_14 = arith.constant 0 : index
    %c0_15 = arith.constant 0 : index
    %30 = vector.load %arg3[%c1, %c0_14, %c0_15] : memref<4x128x128xbf16, #tpu.memory_space<vmem>>, vector<1x128x128xbf16>
    %31 = vector.shape_cast %30 : vector<1x128x128xbf16> to vector<128x128xbf16>
    %cst_16 = arith.constant dense<0.000000e+00> : vector<256x128xf32>
    %32 = tpu.matmul %29, %31, %cst_16 {dimension_numbers = #tpu.dot_dimension_numbers<[1], [0], [0], [1], [0, 0, 1, 1], [], []>} : vector<256x128xbf16>, vector<128x128xbf16>, vector<256x128xf32> -> vector<256x128xf32>
    %33 = vector.extract_strided_slice %0 {offsets = [2, 0], sizes = [1, 128], strides = [1, 1]} : vector<12x128xf32> to vector<1x128xf32>
    %34 = vector.broadcast %33 : vector<1x128xf32> to vector<256x128xf32>
    %35 = arith.addf %32, %34 : vector<256x128xf32>
    %cst_17 = arith.constant 5.000000e-01 : f32
    %36 = vector.broadcast %cst_17 : f32 to vector<256x128xf32>
    %37 = arith.mulf %36, %35 : vector<256x128xf32>
    %cst_18 = arith.constant 4.471500e-02 : f32
    %38 = vector.broadcast %cst_18 : f32 to vector<256x128xf32>
    %39 = arith.mulf %38, %35 : vector<256x128xf32>
    %40 = arith.mulf %39, %35 : vector<256x128xf32>
    %41 = arith.mulf %40, %35 : vector<256x128xf32>
    %42 = arith.addf %35, %41 : vector<256x128xf32>
    %cst_19 = arith.constant 0.797884583 : f32
    %43 = vector.broadcast %cst_19 : f32 to vector<256x128xf32>
    %44 = arith.mulf %43, %42 : vector<256x128xf32>
    %45 = math.tanh %44 : vector<256x128xf32>
    %cst_20 = arith.constant 1.000000e+00 : f32
    %46 = vector.broadcast %cst_20 : f32 to vector<256x128xf32>
    %47 = arith.addf %46, %45 : vector<256x128xf32>
    %48 = arith.mulf %37, %47 : vector<256x128xf32>
    %49 = vector.extract_strided_slice %0 {offsets = [3, 0], sizes = [1, 128], strides = [1, 1]} : vector<12x128xf32> to vector<1x128xf32>
    %50 = vector.extract_strided_slice %0 {offsets = [4, 0], sizes = [1, 128], strides = [1, 1]} : vector<12x128xf32> to vector<1x128xf32>
    %cst_21 = arith.constant dense<0.000000e+00> : vector<256xf32>
    %51 = vector.multi_reduction <add>, %48, %cst_21 [1] : vector<256x128xf32> to vector<256xf32>
    %52 = vector.shape_cast %51 : vector<256xf32> to vector<256x1xf32>
    %cst_22 = arith.constant 1.280000e+02 : f32
    %53 = vector.broadcast %cst_22 : f32 to vector<256x1xf32>
    %54 = arith.divf %52, %53 : vector<256x1xf32>
    %55 = vector.broadcast %54 : vector<256x1xf32> to vector<256x128xf32>
    %56 = arith.subf %48, %55 : vector<256x128xf32>
    %57 = vector.broadcast %54 : vector<256x1xf32> to vector<256x128xf32>
    %58 = arith.subf %48, %57 : vector<256x128xf32>
    %59 = arith.mulf %56, %58 : vector<256x128xf32>
    %cst_23 = arith.constant dense<0.000000e+00> : vector<256xf32>
    %60 = vector.multi_reduction <add>, %59, %cst_23 [1] : vector<256x128xf32> to vector<256xf32>
    %61 = vector.shape_cast %60 : vector<256xf32> to vector<256x1xf32>
    %cst_24 = arith.constant 1.280000e+02 : f32
    %62 = vector.broadcast %cst_24 : f32 to vector<256x1xf32>
    %63 = arith.divf %61, %62 : vector<256x1xf32>
    %64 = vector.broadcast %54 : vector<256x1xf32> to vector<256x128xf32>
    %65 = arith.subf %48, %64 : vector<256x128xf32>
    %cst_25 = arith.constant 9.99999997E-7 : f32
    %66 = vector.broadcast %cst_25 : f32 to vector<256x1xf32>
    %67 = arith.addf %63, %66 : vector<256x1xf32>
    %68 = math.rsqrt %67 : vector<256x1xf32>
    %69 = vector.broadcast %68 : vector<256x1xf32> to vector<256x128xf32>
    %70 = arith.mulf %65, %69 : vector<256x128xf32>
    %71 = vector.broadcast %49 : vector<1x128xf32> to vector<256x128xf32>
    %72 = arith.mulf %70, %71 : vector<256x128xf32>
    %73 = vector.broadcast %50 : vector<1x128xf32> to vector<256x128xf32>
    %74 = arith.addf %72, %73 : vector<256x128xf32>
    %75 = arith.truncf %74 : vector<256x128xf32> to vector<256x128xbf16>
    %cst_26 = arith.constant 0.000000e+00 : f32
    %76 = vector.broadcast %cst_26 : f32 to vector<32x128xf32>
    %77 = vector.extract_strided_slice %75 {offsets = [0, 0], sizes = [32, 128], strides = [1, 1]} : vector<256x128xbf16> to vector<32x128xbf16>
    %c0_27 = arith.constant 0 : index
    %c0_28 = arith.constant 0 : index
    %c0_29 = arith.constant 0 : index
    %78 = vector.load %arg4[%c0_27, %c0_28, %c0_29] : memref<8x128x128xbf16, #tpu.memory_space<vmem>>, vector<1x128x128xbf16>
    %79 = vector.shape_cast %78 : vector<1x128x128xbf16> to vector<128x128xbf16>
    %cst_30 = arith.constant dense<0.000000e+00> : vector<32x128xf32>
    %80 = tpu.matmul %77, %79, %cst_30 {dimension_numbers = #tpu.dot_dimension_numbers<[1], [0], [0], [1], [0, 0, 1, 1], [], []>} : vector<32x128xbf16>, vector<128x128xbf16>, vector<32x128xf32> -> vector<32x128xf32>
    %81 = arith.addf %76, %80 : vector<32x128xf32>
    %82 = vector.extract_strided_slice %75 {offsets = [32, 0], sizes = [32, 128], strides = [1, 1]} : vector<256x128xbf16> to vector<32x128xbf16>
    %c1_31 = arith.constant 1 : index
    %c0_32 = arith.constant 0 : index
    %c0_33 = arith.constant 0 : index
    %83 = vector.load %arg4[%c1_31, %c0_32, %c0_33] : memref<8x128x128xbf16, #tpu.memory_space<vmem>>, vector<1x128x128xbf16>
    %84 = vector.shape_cast %83 : vector<1x128x128xbf16> to vector<128x128xbf16>
    %cst_34 = arith.constant dense<0.000000e+00> : vector<32x128xf32>
    %85 = tpu.matmul %82, %84, %cst_34 {dimension_numbers = #tpu.dot_dimension_numbers<[1], [0], [0], [1], [0, 0, 1, 1], [], []>} : vector<32x128xbf16>, vector<128x128xbf16>, vector<32x128xf32> -> vector<32x128xf32>
    %86 = arith.addf %81, %85 : vector<32x128xf32>
    %87 = vector.extract_strided_slice %75 {offsets = [64, 0], sizes = [32, 128], strides = [1, 1]} : vector<256x128xbf16> to vector<32x128xbf16>
    %c2 = arith.constant 2 : index
    %c0_35 = arith.constant 0 : index
    %c0_36 = arith.constant 0 : index
    %88 = vector.load %arg4[%c2, %c0_35, %c0_36] : memref<8x128x128xbf16, #tpu.memory_space<vmem>>, vector<1x128x128xbf16>
    %89 = vector.shape_cast %88 : vector<1x128x128xbf16> to vector<128x128xbf16>
    %cst_37 = arith.constant dense<0.000000e+00> : vector<32x128xf32>
    %90 = tpu.matmul %87, %89, %cst_37 {dimension_numbers = #tpu.dot_dimension_numbers<[1], [0], [0], [1], [0, 0, 1, 1], [], []>} : vector<32x128xbf16>, vector<128x128xbf16>, vector<32x128xf32> -> vector<32x128xf32>
    %91 = arith.addf %86, %90 : vector<32x128xf32>
    %92 = vector.extract_strided_slice %75 {offsets = [96, 0], sizes = [32, 128], strides = [1, 1]} : vector<256x128xbf16> to vector<32x128xbf16>
    %c3 = arith.constant 3 : index
    %c0_38 = arith.constant 0 : index
    %c0_39 = arith.constant 0 : index
    %93 = vector.load %arg4[%c3, %c0_38, %c0_39] : memref<8x128x128xbf16, #tpu.memory_space<vmem>>, vector<1x128x128xbf16>
    %94 = vector.shape_cast %93 : vector<1x128x128xbf16> to vector<128x128xbf16>
    %cst_40 = arith.constant dense<0.000000e+00> : vector<32x128xf32>
    %95 = tpu.matmul %92, %94, %cst_40 {dimension_numbers = #tpu.dot_dimension_numbers<[1], [0], [0], [1], [0, 0, 1, 1], [], []>} : vector<32x128xbf16>, vector<128x128xbf16>, vector<32x128xf32> -> vector<32x128xf32>
    %96 = arith.addf %91, %95 : vector<32x128xf32>
    %97 = vector.extract_strided_slice %75 {offsets = [128, 0], sizes = [32, 128], strides = [1, 1]} : vector<256x128xbf16> to vector<32x128xbf16>
    %c4 = arith.constant 4 : index
    %c0_41 = arith.constant 0 : index
    %c0_42 = arith.constant 0 : index
    %98 = vector.load %arg4[%c4, %c0_41, %c0_42] : memref<8x128x128xbf16, #tpu.memory_space<vmem>>, vector<1x128x128xbf16>
    %99 = vector.shape_cast %98 : vector<1x128x128xbf16> to vector<128x128xbf16>
    %cst_43 = arith.constant dense<0.000000e+00> : vector<32x128xf32>
    %100 = tpu.matmul %97, %99, %cst_43 {dimension_numbers = #tpu.dot_dimension_numbers<[1], [0], [0], [1], [0, 0, 1, 1], [], []>} : vector<32x128xbf16>, vector<128x128xbf16>, vector<32x128xf32> -> vector<32x128xf32>
    %101 = arith.addf %96, %100 : vector<32x128xf32>
    %102 = vector.extract_strided_slice %75 {offsets = [160, 0], sizes = [32, 128], strides = [1, 1]} : vector<256x128xbf16> to vector<32x128xbf16>
    %c5 = arith.constant 5 : index
    %c0_44 = arith.constant 0 : index
    %c0_45 = arith.constant 0 : index
    %103 = vector.load %arg4[%c5, %c0_44, %c0_45] : memref<8x128x128xbf16, #tpu.memory_space<vmem>>, vector<1x128x128xbf16>
    %104 = vector.shape_cast %103 : vector<1x128x128xbf16> to vector<128x128xbf16>
    %cst_46 = arith.constant dense<0.000000e+00> : vector<32x128xf32>
    %105 = tpu.matmul %102, %104, %cst_46 {dimension_numbers = #tpu.dot_dimension_numbers<[1], [0], [0], [1], [0, 0, 1, 1], [], []>} : vector<32x128xbf16>, vector<128x128xbf16>, vector<32x128xf32> -> vector<32x128xf32>
    %106 = arith.addf %101, %105 : vector<32x128xf32>
    %107 = vector.extract_strided_slice %75 {offsets = [192, 0], sizes = [32, 128], strides = [1, 1]} : vector<256x128xbf16> to vector<32x128xbf16>
    %c6 = arith.constant 6 : index
    %c0_47 = arith.constant 0 : index
    %c0_48 = arith.constant 0 : index
    %108 = vector.load %arg4[%c6, %c0_47, %c0_48] : memref<8x128x128xbf16, #tpu.memory_space<vmem>>, vector<1x128x128xbf16>
    %109 = vector.shape_cast %108 : vector<1x128x128xbf16> to vector<128x128xbf16>
    %cst_49 = arith.constant dense<0.000000e+00> : vector<32x128xf32>
    %110 = tpu.matmul %107, %109, %cst_49 {dimension_numbers = #tpu.dot_dimension_numbers<[1], [0], [0], [1], [0, 0, 1, 1], [], []>} : vector<32x128xbf16>, vector<128x128xbf16>, vector<32x128xf32> -> vector<32x128xf32>
    %111 = arith.addf %106, %110 : vector<32x128xf32>
    %112 = vector.extract_strided_slice %75 {offsets = [224, 0], sizes = [32, 128], strides = [1, 1]} : vector<256x128xbf16> to vector<32x128xbf16>
    %c7 = arith.constant 7 : index
    %c0_50 = arith.constant 0 : index
    %c0_51 = arith.constant 0 : index
    %113 = vector.load %arg4[%c7, %c0_50, %c0_51] : memref<8x128x128xbf16, #tpu.memory_space<vmem>>, vector<1x128x128xbf16>
    %114 = vector.shape_cast %113 : vector<1x128x128xbf16> to vector<128x128xbf16>
    %cst_52 = arith.constant dense<0.000000e+00> : vector<32x128xf32>
    %115 = tpu.matmul %112, %114, %cst_52 {dimension_numbers = #tpu.dot_dimension_numbers<[1], [0], [0], [1], [0, 0, 1, 1], [], []>} : vector<32x128xbf16>, vector<128x128xbf16>, vector<32x128xf32> -> vector<32x128xf32>
    %116 = arith.addf %111, %115 : vector<32x128xf32>
    %117 = vector.extract_strided_slice %0 {offsets = [5, 0], sizes = [1, 128], strides = [1, 1]} : vector<12x128xf32> to vector<1x128xf32>
    %118 = vector.broadcast %117 : vector<1x128xf32> to vector<32x128xf32>
    %119 = arith.addf %116, %118 : vector<32x128xf32>
    %120 = arith.truncf %119 : vector<32x128xf32> to vector<32x128xbf16>
    %c2_53 = arith.constant 2 : index
    %c0_54 = arith.constant 0 : index
    %c0_55 = arith.constant 0 : index
    %121 = vector.load %arg3[%c2_53, %c0_54, %c0_55] : memref<4x128x128xbf16, #tpu.memory_space<vmem>>, vector<1x128x128xbf16>
    %122 = vector.shape_cast %121 : vector<1x128x128xbf16> to vector<128x128xbf16>
    %cst_56 = arith.constant dense<0.000000e+00> : vector<32x128xf32>
    %123 = tpu.matmul %120, %122, %cst_56 {dimension_numbers = #tpu.dot_dimension_numbers<[1], [0], [0], [1], [0, 0, 1, 1], [], []>} : vector<32x128xbf16>, vector<128x128xbf16>, vector<32x128xf32> -> vector<32x128xf32>
    %124 = vector.extract_strided_slice %0 {offsets = [6, 0], sizes = [1, 128], strides = [1, 1]} : vector<12x128xf32> to vector<1x128xf32>
    %125 = vector.broadcast %124 : vector<1x128xf32> to vector<32x128xf32>
    %126 = arith.addf %123, %125 : vector<32x128xf32>
    %127 = math.tanh %126 : vector<32x128xf32>
    %128 = arith.truncf %127 : vector<32x128xf32> to vector<32x128xbf16>
    %c3_57 = arith.constant 3 : index
    %c0_58 = arith.constant 0 : index
    %c0_59 = arith.constant 0 : index
    %129 = vector.load %arg3[%c3_57, %c0_58, %c0_59] : memref<4x128x128xbf16, #tpu.memory_space<vmem>>, vector<1x128x128xbf16>
    %130 = vector.shape_cast %129 : vector<1x128x128xbf16> to vector<128x128xbf16>
    %cst_60 = arith.constant dense<0.000000e+00> : vector<32x128xf32>
    %131 = tpu.matmul %128, %130, %cst_60 {dimension_numbers = #tpu.dot_dimension_numbers<[1], [0], [0], [1], [0, 0, 1, 1], [], []>} : vector<32x128xbf16>, vector<128x128xbf16>, vector<32x128xf32> -> vector<32x128xf32>
    %132 = vector.extract_strided_slice %0 {offsets = [7, 0], sizes = [1, 128], strides = [1, 1]} : vector<12x128xf32> to vector<1x128xf32>
    %133 = vector.broadcast %132 : vector<1x128xf32> to vector<32x128xf32>
    %134 = arith.addf %131, %133 : vector<32x128xf32>
    %135 = vector.extract_strided_slice %0 {offsets = [8, 0], sizes = [1, 128], strides = [1, 1]} : vector<12x128xf32> to vector<1x128xf32>
    %136 = vector.extract_strided_slice %0 {offsets = [9, 0], sizes = [1, 128], strides = [1, 1]} : vector<12x128xf32> to vector<1x128xf32>
    %cst_61 = arith.constant dense<0.000000e+00> : vector<32xf32>
    %137 = vector.multi_reduction <add>, %134, %cst_61 [1] : vector<32x128xf32> to vector<32xf32>
    %138 = vector.shape_cast %137 : vector<32xf32> to vector<32x1xf32>
    %cst_62 = arith.constant 1.280000e+02 : f32
    %139 = vector.broadcast %cst_62 : f32 to vector<32x1xf32>
    %140 = arith.divf %138, %139 : vector<32x1xf32>
    %141 = vector.broadcast %140 : vector<32x1xf32> to vector<32x128xf32>
    %142 = arith.subf %134, %141 : vector<32x128xf32>
    %143 = vector.broadcast %140 : vector<32x1xf32> to vector<32x128xf32>
    %144 = arith.subf %134, %143 : vector<32x128xf32>
    %145 = arith.mulf %142, %144 : vector<32x128xf32>
    %cst_63 = arith.constant dense<0.000000e+00> : vector<32xf32>
    %146 = vector.multi_reduction <add>, %145, %cst_63 [1] : vector<32x128xf32> to vector<32xf32>
    %147 = vector.shape_cast %146 : vector<32xf32> to vector<32x1xf32>
    %cst_64 = arith.constant 1.280000e+02 : f32
    %148 = vector.broadcast %cst_64 : f32 to vector<32x1xf32>
    %149 = arith.divf %147, %148 : vector<32x1xf32>
    %150 = vector.broadcast %140 : vector<32x1xf32> to vector<32x128xf32>
    %151 = arith.subf %134, %150 : vector<32x128xf32>
    %cst_65 = arith.constant 9.99999997E-7 : f32
    %152 = vector.broadcast %cst_65 : f32 to vector<32x1xf32>
    %153 = arith.addf %149, %152 : vector<32x1xf32>
    %154 = math.rsqrt %153 : vector<32x1xf32>
    %155 = vector.broadcast %154 : vector<32x1xf32> to vector<32x128xf32>
    %156 = arith.mulf %151, %155 : vector<32x128xf32>
    %157 = vector.broadcast %135 : vector<1x128xf32> to vector<32x128xf32>
    %158 = arith.mulf %156, %157 : vector<32x128xf32>
    %159 = vector.broadcast %136 : vector<1x128xf32> to vector<32x128xf32>
    %160 = arith.addf %158, %159 : vector<32x128xf32>
    %161 = vector.extract_strided_slice %0 {offsets = [10, 0], sizes = [1, 128], strides = [1, 1]} : vector<12x128xf32> to vector<1x128xf32>
    %162 = arith.truncf %161 : vector<1x128xf32> to vector<1x128xbf16>
    %163 = arith.truncf %160 : vector<32x128xf32> to vector<32x128xbf16>
    %cst_66 = arith.constant dense<0.000000e+00> : vector<1x32xf32>
    %164 = tpu.matmul %162, %163, %cst_66 {dimension_numbers = #tpu.dot_dimension_numbers<[1], [1], [0], [0], [0, 0, 1, 0], [], []>} : vector<1x128xbf16>, vector<32x128xbf16>, vector<1x32xf32> -> vector<1x32xf32>
    %165 = vector.extract_strided_slice %0 {offsets = [11, 0], sizes = [1, 1], strides = [1, 1]} : vector<12x128xf32> to vector<1x1xf32>
    %166 = vector.broadcast %165 : vector<1x1xf32> to vector<1x32xf32>
    %167 = arith.addf %164, %166 : vector<1x32xf32>
    %c0_67 = arith.constant 0 : index
    %c0_68 = arith.constant 0 : index
    %c0_69 = arith.constant 0 : index
    %168 = vector.load %arg6[%c0_67, %c0_68, %c0_69] : memref<1x1x32xf32, #tpu.memory_space<vmem>>, vector<1x1x32xf32>
    %169 = vector.shape_cast %168 : vector<1x1x32xf32> to vector<1x32xf32>
    %170 = vector.shape_cast %167 : vector<1x32xf32> to vector<1x1x32xf32>
    tpu.vector_store %arg6[%c0_67, %c0_68, %c0_69], %170 {strides = array<i32>} : memref<1x1x32xf32, #tpu.memory_space<vmem>>, vector<1x1x32xf32>,
    return
  }
  func.func @transform_0(%arg0: i32) -> (i32, i32, i32) {
    %c0_i32 = arith.constant 0 : i32
    %c0_i32_0 = arith.constant 0 : i32
    %c0_i32_1 = arith.constant 0 : i32
    return %c0_i32, %arg0, %c0_i32_0 : i32, i32, i32
  }
  func.func @transform_1(%arg0: i32) -> (i32, i32) {
    %c0_i32 = arith.constant 0 : i32
    %c0_i32_0 = arith.constant 0 : i32
    %c0_i32_1 = arith.constant 0 : i32
    return %c0_i32, %c0_i32_0 : i32, i32
  }
  func.func @transform_2(%arg0: i32) -> (i32, i32, i32) {
    %c0_i32 = arith.constant 0 : i32
    %c0_i32_0 = arith.constant 0 : i32
    %c0_i32_1 = arith.constant 0 : i32
    %c0_i32_2 = arith.constant 0 : i32
    return %c0_i32, %c0_i32_0, %c0_i32_1 : i32, i32, i32
  }
  func.func @transform_3(%arg0: i32) -> (i32, i32, i32) {
    %c0_i32 = arith.constant 0 : i32
    %c0_i32_0 = arith.constant 0 : i32
    %c0_i32_1 = arith.constant 0 : i32
    %c0_i32_2 = arith.constant 0 : i32
    return %c0_i32, %c0_i32_0, %c0_i32_1 : i32, i32, i32
  }
  func.func @transform_4(%arg0: i32) -> (i32, i32) {
    %c0_i32 = arith.constant 0 : i32
    %c0_i32_0 = arith.constant 0 : i32
    %c0_i32_1 = arith.constant 0 : i32
    return %c0_i32, %c0_i32_0 : i32, i32
  }
  func.func @transform_5(%arg0: i32) -> (i32, i32, i32) {
    %c0_i32 = arith.constant 0 : i32
    %c0_i32_0 = arith.constant 0 : i32
    %c0_i32_1 = arith.constant 0 : i32
    return %arg0, %c0_i32, %c0_i32_0 : i32, i32, i32
  }
}

</mosaic_0001>

<llo_original>
// kernel: critic_forward.1
$region0: #{critic_forward.1}
  #allocation0 [shape = 'u32[]', space=smem, size = 0x4, offset = 0x4, fixed_abs, tag = 'smem constant byte address 0x4 - core index']
  #allocation1 [shape = 'u32[72,128]{1,0:T(1,128)}', space=vmem, size = 0x9000, scoped, tag = 'internal scratch']
  %s0 = inlined_call_operand.vmem [shape: f32[8,64,128], index: 0, kind: input, shape index: {}]
  %s1 = inlined_call_operand.vmem [shape: bf16[128,128], index: 1, kind: input, shape index: {}]
  %s2 = inlined_call_operand.vmem [shape: bf16[4,128,128], index: 2, kind: input, shape index: {}]
  %s3 = inlined_call_operand.vmem [shape: bf16[8,128,128], index: 3, kind: input, shape index: {}]
  %s4 = inlined_call_operand.vmem [shape: f32[12,128], index: 4, kind: input, shape index: {}]
  %s5 = inlined_call_operand.vmem [shape: f32[2,1,32], index: 5, kind: output, shape index: {}]
  %s6 = sld [smem:[#allocation0]]
  $region91: #{critic_forward.1} parent=0
    _
  %s8 = ssub.s32 1, %s6
  %s9 = scalar_select 0, %s8, %s6
  $region1: #{critic_forward.1} parent=0
    #allocation2 [shape = 'u8[262144]{0}', space=vmem, size = 0x40000, scoped, tag = 'input window, operand 0']
    loop: start=0, step=1, limit=4
    $region2: #{critic_forward.1} parent=1 // loop_pre_header
      _
    $region3: #{critic_forward.1} parent=1 // loop_header
      %s11 = sphi 0, %s15
      %p12 = scmp.ge.s32.totalorder %s11, 4
      %s21 = sphi 0, %s23
      %s24 = sphi 0, %s21
      %s25 = sphi 0, %s24
      %s41 = sphi 0, %s25
      %s45 = sphi 0, %s45
      %s47 = sphi 0, %s45
      %s48 = sphi 0, %s47
      %s62 = sphi 0, %s48
      %s66 = sphi 0, %s66
      %s68 = sphi 0, %s66
      %s69 = sphi 0, %s68
      %s83 = sphi 0, %s69
      %s87 = sphi 0, %s87
      %s89 = sphi 0, %s87
      %s90 = sphi 0, %s89
      %s104 = sphi 0, %s90
      %s108 = sphi 0, %s108
      %s110 = sphi 0, %s108
      %s111 = sphi 0, %s110
      %s125 = sphi 0, %s111
      %s131 = sphi 0, %s133
      %s134 = sphi 0, %s131
      %s135 = sphi 0, %s134
      %s151 = sphi 0, %s135
    $region4: #{critic_forward.1} parent=1 // loop_header_branch
      %14 = sbr.rel (%p12) target = $region8
    $region5: #{critic_forward.1} parent=1 // loop_body
      %s16 = ssub.s32 %s11, 1
      %s17 = ssub.s32 %s11, 2
      %s18 = sadd.s32 %s11, 1
      %s19 = ssub.s32 %s11, %s18
      %p20 = scmp.eq.s32.totalorder %s19, 0
      %s22 = sadd.s32 %s21, 1
      %s23 = scalar_select %p20, %s21, %s22
      %p26 = pneg %p20
      %p27 = scmp.eq.s32.totalorder %s11, 1
      %p28 = por %p26, %p27
      %p29 = scmp.ne.s32.totalorder %s21, %s24
      %p30 = scmp.eq.s32.totalorder %s11, 0
      %p31 = por %p29, %p30
      %p32 = scmp.ne.s32.totalorder %s21, %s24
      %p33 = scmp.eq.s32.totalorder %s16, 1
      %p34 = por %p32, %p33
      %p35 = scmp.ne.s32.totalorder %s24, %s25
      %p36 = scmp.eq.s32.totalorder %s16, 0
      %p37 = por %p35, %p36
      %p38 = scmp.ne.s32.totalorder %s24, %s25
      %p39 = scmp.eq.s32.totalorder %s17, 1
      %p40 = por %p38, %p39
      %p42 = scmp.ne.s32.totalorder %s25, %s41
      %p43 = scmp.eq.s32.totalorder %s17, 0
      %p44 = por %p42, %p43
      %s46 = sadd.s32 %s45, 1
      %p49 = scmp.eq.s32.totalorder %s11, 1
      %p50 = scmp.ne.s32.totalorder %s45, %s47
      %p51 = scmp.eq.s32.totalorder %s11, 0
      %p52 = por %p50, %p51
      %p53 = scmp.ne.s32.totalorder %s45, %s47
      %p54 = scmp.eq.s32.totalorder %s16, 1
      %p55 = por %p53, %p54
      %p56 = scmp.ne.s32.totalorder %s47, %s48
      %p57 = scmp.eq.s32.totalorder %s16, 0
      %p58 = por %p56, %p57
      %p59 = scmp.ne.s32.totalorder %s47, %s48
      %p60 = scmp.eq.s32.totalorder %s17, 1
      %p61 = por %p59, %p60
      %p63 = scmp.ne.s32.totalorder %s48, %s62
      %p64 = scmp.eq.s32.totalorder %s17, 0
      %p65 = por %p63, %p64
      %s67 = sadd.s32 %s66, 1
      %p70 = scmp.eq.s32.totalorder %s11, 1
      %p71 = scmp.ne.s32.totalorder %s66, %s68
      %p72 = scmp.eq.s32.totalorder %s11, 0
      %p73 = por %p71, %p72
      %p74 = scmp.ne.s32.totalorder %s66, %s68
      %p75 = scmp.eq.s32.totalorder %s16, 1
      %p76 = por %p74, %p75
      %p77 = scmp.ne.s32.totalorder %s68, %s69
      %p78 = scmp.eq.s32.totalorder %s16, 0
      %p79 = por %p77, %p78
      %p80 = scmp.ne.s32.totalorder %s68, %s69
      %p81 = scmp.eq.s32.totalorder %s17, 1
      %p82 = por %p80, %p81
      %p84 = scmp.ne.s32.totalorder %s69, %s83
      %p85 = scmp.eq.s32.totalorder %s17, 0
      %p86 = por %p84, %p85
      %s88 = sadd.s32 %s87, 1
      %p91 = scmp.eq.s32.totalorder %s11, 1
      %p92 = scmp.ne.s32.totalorder %s87, %s89
      %p93 = scmp.eq.s32.totalorder %s11, 0
      %p94 = por %p92, %p93
      %p95 = scmp.ne.s32.totalorder %s87, %s89
      %p96 = scmp.eq.s32.totalorder %s16, 1
      %p97 = por %p95, %p96
      %p98 = scmp.ne.s32.totalorder %s89, %s90
      %p99 = scmp.eq.s32.totalorder %s16, 0
      %p100 = por %p98, %p99
      %p101 = scmp.ne.s32.totalorder %s89, %s90
      %p102 = scmp.eq.s32.totalorder %s17, 1
      %p103 = por %p101, %p102
      %p105 = scmp.ne.s32.totalorder %s90, %s104
      %p106 = scmp.eq.s32.totalorder %s17, 0
      %p107 = por %p105, %p106
      %s109 = sadd.s32 %s108, 1
      %p112 = scmp.eq.s32.totalorder %s11, 1
      %p113 = scmp.ne.s32.totalorder %s108, %s110
      %p114 = scmp.eq.s32.totalorder %s11, 0
      %p115 = por %p113, %p114
      %p116 = scmp.ne.s32.totalorder %s108, %s110
      %p117 = scmp.eq.s32.totalorder %s16, 1
      %p118 = por %p116, %p117
      %p119 = scmp.ne.s32.totalorder %s110, %s111
      %p120 = scmp.eq.s32.totalorder %s16, 0
      %p121 = por %p119, %p120
      %p122 = scmp.ne.s32.totalorder %s110, %s111
      %p123 = scmp.eq.s32.totalorder %s17, 1
      %p124 = por %p122, %p123
      %p126 = scmp.ne.s32.totalorder %s111, %s125
      %p127 = scmp.eq.s32.totalorder %s17, 0
      %p128 = por %p126, %p127
      %s129 = ssub.s32 %s11, %s18
      %p130 = scmp.eq.s32.totalorder %s129, 0
      %s132 = sadd.s32 %s131, 1
      %s133 = scalar_select %p130, %s131, %s132
      %p136 = pneg %p130
      %p137 = scmp.eq.s32.totalorder %s11, 1
      %p138 = por %p136, %p137
      %p139 = scmp.ne.s32.totalorder %s131, %s134
      %p140 = scmp.eq.s32.totalorder %s11, 0
      %p141 = por %p139, %p140
      %p142 = scmp.ne.s32.totalorder %s131, %s134
      %p143 = scmp.eq.s32.totalorder %s16, 1
      %p144 = por %p142, %p143
      %p145 = scmp.ne.s32.totalorder %s134, %s135
      %p146 = scmp.eq.s32.totalorder %s16, 0
      %p147 = por %p145, %p146
      %p148 = scmp.ne.s32.totalorder %s134, %s135
      %p149 = scmp.eq.s32.totalorder %s17, 1
      %p150 = por %p148, %p149
      %p152 = scmp.ne.s32.totalorder %s135, %s151
      %p153 = scmp.eq.s32.totalorder %s17, 0
      %p154 = por %p152, %p153
      %p155 = scmp.le.s32.totalorder 1, %s11
      %p156 = scmp.lt.s32.totalorder %s11, 3
      %p157 = pnand %p155, %p156
      %p158 = pneg %p157
      // Predicated region
      $region9: #{critic_forward.1} parent=5 // pred_check
        _
      $region10: #{critic_forward.1} parent=5 // pred_check_branch
        %160 = sbr.rel (%p157) target = $region12
      $region11: #{critic_forward.1} parent=5 // pred_region
        %s161 = ssub.s32 %s11, 1
        // Predicated region
        $region13: #{critic_forward.1} parent=11 // pred_check
          %p162 = pneg %p58
        $region14: #{critic_forward.1} parent=11 // pred_check_branch
          %164 = sbr.rel (%p162) target = $region16
        $region15: #{critic_forward.1} parent=11 // pred_region
          _
        $region16: #{critic_forward.1} parent=11 // pred_fallthru
          _
        // Predicated region
        $region17: #{critic_forward.1} parent=11 // pred_check
          %p165 = pneg %p79
        $region18: #{critic_forward.1} parent=11 // pred_check_branch
          %167 = sbr.rel (%p165) target = $region20
        $region19: #{critic_forward.1} parent=11 // pred_region
          _
        $region20: #{critic_forward.1} parent=11 // pred_fallthru
          _
        // Predicated region
        $region21: #{critic_forward.1} parent=11 // pred_check
          %p168 = pneg %p100
        $region22: #{critic_forward.1} parent=11 // pred_check_branch
          %170 = sbr.rel (%p168) target = $region24
        $region23: #{critic_forward.1} parent=11 // pred_region
          _
        $region24: #{critic_forward.1} parent=11 // pred_fallthru
          _
        // Predicated region
        $region25: #{critic_forward.1} parent=11 // pred_check
          %p171 = pneg %p121
        $region26: #{critic_forward.1} parent=11 // pred_check_branch
          %173 = sbr.rel (%p171) target = $region28
        $region27: #{critic_forward.1} parent=11 // pred_region
          _
        $region28: #{critic_forward.1} parent=11 // pred_fallthru
          _
      $region12: #{critic_forward.1} parent=5 // pred_fallthru
        _
      %p174 = scmp.lt.s32.totalorder %s11, 2
      // Predicated region
      $region29: #{critic_forward.1} parent=5 // pred_check
        %p175 = pneg %p174
      $region30: #{critic_forward.1} parent=5 // pred_check_branch
        %177 = sbr.rel (%p175) target = $region32
      $region31: #{critic_forward.1} parent=5 // pred_region
        // Predicated region
        $region33: #{critic_forward.1} parent=31 // pred_check
          %p178 = pneg %p31
        $region34: #{critic_forward.1} parent=31 // pred_check_branch
          %180 = sbr.rel (%p178) target = $region36
        $region35: #{critic_forward.1} parent=31 // pred_region
          %s181 = sand.u32 %s21, 1
          %s182 = sand.u32 %s21, 1
          %s183 = smul.addr %s182, 256
          %s184 = scalar_lea.vmem [#allocation2], %s183
          %s185 = smul.u32 4, %s11
          %s186 = smul.addr %s185, 8
          %s187 = scalar_lea.vmem %s0, %s186
          // Predicated region
          $region37: #{critic_forward.1} parent=35 // pred_check
            _
          $region38: #{critic_forward.1} parent=35 // pred_check_branch
            %189 = sbr.rel (0) target = $region40
          $region39: #{critic_forward.1} parent=35 // pred_region
            // Predicated region
            $region41: #{critic_forward.1} parent=39 // pred_check
              _
            $region42: #{critic_forward.1} parent=39 // pred_check_branch
              %191 = sbr.rel (0) target = $region44
            $region43: #{critic_forward.1} parent=39 // pred_region
              // Predicated region
              $region56: #{critic_forward.1} parent=43 // pred_check
                _
              $region57: #{critic_forward.1} parent=43 // pred_check_branch
                %269 = sbr.rel (0) target = $region59
              $region58: #{critic_forward.1} parent=43 // pred_region
                loop: start=0, step=1, limit=1
                $region60: #{critic_forward.1} parent=58 // loop_pre_header
                  _
                $region61: #{critic_forward.1} parent=58 // loop_header
                  %s271 = sphi 0, %s275
                  %p272 = scmp.ge.s32.totalorder %s271, 1
                  %s276 = sphi %s187, %s187
                  %s277 = sphi %s184, %s184
                $region62: #{critic_forward.1} parent=58 // loop_header_branch
                  %274 = sbr.rel (%p272) target = $region66
                $region63: #{critic_forward.1} parent=58 // loop_body
                  %v278 = vld [vmem:[%s276] sm:$0xff]
                  %279 = vst [vmem:[%s277] sm:$0xff] %v278
                  %v280 = vld [vmem:[%s276 + $0x8] sm:$0xff]
                  %281 = vst [vmem:[%s277 + $0x8] sm:$0xff] %v280
                  %v282 = vld [vmem:[%s276 + $0x10] sm:$0xff]
                  %283 = vst [vmem:[%s277 + $0x10] sm:$0xff] %v282
                  %v284 = vld [vmem:[%s276 + $0x18] sm:$0xff]
                  %285 = vst [vmem:[%s277 + $0x18] sm:$0xff] %v284
                  %v286 = vld [vmem:[%s276 + $0x40] sm:$0xff]
                  %287 = vst [vmem:[%s277 + $0x20] sm:$0xff] %v286
                  %v288 = vld [vmem:[%s276 + $0x48] sm:$0xff]
                  %289 = vst [vmem:[%s277 + $0x28] sm:$0xff] %v288
                  %v290 = vld [vmem:[%s276 + $0x50] sm:$0xff]
                  %291 = vst [vmem:[%s277 + $0x30] sm:$0xff] %v290
                  %v292 = vld [vmem:[%s276 + $0x58] sm:$0xff]
                  %293 = vst [vmem:[%s277 + $0x38] sm:$0xff] %v292
                  %v294 = vld [vmem:[%s276 + $0x80] sm:$0xff]
                  %295 = vst [vmem:[%s277 + $0x40] sm:$0xff] %v294
                  %v296 = vld [vmem:[%s276 + $0x88] sm:$0xff]
                  %297 = vst [vmem:[%s277 + $0x48] sm:$0xff] %v296
                  %v298 = vld [vmem:[%s276 + $0x90] sm:$0xff]
                  %299 = vst [vmem:[%s277 + $0x50] sm:$0xff] %v298
                  %v300 = vld [vmem:[%s276 + $0x98] sm:$0xff]
                  %301 = vst [vmem:[%s277 + $0x58] sm:$0xff] %v300
                  %v302 = vld [vmem:[%s276 + $0xc0] sm:$0xff]
                  %303 = vst [vmem:[%s277 + $0x60] sm:$0xff] %v302
                  %v304 = vld [vmem:[%s276 + $0xc8] sm:$0xff]
                  %305 = vst [vmem:[%s277 + $0x68] sm:$0xff] %v304
                  %v306 = vld [vmem:[%s276 + $0xd0] sm:$0xff]
                  %307 = vst [vmem:[%s277 + $0x70] sm:$0xff] %v306
                  %v308 = vld [vmem:[%s276 + $0xd8] sm:$0xff]
                  %309 = vst [vmem:[%s277 + $0x78] sm:$0xff] %v308
                  %v310 = vld [vmem:[%s276 + $0x100] sm:$0xff]
                  %311 = vst [vmem:[%s277 + $0x80] sm:$0xff] %v310
                  %v312 = vld [vmem:[%s276 + $0x108] sm:$0xff]
                  %313 = vst [vmem:[%s277 + $0x88] sm:$0xff] %v312
                  %v314 = vld [vmem:[%s276 + $0x110] sm:$0xff]
                  %315 = vst [vmem:[%s277 + $0x90] sm:$0xff] %v314
                  %v316 = vld [vmem:[%s276 + $0x118] sm:$0xff]
                  %317 = vst [vmem:[%s277 + $0x98] sm:$0xff] %v316
                  %v318 = vld [vmem:[%s276 + $0x140] sm:$0xff]
                  %319 = vst [vmem:[%s277 + $0xa0] sm:$0xff] %v318
                  %v320 = vld [vmem:[%s276 + $0x148] sm:$0xff]
                  %321 = vst [vmem:[%s277 + $0xa8] sm:$0xff] %v320
                  %v322 = vld [vmem:[%s276 + $0x150] sm:$0xff]
                  %323 = vst [vmem:[%s277 + $0xb0] sm:$0xff] %v322
                  %v324 = vld [vmem:[%s276 + $0x158] sm:$0xff]
                  %325 = vst [vmem:[%s277 + $0xb8] sm:$0xff] %v324
                  %v326 = vld [vmem:[%s276 + $0x180] sm:$0xff]
                  %327 = vst [vmem:[%s277 + $0xc0] sm:$0xff] %v326
                  %v328 = vld [vmem:[%s276 + $0x188] sm:$0xff]
                  %329 = vst [vmem:[%s277 + $0xc8] sm:$0xff] %v328
                  %v330 = vld [vmem:[%s276 + $0x190] sm:$0xff]
                  %331 = vst [vmem:[%s277 + $0xd0] sm:$0xff] %v330
                  %v332 = vld [vmem:[%s276 + $0x198] sm:$0xff]
                  %333 = vst [vmem:[%s277 + $0xd8] sm:$0xff] %v332
                  %v334 = vld [vmem:[%s276 + $0x1c0] sm:$0xff]
                  %335 = vst [vmem:[%s277 + $0xe0] sm:$0xff] %v334
                  %v336 = vld [vmem:[%s276 + $0x1c8] sm:$0xff]
                  %337 = vst [vmem:[%s277 + $0xe8] sm:$0xff] %v336
                  %v338 = vld [vmem:[%s276 + $0x1d0] sm:$0xff]
                  %339 = vst [vmem:[%s277 + $0xf0] sm:$0xff] %v338
                  %v340 = vld [vmem:[%s276 + $0x1d8] sm:$0xff]
                  %341 = vst [vmem:[%s277 + $0xf8] sm:$0xff] %v340
                $region64: #{critic_forward.1} parent=58 // loop_footer
                  %s275 = sadd.s32 1, %s271
                $region65: #{critic_forward.1} parent=58 // loop_footer_branch
                  %270 = sbr.rel target = $region61
                $region66: #{critic_forward.1} parent=58 // loop_exit
                  _
              $region59: #{critic_forward.1} parent=43 // pred_fallthru
                _
              // Predicated region
              $region67: #{critic_forward.1} parent=43 // pred_check
                _
              $region68: #{critic_forward.1} parent=43 // pred_check_branch
                %343 = sbr.rel target = $region70
              $region69: #{critic_forward.1} parent=43 // pred_region
                _
              $region70: #{critic_forward.1} parent=43 // pred_fallthru
                _
            $region44: #{critic_forward.1} parent=39 // pred_fallthru
              _
            // Predicated region
            $region45: #{critic_forward.1} parent=39 // pred_check
              _
            $region46: #{critic_forward.1} parent=39 // pred_check_branch
              %193 = sbr.rel target = $region48
            $region47: #{critic_forward.1} parent=39 // pred_region
              %s195 = ssub.s32 256, 1
              loop: start=0, step=1, limit=1
              $region49: #{critic_forward.1} parent=47 // loop_pre_header
                _
              $region50: #{critic_forward.1} parent=47 // loop_header
                %s197 = sphi 0, %s201
                %p198 = scmp.ge.s32.totalorder %s197, 1
                %s202 = sphi %s187, %s187
                %s203 = sphi %s184, %s184
              $region51: #{critic_forward.1} parent=47 // loop_header_branch
                %200 = sbr.rel (%p198) target = $region55
              $region52: #{critic_forward.1} parent=47 // loop_body
                %v204 = vld [vmem:[%s202] sm:%s195]
                %205 = vst [vmem:[%s203] sm:%s195] %v204
                %v206 = vld [vmem:[%s202 + $0x8] sm:%s195]
                %207 = vst [vmem:[%s203 + $0x8] sm:%s195] %v206
                %v208 = vld [vmem:[%s202 + $0x10] sm:%s195]
                %209 = vst [vmem:[%s203 + $0x10] sm:%s195] %v208
                %v210 = vld [vmem:[%s202 + $0x18] sm:%s195]
                %211 = vst [vmem:[%s203 + $0x18] sm:%s195] %v210
                %v212 = vld [vmem:[%s202 + $0x40] sm:%s195]
                %213 = vst [vmem:[%s203 + $0x20] sm:%s195] %v212
                %v214 = vld [vmem:[%s202 + $0x48] sm:%s195]
                %215 = vst [vmem:[%s203 + $0x28] sm:%s195] %v214
                %v216 = vld [vmem:[%s202 + $0x50] sm:%s195]
                %217 = vst [vmem:[%s203 + $0x30] sm:%s195] %v216
                %v218 = vld [vmem:[%s202 + $0x58] sm:%s195]
                %219 = vst [vmem:[%s203 + $0x38] sm:%s195] %v218
                %v220 = vld [vmem:[%s202 + $0x80] sm:%s195]
                %221 = vst [vmem:[%s203 + $0x40] sm:%s195] %v220
                %v222 = vld [vmem:[%s202 + $0x88] sm:%s195]
                %223 = vst [vmem:[%s203 + $0x48] sm:%s195] %v222
                %v224 = vld [vmem:[%s202 + $0x90] sm:%s195]
                %225 = vst [vmem:[%s203 + $0x50] sm:%s195] %v224
                %v226 = vld [vmem:[%s202 + $0x98] sm:%s195]
                %227 = vst [vmem:[%s203 + $0x58] sm:%s195] %v226
                %v228 = vld [vmem:[%s202 + $0xc0] sm:%s195]
                %229 = vst [vmem:[%s203 + $0x60] sm:%s195] %v228
                %v230 = vld [vmem:[%s202 + $0xc8] sm:%s195]
                %231 = vst [vmem:[%s203 + $0x68] sm:%s195] %v230
                %v232 = vld [vmem:[%s202 + $0xd0] sm:%s195]
                %233 = vst [vmem:[%s203 + $0x70] sm:%s195] %v232
                %v234 = vld [vmem:[%s202 + $0xd8] sm:%s195]
                %235 = vst [vmem:[%s203 + $0x78] sm:%s195] %v234
                %v236 = vld [vmem:[%s202 + $0x100] sm:%s195]
                %237 = vst [vmem:[%s203 + $0x80] sm:%s195] %v236
                %v238 = vld [vmem:[%s202 + $0x108] sm:%s195]
                %239 = vst [vmem:[%s203 + $0x88] sm:%s195] %v238
                %v240 = vld [vmem:[%s202 + $0x110] sm:%s195]
                %241 = vst [vmem:[%s203 + $0x90] sm:%s195] %v240
                %v242 = vld [vmem:[%s202 + $0x118] sm:%s195]
                %243 = vst [vmem:[%s203 + $0x98] sm:%s195] %v242
                %v244 = vld [vmem:[%s202 + $0x140] sm:%s195]
                %245 = vst [vmem:[%s203 + $0xa0] sm:%s195] %v244
                %v246 = vld [vmem:[%s202 + $0x148] sm:%s195]
                %247 = vst [vmem:[%s203 + $0xa8] sm:%s195] %v246
                %v248 = vld [vmem:[%s202 + $0x150] sm:%s195]
                %249 = vst [vmem:[%s203 + $0xb0] sm:%s195] %v248
                %v250 = vld [vmem:[%s202 + $0x158] sm:%s195]
                %251 = vst [vmem:[%s203 + $0xb8] sm:%s195] %v250
                %v252 = vld [vmem:[%s202 + $0x180] sm:%s195]
                %253 = vst [vmem:[%s203 + $0xc0] sm:%s195] %v252
                %v254 = vld [vmem:[%s202 + $0x188] sm:%s195]
                %255 = vst [vmem:[%s203 + $0xc8] sm:%s195] %v254
                %v256 = vld [vmem:[%s202 + $0x190] sm:%s195]
                %257 = vst [vmem:[%s203 + $0xd0] sm:%s195] %v256
                %v258 = vld [vmem:[%s202 + $0x198] sm:%s195]
                %259 = vst [vmem:[%s203 + $0xd8] sm:%s195] %v258
                %v260 = vld [vmem:[%s202 + $0x1c0] sm:%s195]
                %261 = vst [vmem:[%s203 + $0xe0] sm:%s195] %v260
                %v262 = vld [vmem:[%s202 + $0x1c8] sm:%s195]
                %263 = vst [vmem:[%s203 + $0xe8] sm:%s195] %v262
                %v264 = vld [vmem:[%s202 + $0x1d0] sm:%s195]
                %265 = vst [vmem:[%s203 + $0xf0] sm:%s195] %v264
                %v266 = vld [vmem:[%s202 + $0x1d8] sm:%s195]
                %267 = vst [vmem:[%s203 + $0xf8] sm:%s195] %v266
              $region53: #{critic_forward.1} parent=47 // loop_footer
                %s201 = sadd.s32 1, %s197
              $region54: #{critic_forward.1} parent=47 // loop_footer_branch
                %196 = sbr.rel target = $region50
              $region55: #{critic_forward.1} parent=47 // loop_exit
                _
            $region48: #{critic_forward.1} parent=39 // pred_fallthru
              _
          $region40: #{critic_forward.1} parent=35 // pred_fallthru
            _
          %344 = vnop
        $region36: #{critic_forward.1} parent=31 // pred_fallthru
          _
      $region32: #{critic_forward.1} parent=5 // pred_fallthru
        _
      %p345 = scmp.le.s32.totalorder 1, %s11
      %p346 = scmp.lt.s32.totalorder %s11, 3
      %p347 = pnand %p345, %p346
      %p348 = pneg %p347
      // Predicated region
      $region71: #{critic_forward.1} parent=5 // pred_check
        _
      $region72: #{critic_forward.1} parent=5 // pred_check_branch
        %350 = sbr.rel (%p347) target = $region74
      $region73: #{critic_forward.1} parent=5 // pred_region
        %s351 = ssub.s32 %s11, 1
        %s352 = sand.u32 %s24, 1
        %s353 = sand.u32 %s24, 1
        %s354 = smul.addr %s353, 256
        %s355 = scalar_lea.vmem [#allocation2], %s354
        // Predicated region
        $region75: #{critic_forward.1} parent=73 // pred_check
          %p356 = pneg %p37
        $region76: #{critic_forward.1} parent=73 // pred_check_branch
          %358 = sbr.rel (%p356) target = $region78
        $region77: #{critic_forward.1} parent=73 // pred_region
          _
        $region78: #{critic_forward.1} parent=73 // pred_fallthru
          _
        %s359 = sand.u32 %s24, 1
        %s360 = sand.u32 %s24, 1
        %s361 = smul.addr %s360, 256
        %s362 = scalar_lea.vmem [#allocation2], %s361
        %p363 = pneg %p37
        %p364 = pneg %p34
        %p365 = pneg %p58
        %p366 = pneg %p55
        %p367 = pneg %p79
        %p368 = pneg %p76
        %p369 = pneg %p100
        %p370 = pneg %p97
        %p371 = pneg %p121
        %p372 = pneg %p118
        %p373 = pneg %p147
        %p374 = pneg %p144
        %p375 = scmp.lt.s32.totalorder %s16, 1
        %s376 = scalar_select %p375, %s16, 1
        %s377 = scalar_lea.vmem %s5, %s376
        %s378 = smul.u32 4, %s16
        %p379 = scmp.lt.s32.totalorder %s16, 1
        %s380 = scalar_select %p379, %s16, 1
        %s381 = scalar_lea.vmem %s5, %s380
        %v383 = vld [vmem:[%s4] sm:$0xff]
        %v384 = vld [vmem:[%s4 + $0x8] sm:$0xf]
        %v385 = vld [vmem:[%s355] sm:$0xff]
        %v386 = vld [vmem:[%s355 + $0x8] sm:$0xff]
        %v387 = vld [vmem:[%s355 + $0x10] sm:$0xff]
        %v388 = vld [vmem:[%s355 + $0x18] sm:$0xff]
        %v389 = vld [vmem:[%s355 + $0x20] sm:$0xff]
        %v390 = vld [vmem:[%s355 + $0x28] sm:$0xff]
        %v391 = vld [vmem:[%s355 + $0x30] sm:$0xff]
        %v392 = vld [vmem:[%s355 + $0x38] sm:$0xff]
        %v393 = vld [vmem:[%s355 + $0x40] sm:$0xff]
        %v394 = vld [vmem:[%s355 + $0x48] sm:$0xff]
        %v395 = vld [vmem:[%s355 + $0x50] sm:$0xff]
        %v396 = vld [vmem:[%s355 + $0x58] sm:$0xff]
        %v397 = vld [vmem:[%s355 + $0x60] sm:$0xff]
        %v398 = vld [vmem:[%s355 + $0x68] sm:$0xff]
        %v399 = vld [vmem:[%s355 + $0x70] sm:$0xff]
        %v400 = vld [vmem:[%s355 + $0x78] sm:$0xff]
        %v401 = vld [vmem:[%s355 + $0x80] sm:$0xff]
        %v402 = vld [vmem:[%s355 + $0x88] sm:$0xff]
        %v403 = vld [vmem:[%s355 + $0x90] sm:$0xff]
        %v404 = vld [vmem:[%s355 + $0x98] sm:$0xff]
        %v405 = vld [vmem:[%s355 + $0xa0] sm:$0xff]
        %v406 = vld [vmem:[%s355 + $0xa8] sm:$0xff]
        %v407 = vld [vmem:[%s355 + $0xb0] sm:$0xff]
        %v408 = vld [vmem:[%s355 + $0xb8] sm:$0xff]
        %v409 = vld [vmem:[%s355 + $0xc0] sm:$0xff]
        %v410 = vld [vmem:[%s355 + $0xc8] sm:$0xff]
        %v411 = vld [vmem:[%s355 + $0xd0] sm:$0xff]
        %v412 = vld [vmem:[%s355 + $0xd8] sm:$0xff]
        %v413 = vld [vmem:[%s355 + $0xe0] sm:$0xff]
        %v414 = vld [vmem:[%s355 + $0xe8] sm:$0xff]
        %v415 = vld [vmem:[%s355 + $0xf0] sm:$0xff]
        %v416 = vld [vmem:[%s355 + $0xf8] sm:$0xff]
        %v417 = vpack.c.bf16 %v386, %v385
        %v418 = vpack.c.bf16 %v388, %v387
        %v419 = vpack.c.bf16 %v390, %v389
        %v420 = vpack.c.bf16 %v392, %v391
        %v421 = vpack.c.bf16 %v394, %v393
        %v422 = vpack.c.bf16 %v396, %v395
        %v423 = vpack.c.bf16 %v398, %v397
        %v424 = vpack.c.bf16 %v400, %v399
        %v425 = vpack.c.bf16 %v402, %v401
        %v426 = vpack.c.bf16 %v404, %v403
        %v427 = vpack.c.bf16 %v406, %v405
        %v428 = vpack.c.bf16 %v408, %v407
        %v429 = vpack.c.bf16 %v410, %v409
        %v430 = vpack.c.bf16 %v412, %v411
        %v431 = vpack.c.bf16 %v414, %v413
        %v432 = vpack.c.bf16 %v416, %v415
        %v433 = vld [vmem:[%s1] sm:$0xf]
        %v434 = vld [vmem:[%s1 + $0x4] sm:$0xf]
        %v435 = vld [vmem:[%s1 + $0x8] sm:$0xf]
        %v436 = vld [vmem:[%s1 + $0xc] sm:$0xf]
        %v437 = vld [vmem:[%s1 + $0x10] sm:$0xf]
        %v438 = vld [vmem:[%s1 + $0x14] sm:$0xf]
        %v439 = vld [vmem:[%s1 + $0x18] sm:$0xf]
        %v440 = vld [vmem:[%s1 + $0x1c] sm:$0xf]
        %v441 = vld [vmem:[%s1 + $0x20] sm:$0xf]
        %v442 = vld [vmem:[%s1 + $0x24] sm:$0xf]
        %v443 = vld [vmem:[%s1 + $0x28] sm:$0xf]
        %v444 = vld [vmem:[%s1 + $0x2c] sm:$0xf]
        %v445 = vld [vmem:[%s1 + $0x30] sm:$0xf]
        %v446 = vld [vmem:[%s1 + $0x34] sm:$0xf]
        %v447 = vld [vmem:[%s1 + $0x38] sm:$0xf]
        %v448 = vld [vmem:[%s1 + $0x3c] sm:$0xf]
        %v449 = vperm.slane %v383, 0
        %v466 = vunpack.c.l.b16 %v433
        %v467 = vunpack.c.l.b16 %v434
        %v468 = vunpack.c.l.b16 %v435
        %v469 = vunpack.c.l.b16 %v436
        %v470 = vunpack.c.l.b16 %v437
        %v471 = vunpack.c.l.b16 %v438
        %v472 = vunpack.c.l.b16 %v439
        %v473 = vunpack.c.l.b16 %v440
        %v474 = vunpack.c.l.b16 %v441
        %v475 = vunpack.c.l.b16 %v442
        %v476 = vunpack.c.l.b16 %v443
        %v477 = vunpack.c.l.b16 %v444
        %v478 = vunpack.c.l.b16 %v445
        %v479 = vunpack.c.l.b16 %v446
        %v480 = vunpack.c.l.b16 %v447
        %v481 = vunpack.c.l.b16 %v448
        %v482 = vpack.c.b16 %v467, %v466
        %v483 = vpack.c.b16 %v469, %v468
        %v484 = vpack.c.b16 %v471, %v470
        %v485 = vpack.c.b16 %v473, %v472
        %v486 = vpack.c.b16 %v475, %v474
        %v487 = vpack.c.b16 %v477, %v476
        %v488 = vpack.c.b16 %v479, %v478
        %v489 = vpack.c.b16 %v481, %v480
        %498 = vmatpush.bf16.msra.mxu0 %v489
        %499 = vmatpush.bf16.msra.mxu0 %v488
        %500 = vmatpush.bf16.msra.mxu0 %v487
        %501 = vmatpush.bf16.msra.mxu0 %v486
        %502 = vmatpush.bf16.msra.mxu0 %v485
        %503 = vmatpush.bf16.msra.mxu0 %v484
        %504 = vmatpush.bf16.msra.mxu0 %v483
        %505 = vmatpush.bf16.msra.mxu0 %v482
        %506 = vmatmul.bf16.gmra.mxu0 %v417
        %v507 = vpop.f32.mrf.mxu0
        %v508 = vadd.f32 %v449, %v507
        %v509 = vpop.f32.mrf.mxu0
        %v510 = vadd.f32 %v449, %v509
        %511 = vmatmul.bf16.gmra.mxu0 %v418
        %v512 = vpop.f32.mrf.mxu0
        %v513 = vadd.f32 %v449, %v512
        %v514 = vpop.f32.mrf.mxu0
        %v515 = vadd.f32 %v449, %v514
        %516 = vmatmul.bf16.gmra.mxu0 %v419
        %v517 = vpop.f32.mrf.mxu0
        %v518 = vadd.f32 %v449, %v517
        %v519 = vpop.f32.mrf.mxu0
        %v520 = vadd.f32 %v449, %v519
        %521 = vmatmul.bf16.gmra.mxu0 %v420
        %v522 = vpop.f32.mrf.mxu0
        %v523 = vadd.f32 %v449, %v522
        %v524 = vpop.f32.mrf.mxu0
        %v525 = vadd.f32 %v449, %v524
        %526 = vmatmul.bf16.gmra.mxu0 %v421
        %v527 = vpop.f32.mrf.mxu0
        %v528 = vadd.f32 %v449, %v527
        %v529 = vpop.f32.mrf.mxu0
        %v530 = vadd.f32 %v449, %v529
        %531 = vmatmul.bf16.gmra.mxu0 %v422
        %v532 = vpop.f32.mrf.mxu0
        %v533 = vadd.f32 %v449, %v532
        %v534 = vpop.f32.mrf.mxu0
        %v535 = vadd.f32 %v449, %v534
        %536 = vmatmul.bf16.gmra.mxu0 %v423
        %v537 = vpop.f32.mrf.mxu0
        %v538 = vadd.f32 %v449, %v537
        %v539 = vpop.f32.mrf.mxu0
        %v540 = vadd.f32 %v449, %v539
        %541 = vmatmul.bf16.gmra.mxu0 %v424
        %v542 = vpop.f32.mrf.mxu0
        %v543 = vadd.f32 %v449, %v542
        %v544 = vpop.f32.mrf.mxu0
        %v545 = vadd.f32 %v449, %v544
        %546 = vmatmul.bf16.gmra.mxu0 %v425
        %v547 = vpop.f32.mrf.mxu0
        %v548 = vadd.f32 %v449, %v547
        %v549 = vpop.f32.mrf.mxu0
        %v550 = vadd.f32 %v449, %v549
        %551 = vmatmul.bf16.gmra.mxu0 %v426
        %v552 = vpop.f32.mrf.mxu0
        %v553 = vadd.f32 %v449, %v552
        %v554 = vpop.f32.mrf.mxu0
        %v555 = vadd.f32 %v449, %v554
        %556 = vmatmul.bf16.gmra.mxu0 %v427
        %v557 = vpop.f32.mrf.mxu0
        %v558 = vadd.f32 %v449, %v557
        %v559 = vpop.f32.mrf.mxu0
        %v560 = vadd.f32 %v449, %v559
        %561 = vmatmul.bf16.gmra.mxu0 %v428
        %v562 = vpop.f32.mrf.mxu0
        %v563 = vadd.f32 %v449, %v562
        %v564 = vpop.f32.mrf.mxu0
        %v565 = vadd.f32 %v449, %v564
        %566 = vmatmul.bf16.gmra.mxu0 %v429
        %v567 = vpop.f32.mrf.mxu0
        %v568 = vadd.f32 %v449, %v567
        %v569 = vpop.f32.mrf.mxu0
        %v570 = vadd.f32 %v449, %v569
        %571 = vmatmul.bf16.gmra.mxu0 %v430
        %v572 = vpop.f32.mrf.mxu0
        %v573 = vadd.f32 %v449, %v572
        %v574 = vpop.f32.mrf.mxu0
        %v575 = vadd.f32 %v449, %v574
        %576 = vmatmul.bf16.gmra.mxu0 %v431
        %v577 = vpop.f32.mrf.mxu0
        %v578 = vadd.f32 %v449, %v577
        %v579 = vpop.f32.mrf.mxu0
        %v580 = vadd.f32 %v449, %v579
        %581 = vmatmul.bf16.gmra.mxu0 %v432
        %v582 = vpop.f32.mrf.mxu0
        %v583 = vadd.f32 %v449, %v582
        %v584 = vpop.f32.mrf.mxu0
        %v585 = vadd.f32 %v449, %v584
        %586 = vdwg.mxu0
        %v587 = vpack.c.bf16 %v510, %v508
        %v588 = vpack.c.bf16 %v515, %v513
        %v589 = vpack.c.bf16 %v520, %v518
        %v590 = vpack.c.bf16 %v525, %v523
        %v591 = vpack.c.bf16 %v530, %v528
        %v592 = vpack.c.bf16 %v535, %v533
        %v593 = vpack.c.bf16 %v540, %v538
        %v594 = vpack.c.bf16 %v545, %v543
        %v595 = vpack.c.bf16 %v550, %v548
        %v596 = vpack.c.bf16 %v555, %v553
        %v597 = vpack.c.bf16 %v560, %v558
        %v598 = vpack.c.bf16 %v565, %v563
        %v599 = vpack.c.bf16 %v570, %v568
        %v600 = vpack.c.bf16 %v575, %v573
        %v601 = vpack.c.bf16 %v580, %v578
        %v602 = vpack.c.bf16 %v585, %v583
        %v603 = vld [vmem:[%s2] sm:$0xf]
        %v604 = vld [vmem:[%s2 + $0x4] sm:$0xf]
        %v605 = vld [vmem:[%s2 + $0x8] sm:$0xf]
        %v606 = vld [vmem:[%s2 + $0xc] sm:$0xf]
        %v607 = vld [vmem:[%s2 + $0x10] sm:$0xf]
        %v608 = vld [vmem:[%s2 + $0x14] sm:$0xf]
        %v609 = vld [vmem:[%s2 + $0x18] sm:$0xf]
        %v610 = vld [vmem:[%s2 + $0x1c] sm:$0xf]
        %v611 = vld [vmem:[%s2 + $0x20] sm:$0xf]
        %v612 = vld [vmem:[%s2 + $0x24] sm:$0xf]
        %v613 = vld [vmem:[%s2 + $0x28] sm:$0xf]
        %v614 = vld [vmem:[%s2 + $0x2c] sm:$0xf]
        %v615 = vld [vmem:[%s2 + $0x30] sm:$0xf]
        %v616 = vld [vmem:[%s2 + $0x34] sm:$0xf]
        %v617 = vld [vmem:[%s2 + $0x38] sm:$0xf]
        %v618 = vld [vmem:[%s2 + $0x3c] sm:$0xf]
        %v619 = vperm.slane %v383, 1
        %v636 = vunpack.c.l.b16 %v603
        %v637 = vunpack.c.l.b16 %v604
        %v638 = vunpack.c.l.b16 %v605
        %v639 = vunpack.c.l.b16 %v606
        %v640 = vunpack.c.l.b16 %v607
        %v641 = vunpack.c.l.b16 %v608
        %v642 = vunpack.c.l.b16 %v609
        %v643 = vunpack.c.l.b16 %v610
        %v644 = vunpack.c.l.b16 %v611
        %v645 = vunpack.c.l.b16 %v612
        %v646 = vunpack.c.l.b16 %v613
        %v647 = vunpack.c.l.b16 %v614
        %v648 = vunpack.c.l.b16 %v615
        %v649 = vunpack.c.l.b16 %v616
        %v650 = vunpack.c.l.b16 %v617
        %v651 = vunpack.c.l.b16 %v618
        %v652 = vpack.c.b16 %v637, %v636
        %v653 = vpack.c.b16 %v639, %v638
        %v654 = vpack.c.b16 %v641, %v640
        %v655 = vpack.c.b16 %v643, %v642
        %v656 = vpack.c.b16 %v645, %v644
        %v657 = vpack.c.b16 %v647, %v646
        %v658 = vpack.c.b16 %v649, %v648
        %v659 = vpack.c.b16 %v651, %v650
        %668 = vmatpush.bf16.msra.mxu0 %v659
        %669 = vmatpush.bf16.msra.mxu0 %v658
        %670 = vmatpush.bf16.msra.mxu0 %v657
        %671 = vmatpush.bf16.msra.mxu0 %v656
        %672 = vmatpush.bf16.msra.mxu0 %v655
        %673 = vmatpush.bf16.msra.mxu0 %v654
        %674 = vmatpush.bf16.msra.mxu0 %v653
        %675 = vmatpush.bf16.msra.mxu0 %v652
        %676 = vmatmul.bf16.gmra.mxu0 %v587
        %v677 = vpop.f32.mrf.mxu0
        %v678 = vadd.f32 %v619, %v677
        %v679 = vpop.f32.mrf.mxu0
        %v680 = vadd.f32 %v619, %v679
        %681 = vmatmul.bf16.gmra.mxu0 %v588
        %v682 = vpop.f32.mrf.mxu0
        %v683 = vadd.f32 %v619, %v682
        %v684 = vpop.f32.mrf.mxu0
        %v685 = vadd.f32 %v619, %v684
        %686 = vmatmul.bf16.gmra.mxu0 %v589
        %v687 = vpop.f32.mrf.mxu0
        %v688 = vadd.f32 %v619, %v687
        %v689 = vpop.f32.mrf.mxu0
        %v690 = vadd.f32 %v619, %v689
        %691 = vmatmul.bf16.gmra.mxu0 %v590
        %v692 = vpop.f32.mrf.mxu0
        %v693 = vadd.f32 %v619, %v692
        %v694 = vpop.f32.mrf.mxu0
        %v695 = vadd.f32 %v619, %v694
        %696 = vmatmul.bf16.gmra.mxu0 %v591
        %v697 = vpop.f32.mrf.mxu0
        %v698 = vadd.f32 %v619, %v697
        %v699 = vpop.f32.mrf.mxu0
        %v700 = vadd.f32 %v619, %v699
        %701 = vmatmul.bf16.gmra.mxu0 %v592
        %v702 = vpop.f32.mrf.mxu0
        %v703 = vadd.f32 %v619, %v702
        %v704 = vpop.f32.mrf.mxu0
        %v705 = vadd.f32 %v619, %v704
        %706 = vmatmul.bf16.gmra.mxu0 %v593
        %v707 = vpop.f32.mrf.mxu0
        %v708 = vadd.f32 %v619, %v707
        %v709 = vpop.f32.mrf.mxu0
        %v710 = vadd.f32 %v619, %v709
        %711 = vmatmul.bf16.gmra.mxu0 %v594
        %v712 = vpop.f32.mrf.mxu0
        %v713 = vadd.f32 %v619, %v712
        %v714 = vpop.f32.mrf.mxu0
        %v715 = vadd.f32 %v619, %v714
        %716 = vmatmul.bf16.gmra.mxu0 %v595
        %v717 = vpop.f32.mrf.mxu0
        %v718 = vadd.f32 %v619, %v717
        %v719 = vpop.f32.mrf.mxu0
        %v720 = vadd.f32 %v619, %v719
        %721 = vmatmul.bf16.gmra.mxu0 %v596
        %v722 = vpop.f32.mrf.mxu0
        %v723 = vadd.f32 %v619, %v722
        %v724 = vpop.f32.mrf.mxu0
        %v725 = vadd.f32 %v619, %v724
        %726 = vmatmul.bf16.gmra.mxu0 %v597
        %v727 = vpop.f32.mrf.mxu0
        %v728 = vadd.f32 %v619, %v727
        %v729 = vpop.f32.mrf.mxu0
        %v730 = vadd.f32 %v619, %v729
        %731 = vmatmul.bf16.gmra.mxu0 %v598
        %v732 = vpop.f32.mrf.mxu0
        %v733 = vadd.f32 %v619, %v732
        %v734 = vpop.f32.mrf.mxu0
        %v735 = vadd.f32 %v619, %v734
        %736 = vmatmul.bf16.gmra.mxu0 %v599
        %v737 = vpop.f32.mrf.mxu0
        %v738 = vadd.f32 %v619, %v737
        %v739 = vpop.f32.mrf.mxu0
        %v740 = vadd.f32 %v619, %v739
        %741 = vmatmul.bf16.gmra.mxu0 %v600
        %v742 = vpop.f32.mrf.mxu0
        %v743 = vadd.f32 %v619, %v742
        %v744 = vpop.f32.mrf.mxu0
        %v745 = vadd.f32 %v619, %v744
        %746 = vmatmul.bf16.gmra.mxu0 %v601
        %v747 = vpop.f32.mrf.mxu0
        %v748 = vadd.f32 %v619, %v747
        %v749 = vpop.f32.mrf.mxu0
        %v750 = vadd.f32 %v619, %v749
        %751 = vmatmul.bf16.gmra.mxu0 %v602
        %v752 = vpop.f32.mrf.mxu0
        %v753 = vadd.f32 %v619, %v752
        %v754 = vpop.f32.mrf.mxu0
        %v755 = vadd.f32 %v619, %v754
        %756 = vdwg.mxu0
        %v757 = vmul.f32 %v678, 0.5
        %v758 = vmul.f32 %v680, 0.5
        %v759 = vmul.f32 %v683, 0.5
        %v760 = vmul.f32 %v685, 0.5
        %v761 = vmul.f32 %v688, 0.5
        %v762 = vmul.f32 %v690, 0.5
        %v763 = vmul.f32 %v693, 0.5
        %v764 = vmul.f32 %v695, 0.5
        %v765 = vmul.f32 %v698, 0.5
        %v766 = vmul.f32 %v700, 0.5
        %v767 = vmul.f32 %v703, 0.5
        %v768 = vmul.f32 %v705, 0.5
        %v769 = vmul.f32 %v708, 0.5
        %v770 = vmul.f32 %v710, 0.5
        %v771 = vmul.f32 %v713, 0.5
        %v772 = vmul.f32 %v715, 0.5
        %v773 = vmul.f32 %v718, 0.5
        %v774 = vmul.f32 %v720, 0.5
        %v775 = vmul.f32 %v723, 0.5
        %v776 = vmul.f32 %v725, 0.5
        %v777 = vmul.f32 %v728, 0.5
        %v778 = vmul.f32 %v730, 0.5
        %v779 = vmul.f32 %v733, 0.5
        %v780 = vmul.f32 %v735, 0.5
        %v781 = vmul.f32 %v738, 0.5
        %v782 = vmul.f32 %v740, 0.5
        %v783 = vmul.f32 %v743, 0.5
        %v784 = vmul.f32 %v745, 0.5
        %v785 = vmul.f32 %v748, 0.5
        %v786 = vmul.f32 %v750, 0.5
        %v787 = vmul.f32 %v753, 0.5
        %v788 = vmul.f32 %v755, 0.5
        %v789 = vmul.f32 %v678, 0.044715
        %v790 = vmul.f32 %v680, 0.044715
        %v791 = vmul.f32 %v683, 0.044715
        %v792 = vmul.f32 %v685, 0.044715
        %v793 = vmul.f32 %v688, 0.044715
        %v794 = vmul.f32 %v690, 0.044715
        %v795 = vmul.f32 %v693, 0.044715
        %v796 = vmul.f32 %v695, 0.044715
        %v797 = vmul.f32 %v698, 0.044715
        %v798 = vmul.f32 %v700, 0.044715
        %v799 = vmul.f32 %v703, 0.044715
        %v800 = vmul.f32 %v705, 0.044715
        %v801 = vmul.f32 %v708, 0.044715
        %v802 = vmul.f32 %v710, 0.044715
        %v803 = vmul.f32 %v713, 0.044715
        %v804 = vmul.f32 %v715, 0.044715
        %v805 = vmul.f32 %v718, 0.044715
        %v806 = vmul.f32 %v720, 0.044715
        %v807 = vmul.f32 %v723, 0.044715
        %v808 = vmul.f32 %v725, 0.044715
        %v809 = vmul.f32 %v728, 0.044715
        %v810 = vmul.f32 %v730, 0.044715
        %v811 = vmul.f32 %v733, 0.044715
        %v812 = vmul.f32 %v735, 0.044715
        %v813 = vmul.f32 %v738, 0.044715
        %v814 = vmul.f32 %v740, 0.044715
        %v815 = vmul.f32 %v743, 0.044715
        %v816 = vmul.f32 %v745, 0.044715
        %v817 = vmul.f32 %v748, 0.044715
        %v818 = vmul.f32 %v750, 0.044715
        %v819 = vmul.f32 %v753, 0.044715
        %v820 = vmul.f32 %v755, 0.044715
        %v821 = vmul.f32 %v789, %v678
        %v822 = vmul.f32 %v790, %v680
        %v823 = vmul.f32 %v791, %v683
        %v824 = vmul.f32 %v792, %v685
        %v825 = vmul.f32 %v793, %v688
        %v826 = vmul.f32 %v794, %v690
        %v827 = vmul.f32 %v795, %v693
        %v828 = vmul.f32 %v796, %v695
        %v829 = vmul.f32 %v797, %v698
        %v830 = vmul.f32 %v798, %v700
        %v831 = vmul.f32 %v799, %v703
        %v832 = vmul.f32 %v800, %v705
        %v833 = vmul.f32 %v801, %v708
        %v834 = vmul.f32 %v802, %v710
        %v835 = vmul.f32 %v803, %v713
        %v836 = vmul.f32 %v804, %v715
        %v837 = vmul.f32 %v805, %v718
        %v838 = vmul.f32 %v806, %v720
        %v839 = vmul.f32 %v807, %v723
        %v840 = vmul.f32 %v808, %v725
        %v841 = vmul.f32 %v809, %v728
        %v842 = vmul.f32 %v810, %v730
        %v843 = vmul.f32 %v811, %v733
        %v844 = vmul.f32 %v812, %v735
        %v845 = vmul.f32 %v813, %v738
        %v846 = vmul.f32 %v814, %v740
        %v847 = vmul.f32 %v815, %v743
        %v848 = vmul.f32 %v816, %v745
        %v849 = vmul.f32 %v817, %v748
        %v850 = vmul.f32 %v818, %v750
        %v851 = vmul.f32 %v819, %v753
        %v852 = vmul.f32 %v820, %v755
        %v853 = vmul.f32 %v821, %v678
        %v854 = vmul.f32 %v822, %v680
        %v855 = vmul.f32 %v823, %v683
        %v856 = vmul.f32 %v824, %v685
        %v857 = vmul.f32 %v825, %v688
        %v858 = vmul.f32 %v826, %v690
        %v859 = vmul.f32 %v827, %v693
        %v860 = vmul.f32 %v828, %v695
        %v861 = vmul.f32 %v829, %v698
        %v862 = vmul.f32 %v830, %v700
        %v863 = vmul.f32 %v831, %v703
        %v864 = vmul.f32 %v832, %v705
        %v865 = vmul.f32 %v833, %v708
        %v866 = vmul.f32 %v834, %v710
        %v867 = vmul.f32 %v835, %v713
        %v868 = vmul.f32 %v836, %v715
        %v869 = vmul.f32 %v837, %v718
        %v870 = vmul.f32 %v838, %v720
        %v871 = vmul.f32 %v839, %v723
        %v872 = vmul.f32 %v840, %v725
        %v873 = vmul.f32 %v841, %v728
        %v874 = vmul.f32 %v842, %v730
        %v875 = vmul.f32 %v843, %v733
        %v876 = vmul.f32 %v844, %v735
        %v877 = vmul.f32 %v845, %v738
        %v878 = vmul.f32 %v846, %v740
        %v879 = vmul.f32 %v847, %v743
        %v880 = vmul.f32 %v848, %v745
        %v881 = vmul.f32 %v849, %v748
        %v882 = vmul.f32 %v850, %v750
        %v883 = vmul.f32 %v851, %v753
        %v884 = vmul.f32 %v852, %v755
        %v885 = vadd.f32 %v678, %v853
        %v886 = vadd.f32 %v680, %v854
        %v887 = vadd.f32 %v683, %v855
        %v888 = vadd.f32 %v685, %v856
        %v889 = vadd.f32 %v688, %v857
        %v890 = vadd.f32 %v690, %v858
        %v891 = vadd.f32 %v693, %v859
        %v892 = vadd.f32 %v695, %v860
        %v893 = vadd.f32 %v698, %v861
        %v894 = vadd.f32 %v700, %v862
        %v895 = vadd.f32 %v703, %v863
        %v896 = vadd.f32 %v705, %v864
        %v897 = vadd.f32 %v708, %v865
        %v898 = vadd.f32 %v710, %v866
        %v899 = vadd.f32 %v713, %v867
        %v900 = vadd.f32 %v715, %v868
        %v901 = vadd.f32 %v718, %v869
        %v902 = vadd.f32 %v720, %v870
        %v903 = vadd.f32 %v723, %v871
        %v904 = vadd.f32 %v725, %v872
        %v905 = vadd.f32 %v728, %v873
        %v906 = vadd.f32 %v730, %v874
        %v907 = vadd.f32 %v733, %v875
        %v908 = vadd.f32 %v735, %v876
        %v909 = vadd.f32 %v738, %v877
        %v910 = vadd.f32 %v740, %v878
        %v911 = vadd.f32 %v743, %v879
        %v912 = vadd.f32 %v745, %v880
        %v913 = vadd.f32 %v748, %v881
        %v914 = vadd.f32 %v750, %v882
        %v915 = vadd.f32 %v753, %v883
        %v916 = vadd.f32 %v755, %v884
        %v917 = vmul.f32 %v885, 0.7978846
        %v918 = vmul.f32 %v886, 0.7978846
        %v919 = vmul.f32 %v887, 0.7978846
        %v920 = vmul.f32 %v888, 0.7978846
        %v921 = vmul.f32 %v889, 0.7978846
        %v922 = vmul.f32 %v890, 0.7978846
        %v923 = vmul.f32 %v891, 0.7978846
        %v924 = vmul.f32 %v892, 0.7978846
        %v925 = vmul.f32 %v893, 0.7978846
        %v926 = vmul.f32 %v894, 0.7978846
        %v927 = vmul.f32 %v895, 0.7978846
        %v928 = vmul.f32 %v896, 0.7978846
        %v929 = vmul.f32 %v897, 0.7978846
        %v930 = vmul.f32 %v898, 0.7978846
        %v931 = vmul.f32 %v899, 0.7978846
        %v932 = vmul.f32 %v900, 0.7978846
        %v933 = vmul.f32 %v901, 0.7978846
        %v934 = vmul.f32 %v902, 0.7978846
        %v935 = vmul.f32 %v903, 0.7978846
        %v936 = vmul.f32 %v904, 0.7978846
        %v937 = vmul.f32 %v905, 0.7978846
        %v938 = vmul.f32 %v906, 0.7978846
        %v939 = vmul.f32 %v907, 0.7978846
        %v940 = vmul.f32 %v908, 0.7978846
        %v941 = vmul.f32 %v909, 0.7978846
        %v942 = vmul.f32 %v910, 0.7978846
        %v943 = vmul.f32 %v911, 0.7978846
        %v944 = vmul.f32 %v912, 0.7978846
        %v945 = vmul.f32 %v913, 0.7978846
        %v946 = vmul.f32 %v914, 0.7978846
        %v947 = vmul.f32 %v915, 0.7978846
        %v948 = vmul.f32 %v916, 0.7978846
        %v949 = vtanh.pop %v917
        %v950 = vtanh.pop %v918
        %v951 = vtanh.pop %v919
        %v952 = vtanh.pop %v920
        %v953 = vtanh.pop %v921
        %v954 = vtanh.pop %v922
        %v955 = vtanh.pop %v923
        %v956 = vtanh.pop %v924
        %v957 = vtanh.pop %v925
        %v958 = vtanh.pop %v926
        %v959 = vtanh.pop %v927
        %v960 = vtanh.pop %v928
        %v961 = vtanh.pop %v929
        %v962 = vtanh.pop %v930
        %v963 = vtanh.pop %v931
        %v964 = vtanh.pop %v932
        %v965 = vtanh.pop %v933
        %v966 = vtanh.pop %v934
        %v967 = vtanh.pop %v935
        %v968 = vtanh.pop %v936
        %v969 = vtanh.pop %v937
        %v970 = vtanh.pop %v938
        %v971 = vtanh.pop %v939
        %v972 = vtanh.pop %v940
        %v973 = vtanh.pop %v941
        %v974 = vtanh.pop %v942
        %v975 = vtanh.pop %v943
        %v976 = vtanh.pop %v944
        %v977 = vtanh.pop %v945
        %v978 = vtanh.pop %v946
        %v979 = vtanh.pop %v947
        %v980 = vtanh.pop %v948
        %v981 = vadd.f32 %v949, 1.0
        %v982 = vadd.f32 %v950, 1.0
        %v983 = vadd.f32 %v951, 1.0
        %v984 = vadd.f32 %v952, 1.0
        %v985 = vadd.f32 %v953, 1.0
        %v986 = vadd.f32 %v954, 1.0
        %v987 = vadd.f32 %v955, 1.0
        %v988 = vadd.f32 %v956, 1.0
        %v989 = vadd.f32 %v957, 1.0
        %v990 = vadd.f32 %v958, 1.0
        %v991 = vadd.f32 %v959, 1.0
        %v992 = vadd.f32 %v960, 1.0
        %v993 = vadd.f32 %v961, 1.0
        %v994 = vadd.f32 %v962, 1.0
        %v995 = vadd.f32 %v963, 1.0
        %v996 = vadd.f32 %v964, 1.0
        %v997 = vadd.f32 %v965, 1.0
        %v998 = vadd.f32 %v966, 1.0
        %v999 = vadd.f32 %v967, 1.0
        %v1000 = vadd.f32 %v968, 1.0
        %v1001 = vadd.f32 %v969, 1.0
        %v1002 = vadd.f32 %v970, 1.0
        %v1003 = vadd.f32 %v971, 1.0
        %v1004 = vadd.f32 %v972, 1.0
        %v1005 = vadd.f32 %v973, 1.0
        %v1006 = vadd.f32 %v974, 1.0
        %v1007 = vadd.f32 %v975, 1.0
        %v1008 = vadd.f32 %v976, 1.0
        %v1009 = vadd.f32 %v977, 1.0
        %v1010 = vadd.f32 %v978, 1.0
        %v1011 = vadd.f32 %v979, 1.0
        %v1012 = vadd.f32 %v980, 1.0
        %v1013 = vmul.f32 %v757, %v981
        %v1014 = vmul.f32 %v758, %v982
        %v1015 = vmul.f32 %v759, %v983
        %v1016 = vmul.f32 %v760, %v984
        %v1017 = vmul.f32 %v761, %v985
        %v1018 = vmul.f32 %v762, %v986
        %v1019 = vmul.f32 %v763, %v987
        %v1020 = vmul.f32 %v764, %v988
        %v1021 = vmul.f32 %v765, %v989
        %v1022 = vmul.f32 %v766, %v990
        %v1023 = vmul.f32 %v767, %v991
        %v1024 = vmul.f32 %v768, %v992
        %v1025 = vmul.f32 %v769, %v993
        %v1026 = vmul.f32 %v770, %v994
        %v1027 = vmul.f32 %v771, %v995
        %v1028 = vmul.f32 %v772, %v996
        %v1029 = vmul.f32 %v773, %v997
        %v1030 = vmul.f32 %v774, %v998
        %v1031 = vmul.f32 %v775, %v999
        %v1032 = vmul.f32 %v776, %v1000
        %v1033 = vmul.f32 %v777, %v1001
        %v1034 = vmul.f32 %v778, %v1002
        %v1035 = vmul.f32 %v779, %v1003
        %v1036 = vmul.f32 %v780, %v1004
        %v1037 = vmul.f32 %v781, %v1005
        %v1038 = vmul.f32 %v782, %v1006
        %v1039 = vmul.f32 %v783, %v1007
        %v1040 = vmul.f32 %v784, %v1008
        %v1041 = vmul.f32 %v785, %v1009
        %v1042 = vmul.f32 %v786, %v1010
        %v1043 = vmul.f32 %v787, %v1011
        %v1044 = vmul.f32 %v788, %v1012
        %v1045 = vpack.c.bf16 %v1014, %v1013
        %v1046 = vpack.c.bf16 %v1016, %v1015
        %v1047 = vpack.c.bf16 %v1018, %v1017
        %v1048 = vpack.c.bf16 %v1020, %v1019
        %v1049 = vpack.c.bf16 %v1022, %v1021
        %v1050 = vpack.c.bf16 %v1024, %v1023
        %v1051 = vpack.c.bf16 %v1026, %v1025
        %v1052 = vpack.c.bf16 %v1028, %v1027
        %v1053 = vpack.c.bf16 %v1030, %v1029
        %v1054 = vpack.c.bf16 %v1032, %v1031
        %v1055 = vpack.c.bf16 %v1034, %v1033
        %v1056 = vpack.c.bf16 %v1036, %v1035
        %v1057 = vpack.c.bf16 %v1038, %v1037
        %v1058 = vpack.c.bf16 %v1040, %v1039
        %v1059 = vpack.c.bf16 %v1042, %v1041
        %v1060 = vpack.c.bf16 %v1044, %v1043
        %s1061 = scalar_lea.vmem %s2, 64
        %v1062 = vld [vmem:[%s1061] sm:$0xf]
        %v1063 = vld [vmem:[%s1061 + $0x4] sm:$0xf]
        %v1064 = vld [vmem:[%s1061 + $0x8] sm:$0xf]
        %v1065 = vld [vmem:[%s1061 + $0xc] sm:$0xf]
        %v1066 = vld [vmem:[%s1061 + $0x10] sm:$0xf]
        %v1067 = vld [vmem:[%s1061 + $0x14] sm:$0xf]
        %v1068 = vld [vmem:[%s1061 + $0x18] sm:$0xf]
        %v1069 = vld [vmem:[%s1061 + $0x1c] sm:$0xf]
        %v1070 = vld [vmem:[%s1061 + $0x20] sm:$0xf]
        %v1071 = vld [vmem:[%s1061 + $0x24] sm:$0xf]
        %v1072 = vld [vmem:[%s1061 + $0x28] sm:$0xf]
        %v1073 = vld [vmem:[%s1061 + $0x2c] sm:$0xf]
        %v1074 = vld [vmem:[%s1061 + $0x30] sm:$0xf]
        %v1075 = vld [vmem:[%s1061 + $0x34] sm:$0xf]
        %v1076 = vld [vmem:[%s1061 + $0x38] sm:$0xf]
        %v1077 = vld [vmem:[%s1061 + $0x3c] sm:$0xf]
        %v1078 = vperm.slane %v383, 2
        %v1095 = vunpack.c.l.b16 %v1062
        %v1096 = vunpack.c.l.b16 %v1063
        %v1097 = vunpack.c.l.b16 %v1064
        %v1098 = vunpack.c.l.b16 %v1065
        %v1099 = vunpack.c.l.b16 %v1066
        %v1100 = vunpack.c.l.b16 %v1067
        %v1101 = vunpack.c.l.b16 %v1068
        %v1102 = vunpack.c.l.b16 %v1069
        %v1103 = vunpack.c.l.b16 %v1070
        %v1104 = vunpack.c.l.b16 %v1071
        %v1105 = vunpack.c.l.b16 %v1072
        %v1106 = vunpack.c.l.b16 %v1073
        %v1107 = vunpack.c.l.b16 %v1074
        %v1108 = vunpack.c.l.b16 %v1075
        %v1109 = vunpack.c.l.b16 %v1076
        %v1110 = vunpack.c.l.b16 %v1077
        %v1111 = vpack.c.b16 %v1096, %v1095
        %v1112 = vpack.c.b16 %v1098, %v1097
        %v1113 = vpack.c.b16 %v1100, %v1099
        %v1114 = vpack.c.b16 %v1102, %v1101
        %v1115 = vpack.c.b16 %v1104, %v1103
        %v1116 = vpack.c.b16 %v1106, %v1105
        %v1117 = vpack.c.b16 %v1108, %v1107
        %v1118 = vpack.c.b16 %v1110, %v1109
        %1127 = vmatpush.bf16.msra.mxu0 %v1118
        %1128 = vmatpush.bf16.msra.mxu0 %v1117
        %1129 = vmatpush.bf16.msra.mxu0 %v1116
        %1130 = vmatpush.bf16.msra.mxu0 %v1115
        %1131 = vmatpush.bf16.msra.mxu0 %v1114
        %1132 = vmatpush.bf16.msra.mxu0 %v1113
        %1133 = vmatpush.bf16.msra.mxu0 %v1112
        %1134 = vmatpush.bf16.msra.mxu0 %v1111
        %1135 = vmatmul.bf16.gmra.mxu0 %v1045
        %v1136 = vpop.f32.mrf.mxu0
        %v1137 = vadd.f32 %v1078, %v1136
        %v1138 = vpop.f32.mrf.mxu0
        %v1139 = vadd.f32 %v1078, %v1138
        %1140 = vmatmul.bf16.gmra.mxu0 %v1046
        %v1141 = vpop.f32.mrf.mxu0
        %v1142 = vadd.f32 %v1078, %v1141
        %v1143 = vpop.f32.mrf.mxu0
        %v1144 = vadd.f32 %v1078, %v1143
        %1145 = vmatmul.bf16.gmra.mxu0 %v1047
        %v1146 = vpop.f32.mrf.mxu0
        %v1147 = vadd.f32 %v1078, %v1146
        %v1148 = vpop.f32.mrf.mxu0
        %v1149 = vadd.f32 %v1078, %v1148
        %1150 = vmatmul.bf16.gmra.mxu0 %v1048
        %v1151 = vpop.f32.mrf.mxu0
        %v1152 = vadd.f32 %v1078, %v1151
        %v1153 = vpop.f32.mrf.mxu0
        %v1154 = vadd.f32 %v1078, %v1153
        %1155 = vmatmul.bf16.gmra.mxu0 %v1049
        %v1156 = vpop.f32.mrf.mxu0
        %v1157 = vadd.f32 %v1078, %v1156
        %v1158 = vpop.f32.mrf.mxu0
        %v1159 = vadd.f32 %v1078, %v1158
        %1160 = vmatmul.bf16.gmra.mxu0 %v1050
        %v1161 = vpop.f32.mrf.mxu0
        %v1162 = vadd.f32 %v1078, %v1161
        %v1163 = vpop.f32.mrf.mxu0
        %v1164 = vadd.f32 %v1078, %v1163
        %1165 = vmatmul.bf16.gmra.mxu0 %v1051
        %v1166 = vpop.f32.mrf.mxu0
        %v1167 = vadd.f32 %v1078, %v1166
        %v1168 = vpop.f32.mrf.mxu0
        %v1169 = vadd.f32 %v1078, %v1168
        %1170 = vmatmul.bf16.gmra.mxu0 %v1052
        %v1171 = vpop.f32.mrf.mxu0
        %v1172 = vadd.f32 %v1078, %v1171
        %v1173 = vpop.f32.mrf.mxu0
        %v1174 = vadd.f32 %v1078, %v1173
        %1175 = vmatmul.bf16.gmra.mxu0 %v1053
        %v1176 = vpop.f32.mrf.mxu0
        %v1177 = vadd.f32 %v1078, %v1176
        %v1178 = vpop.f32.mrf.mxu0
        %v1179 = vadd.f32 %v1078, %v1178
        %1180 = vmatmul.bf16.gmra.mxu0 %v1054
        %v1181 = vpop.f32.mrf.mxu0
        %v1182 = vadd.f32 %v1078, %v1181
        %v1183 = vpop.f32.mrf.mxu0
        %v1184 = vadd.f32 %v1078, %v1183
        %1185 = vmatmul.bf16.gmra.mxu0 %v1055
        %v1186 = vpop.f32.mrf.mxu0
        %v1187 = vadd.f32 %v1078, %v1186
        %v1188 = vpop.f32.mrf.mxu0
        %v1189 = vadd.f32 %v1078, %v1188
        %1190 = vmatmul.bf16.gmra.mxu0 %v1056
        %v1191 = vpop.f32.mrf.mxu0
        %v1192 = vadd.f32 %v1078, %v1191
        %v1193 = vpop.f32.mrf.mxu0
        %v1194 = vadd.f32 %v1078, %v1193
        %1195 = vmatmul.bf16.gmra.mxu0 %v1057
        %v1196 = vpop.f32.mrf.mxu0
        %v1197 = vadd.f32 %v1078, %v1196
        %v1198 = vpop.f32.mrf.mxu0
        %v1199 = vadd.f32 %v1078, %v1198
        %1200 = vmatmul.bf16.gmra.mxu0 %v1058
        %v1201 = vpop.f32.mrf.mxu0
        %v1202 = vadd.f32 %v1078, %v1201
        %v1203 = vpop.f32.mrf.mxu0
        %v1204 = vadd.f32 %v1078, %v1203
        %1205 = vmatmul.bf16.gmra.mxu0 %v1059
        %v1206 = vpop.f32.mrf.mxu0
        %v1207 = vadd.f32 %v1078, %v1206
        %v1208 = vpop.f32.mrf.mxu0
        %v1209 = vadd.f32 %v1078, %v1208
        %1210 = vmatmul.bf16.gmra.mxu0 %v1060
        %v1211 = vpop.f32.mrf.mxu0
        %v1212 = vadd.f32 %v1078, %v1211
        %v1213 = vpop.f32.mrf.mxu0
        %v1214 = vadd.f32 %v1078, %v1213
        %1215 = vdwg.mxu0
        %v1216 = vmul.f32 %v1137, 0.5
        %v1217 = vmul.f32 %v1139, 0.5
        %v1218 = vmul.f32 %v1142, 0.5
        %v1219 = vmul.f32 %v1144, 0.5
        %v1220 = vmul.f32 %v1147, 0.5
        %v1221 = vmul.f32 %v1149, 0.5
        %v1222 = vmul.f32 %v1152, 0.5
        %v1223 = vmul.f32 %v1154, 0.5
        %v1224 = vmul.f32 %v1157, 0.5
        %v1225 = vmul.f32 %v1159, 0.5
        %v1226 = vmul.f32 %v1162, 0.5
        %v1227 = vmul.f32 %v1164, 0.5
        %v1228 = vmul.f32 %v1167, 0.5
        %v1229 = vmul.f32 %v1169, 0.5
        %v1230 = vmul.f32 %v1172, 0.5
        %v1231 = vmul.f32 %v1174, 0.5
        %v1232 = vmul.f32 %v1177, 0.5
        %v1233 = vmul.f32 %v1179, 0.5
        %v1234 = vmul.f32 %v1182, 0.5
        %v1235 = vmul.f32 %v1184, 0.5
        %v1236 = vmul.f32 %v1187, 0.5
        %v1237 = vmul.f32 %v1189, 0.5
        %v1238 = vmul.f32 %v1192, 0.5
        %v1239 = vmul.f32 %v1194, 0.5
        %v1240 = vmul.f32 %v1197, 0.5
        %v1241 = vmul.f32 %v1199, 0.5
        %v1242 = vmul.f32 %v1202, 0.5
        %v1243 = vmul.f32 %v1204, 0.5
        %v1244 = vmul.f32 %v1207, 0.5
        %v1245 = vmul.f32 %v1209, 0.5
        %v1246 = vmul.f32 %v1212, 0.5
        %v1247 = vmul.f32 %v1214, 0.5
        %v1248 = vmul.f32 %v1137, 0.044715
        %v1249 = vmul.f32 %v1139, 0.044715
        %v1250 = vmul.f32 %v1142, 0.044715
        %v1251 = vmul.f32 %v1144, 0.044715
        %v1252 = vmul.f32 %v1147, 0.044715
        %v1253 = vmul.f32 %v1149, 0.044715
        %v1254 = vmul.f32 %v1152, 0.044715
        %v1255 = vmul.f32 %v1154, 0.044715
        %v1256 = vmul.f32 %v1157, 0.044715
        %v1257 = vmul.f32 %v1159, 0.044715
        %v1258 = vmul.f32 %v1162, 0.044715
        %v1259 = vmul.f32 %v1164, 0.044715
        %v1260 = vmul.f32 %v1167, 0.044715
        %v1261 = vmul.f32 %v1169, 0.044715
        %v1262 = vmul.f32 %v1172, 0.044715
        %v1263 = vmul.f32 %v1174, 0.044715
        %v1264 = vmul.f32 %v1177, 0.044715
        %v1265 = vmul.f32 %v1179, 0.044715
        %v1266 = vmul.f32 %v1182, 0.044715
        %v1267 = vmul.f32 %v1184, 0.044715
        %v1268 = vmul.f32 %v1187, 0.044715
        %v1269 = vmul.f32 %v1189, 0.044715
        %v1270 = vmul.f32 %v1192, 0.044715
        %v1271 = vmul.f32 %v1194, 0.044715
        %v1272 = vmul.f32 %v1197, 0.044715
        %v1273 = vmul.f32 %v1199, 0.044715
        %v1274 = vmul.f32 %v1202, 0.044715
        %v1275 = vmul.f32 %v1204, 0.044715
        %v1276 = vmul.f32 %v1207, 0.044715
        %v1277 = vmul.f32 %v1209, 0.044715
        %v1278 = vmul.f32 %v1212, 0.044715
        %v1279 = vmul.f32 %v1214, 0.044715
        %v1280 = vmul.f32 %v1248, %v1137
        %v1281 = vmul.f32 %v1249, %v1139
        %v1282 = vmul.f32 %v1250, %v1142
        %v1283 = vmul.f32 %v1251, %v1144
        %v1284 = vmul.f32 %v1252, %v1147
        %v1285 = vmul.f32 %v1253, %v1149
        %v1286 = vmul.f32 %v1254, %v1152
        %v1287 = vmul.f32 %v1255, %v1154
        %v1288 = vmul.f32 %v1256, %v1157
        %v1289 = vmul.f32 %v1257, %v1159
        %v1290 = vmul.f32 %v1258, %v1162
        %v1291 = vmul.f32 %v1259, %v1164
        %v1292 = vmul.f32 %v1260, %v1167
        %v1293 = vmul.f32 %v1261, %v1169
        %v1294 = vmul.f32 %v1262, %v1172
        %v1295 = vmul.f32 %v1263, %v1174
        %v1296 = vmul.f32 %v1264, %v1177
        %v1297 = vmul.f32 %v1265, %v1179
        %v1298 = vmul.f32 %v1266, %v1182
        %v1299 = vmul.f32 %v1267, %v1184
        %v1300 = vmul.f32 %v1268, %v1187
        %v1301 = vmul.f32 %v1269, %v1189
        %v1302 = vmul.f32 %v1270, %v1192
        %v1303 = vmul.f32 %v1271, %v1194
        %v1304 = vmul.f32 %v1272, %v1197
        %v1305 = vmul.f32 %v1273, %v1199
        %v1306 = vmul.f32 %v1274, %v1202
        %v1307 = vmul.f32 %v1275, %v1204
        %v1308 = vmul.f32 %v1276, %v1207
        %v1309 = vmul.f32 %v1277, %v1209
        %v1310 = vmul.f32 %v1278, %v1212
        %v1311 = vmul.f32 %v1279, %v1214
        %v1312 = vmul.f32 %v1280, %v1137
        %v1313 = vmul.f32 %v1281, %v1139
        %v1314 = vmul.f32 %v1282, %v1142
        %v1315 = vmul.f32 %v1283, %v1144
        %v1316 = vmul.f32 %v1284, %v1147
        %v1317 = vmul.f32 %v1285, %v1149
        %v1318 = vmul.f32 %v1286, %v1152
        %v1319 = vmul.f32 %v1287, %v1154
        %v1320 = vmul.f32 %v1288, %v1157
        %v1321 = vmul.f32 %v1289, %v1159
        %v1322 = vmul.f32 %v1290, %v1162
        %v1323 = vmul.f32 %v1291, %v1164
        %v1324 = vmul.f32 %v1292, %v1167
        %v1325 = vmul.f32 %v1293, %v1169
        %v1326 = vmul.f32 %v1294, %v1172
        %v1327 = vmul.f32 %v1295, %v1174
        %v1328 = vmul.f32 %v1296, %v1177
        %v1329 = vmul.f32 %v1297, %v1179
        %v1330 = vmul.f32 %v1298, %v1182
        %v1331 = vmul.f32 %v1299, %v1184
        %v1332 = vmul.f32 %v1300, %v1187
        %v1333 = vmul.f32 %v1301, %v1189
        %v1334 = vmul.f32 %v1302, %v1192
        %v1335 = vmul.f32 %v1303, %v1194
        %v1336 = vmul.f32 %v1304, %v1197
        %v1337 = vmul.f32 %v1305, %v1199
        %v1338 = vmul.f32 %v1306, %v1202
        %v1339 = vmul.f32 %v1307, %v1204
        %v1340 = vmul.f32 %v1308, %v1207
        %v1341 = vmul.f32 %v1309, %v1209
        %v1342 = vmul.f32 %v1310, %v1212
        %v1343 = vmul.f32 %v1311, %v1214
        %v1344 = vadd.f32 %v1137, %v1312
        %v1345 = vadd.f32 %v1139, %v1313
        %v1346 = vadd.f32 %v1142, %v1314
        %v1347 = vadd.f32 %v1144, %v1315
        %v1348 = vadd.f32 %v1147, %v1316
        %v1349 = vadd.f32 %v1149, %v1317
        %v1350 = vadd.f32 %v1152, %v1318
        %v1351 = vadd.f32 %v1154, %v1319
        %v1352 = vadd.f32 %v1157, %v1320
        %v1353 = vadd.f32 %v1159, %v1321
        %v1354 = vadd.f32 %v1162, %v1322
        %v1355 = vadd.f32 %v1164, %v1323
        %v1356 = vadd.f32 %v1167, %v1324
        %v1357 = vadd.f32 %v1169, %v1325
        %v1358 = vadd.f32 %v1172, %v1326
        %v1359 = vadd.f32 %v1174, %v1327
        %v1360 = vadd.f32 %v1177, %v1328
        %v1361 = vadd.f32 %v1179, %v1329
        %v1362 = vadd.f32 %v1182, %v1330
        %v1363 = vadd.f32 %v1184, %v1331
        %v1364 = vadd.f32 %v1187, %v1332
        %v1365 = vadd.f32 %v1189, %v1333
        %v1366 = vadd.f32 %v1192, %v1334
        %v1367 = vadd.f32 %v1194, %v1335
        %v1368 = vadd.f32 %v1197, %v1336
        %v1369 = vadd.f32 %v1199, %v1337
        %v1370 = vadd.f32 %v1202, %v1338
        %v1371 = vadd.f32 %v1204, %v1339
        %v1372 = vadd.f32 %v1207, %v1340
        %v1373 = vadd.f32 %v1209, %v1341
        %v1374 = vadd.f32 %v1212, %v1342
        %v1375 = vadd.f32 %v1214, %v1343
        %v1376 = vmul.f32 %v1344, 0.7978846
        %v1377 = vmul.f32 %v1345, 0.7978846
        %v1378 = vmul.f32 %v1346, 0.7978846
        %v1379 = vmul.f32 %v1347, 0.7978846
        %v1380 = vmul.f32 %v1348, 0.7978846
        %v1381 = vmul.f32 %v1349, 0.7978846
        %v1382 = vmul.f32 %v1350, 0.7978846
        %v1383 = vmul.f32 %v1351, 0.7978846
        %v1384 = vmul.f32 %v1352, 0.7978846
        %v1385 = vmul.f32 %v1353, 0.7978846
        %v1386 = vmul.f32 %v1354, 0.7978846
        %v1387 = vmul.f32 %v1355, 0.7978846
        %v1388 = vmul.f32 %v1356, 0.7978846
        %v1389 = vmul.f32 %v1357, 0.7978846
        %v1390 = vmul.f32 %v1358, 0.7978846
        %v1391 = vmul.f32 %v1359, 0.7978846
        %v1392 = vmul.f32 %v1360, 0.7978846
        %v1393 = vmul.f32 %v1361, 0.7978846
        %v1394 = vmul.f32 %v1362, 0.7978846
        %v1395 = vmul.f32 %v1363, 0.7978846
        %v1396 = vmul.f32 %v1364, 0.7978846
        %v1397 = vmul.f32 %v1365, 0.7978846
        %v1398 = vmul.f32 %v1366, 0.7978846
        %v1399 = vmul.f32 %v1367, 0.7978846
        %v1400 = vmul.f32 %v1368, 0.7978846
        %v1401 = vmul.f32 %v1369, 0.7978846
        %v1402 = vmul.f32 %v1370, 0.7978846
        %v1403 = vmul.f32 %v1371, 0.7978846
        %v1404 = vmul.f32 %v1372, 0.7978846
        %v1405 = vmul.f32 %v1373, 0.7978846
        %v1406 = vmul.f32 %v1374, 0.7978846
        %v1407 = vmul.f32 %v1375, 0.7978846
        %v1408 = vtanh.pop %v1376
        %v1409 = vtanh.pop %v1377
        %v1410 = vtanh.pop %v1378
        %v1411 = vtanh.pop %v1379
        %v1412 = vtanh.pop %v1380
        %v1413 = vtanh.pop %v1381
        %v1414 = vtanh.pop %v1382
        %v1415 = vtanh.pop %v1383
        %v1416 = vtanh.pop %v1384
        %v1417 = vtanh.pop %v1385
        %v1418 = vtanh.pop %v1386
        %v1419 = vtanh.pop %v1387
        %v1420 = vtanh.pop %v1388
        %v1421 = vtanh.pop %v1389
        %v1422 = vtanh.pop %v1390
        %v1423 = vtanh.pop %v1391
        %v1424 = vtanh.pop %v1392
        %v1425 = vtanh.pop %v1393
        %v1426 = vtanh.pop %v1394
        %v1427 = vtanh.pop %v1395
        %v1428 = vtanh.pop %v1396
        %v1429 = vtanh.pop %v1397
        %v1430 = vtanh.pop %v1398
        %v1431 = vtanh.pop %v1399
        %v1432 = vtanh.pop %v1400
        %v1433 = vtanh.pop %v1401
        %v1434 = vtanh.pop %v1402
        %v1435 = vtanh.pop %v1403
        %v1436 = vtanh.pop %v1404
        %v1437 = vtanh.pop %v1405
        %v1438 = vtanh.pop %v1406
        %v1439 = vtanh.pop %v1407
        %v1440 = vadd.f32 %v1408, 1.0
        %v1441 = vadd.f32 %v1409, 1.0
        %v1442 = vadd.f32 %v1410, 1.0
        %v1443 = vadd.f32 %v1411, 1.0
        %v1444 = vadd.f32 %v1412, 1.0
        %v1445 = vadd.f32 %v1413, 1.0
        %v1446 = vadd.f32 %v1414, 1.0
        %v1447 = vadd.f32 %v1415, 1.0
        %v1448 = vadd.f32 %v1416, 1.0
        %v1449 = vadd.f32 %v1417, 1.0
        %v1450 = vadd.f32 %v1418, 1.0
        %v1451 = vadd.f32 %v1419, 1.0
        %v1452 = vadd.f32 %v1420, 1.0
        %v1453 = vadd.f32 %v1421, 1.0
        %v1454 = vadd.f32 %v1422, 1.0
        %v1455 = vadd.f32 %v1423, 1.0
        %v1456 = vadd.f32 %v1424, 1.0
        %v1457 = vadd.f32 %v1425, 1.0
        %v1458 = vadd.f32 %v1426, 1.0
        %v1459 = vadd.f32 %v1427, 1.0
        %v1460 = vadd.f32 %v1428, 1.0
        %v1461 = vadd.f32 %v1429, 1.0
        %v1462 = vadd.f32 %v1430, 1.0
        %v1463 = vadd.f32 %v1431, 1.0
        %v1464 = vadd.f32 %v1432, 1.0
        %v1465 = vadd.f32 %v1433, 1.0
        %v1466 = vadd.f32 %v1434, 1.0
        %v1467 = vadd.f32 %v1435, 1.0
        %v1468 = vadd.f32 %v1436, 1.0
        %v1469 = vadd.f32 %v1437, 1.0
        %v1470 = vadd.f32 %v1438, 1.0
        %v1471 = vadd.f32 %v1439, 1.0
        %v1472 = vmul.f32 %v1216, %v1440
        %v1473 = vmul.f32 %v1217, %v1441
        %v1474 = vmul.f32 %v1218, %v1442
        %v1475 = vmul.f32 %v1219, %v1443
        %v1476 = vmul.f32 %v1220, %v1444
        %v1477 = vmul.f32 %v1221, %v1445
        %v1478 = vmul.f32 %v1222, %v1446
        %v1479 = vmul.f32 %v1223, %v1447
        %v1480 = vmul.f32 %v1224, %v1448
        %v1481 = vmul.f32 %v1225, %v1449
        %v1482 = vmul.f32 %v1226, %v1450
        %v1483 = vmul.f32 %v1227, %v1451
        %v1484 = vmul.f32 %v1228, %v1452
        %v1485 = vmul.f32 %v1229, %v1453
        %v1486 = vmul.f32 %v1230, %v1454
        %v1487 = vmul.f32 %v1231, %v1455
        %v1488 = vmul.f32 %v1232, %v1456
        %v1489 = vmul.f32 %v1233, %v1457
        %v1490 = vmul.f32 %v1234, %v1458
        %v1491 = vmul.f32 %v1235, %v1459
        %v1492 = vmul.f32 %v1236, %v1460
        %v1493 = vmul.f32 %v1237, %v1461
        %v1494 = vmul.f32 %v1238, %v1462
        %v1495 = vmul.f32 %v1239, %v1463
        %v1496 = vmul.f32 %v1240, %v1464
        %v1497 = vmul.f32 %v1241, %v1465
        %v1498 = vmul.f32 %v1242, %v1466
        %v1499 = vmul.f32 %v1243, %v1467
        %v1500 = vmul.f32 %v1244, %v1468
        %v1501 = vmul.f32 %v1245, %v1469
        %v1502 = vmul.f32 %v1246, %v1470
        %v1503 = vmul.f32 %v1247, %v1471
        %1504 = vadd.xlane.f32.xlu0 %v1472
        %v1505 = vpop.xlane.xlu0 %1504
        %1506 = vadd.xlane.f32.xlu0 %v1473
        %v1507 = vpop.xlane.xlu0 %1506
        %1508 = vadd.xlane.f32.xlu0 %v1474
        %v1509 = vpop.xlane.xlu0 %1508
        %1510 = vadd.xlane.f32.xlu0 %v1475
        %v1511 = vpop.xlane.xlu0 %1510
        %1512 = vadd.xlane.f32.xlu0 %v1476
        %v1513 = vpop.xlane.xlu0 %1512
        %1514 = vadd.xlane.f32.xlu0 %v1477
        %v1515 = vpop.xlane.xlu0 %1514
        %1516 = vadd.xlane.f32.xlu0 %v1478
        %v1517 = vpop.xlane.xlu0 %1516
        %1518 = vadd.xlane.f32.xlu0 %v1479
        %v1519 = vpop.xlane.xlu0 %1518
        %1520 = vadd.xlane.f32.xlu0 %v1480
        %v1521 = vpop.xlane.xlu0 %1520
        %1522 = vadd.xlane.f32.xlu0 %v1481
        %v1523 = vpop.xlane.xlu0 %1522
        %1524 = vadd.xlane.f32.xlu0 %v1482
        %v1525 = vpop.xlane.xlu0 %1524
        %1526 = vadd.xlane.f32.xlu0 %v1483
        %v1527 = vpop.xlane.xlu0 %1526
        %1528 = vadd.xlane.f32.xlu0 %v1484
        %v1529 = vpop.xlane.xlu0 %1528
        %1530 = vadd.xlane.f32.xlu0 %v1485
        %v1531 = vpop.xlane.xlu0 %1530
        %1532 = vadd.xlane.f32.xlu0 %v1486
        %v1533 = vpop.xlane.xlu0 %1532
        %1534 = vadd.xlane.f32.xlu0 %v1487
        %v1535 = vpop.xlane.xlu0 %1534
        %1536 = vadd.xlane.f32.xlu0 %v1488
        %v1537 = vpop.xlane.xlu0 %1536
        %1538 = vadd.xlane.f32.xlu0 %v1489
        %v1539 = vpop.xlane.xlu0 %1538
        %1540 = vadd.xlane.f32.xlu0 %v1490
        %v1541 = vpop.xlane.xlu0 %1540
        %1542 = vadd.xlane.f32.xlu0 %v1491
        %v1543 = vpop.xlane.xlu0 %1542
        %1544 = vadd.xlane.f32.xlu0 %v1492
        %v1545 = vpop.xlane.xlu0 %1544
        %1546 = vadd.xlane.f32.xlu0 %v1493
        %v1547 = vpop.xlane.xlu0 %1546
        %1548 = vadd.xlane.f32.xlu0 %v1494
        %v1549 = vpop.xlane.xlu0 %1548
        %1550 = vadd.xlane.f32.xlu0 %v1495
        %v1551 = vpop.xlane.xlu0 %1550
        %1552 = vadd.xlane.f32.xlu0 %v1496
        %v1553 = vpop.xlane.xlu0 %1552
        %1554 = vadd.xlane.f32.xlu0 %v1497
        %v1555 = vpop.xlane.xlu0 %1554
        %1556 = vadd.xlane.f32.xlu0 %v1498
        %v1557 = vpop.xlane.xlu0 %1556
        %1558 = vadd.xlane.f32.xlu0 %v1499
        %v1559 = vpop.xlane.xlu0 %1558
        %1560 = vadd.xlane.f32.xlu0 %v1500
        %v1561 = vpop.xlane.xlu0 %1560
        %1562 = vadd.xlane.f32.xlu0 %v1501
        %v1563 = vpop.xlane.xlu0 %1562
        %1564 = vadd.xlane.f32.xlu0 %v1502
        %v1565 = vpop.xlane.xlu0 %1564
        %1566 = vadd.xlane.f32.xlu0 %v1503
        %v1567 = vpop.xlane.xlu0 %1566
        %v1568 = vrcp.pop 128.0
        %v1569 = vmul.f32 128.0, %v1568
        %v1570 = vsub.f32 1.0, %v1569
        %v1571 = vmul.f32 %v1568, %v1570
        %v1572 = vadd.f32 %v1568, %v1571
        %vm1573 = vweird.f32 %v1568
        %v1574 = vsel %vm1573, %v1568, %v1572
        %v1575 = vmul.f32 %v1505, %v1574
        %v1576 = vmul.f32 %v1507, %v1574
        %v1577 = vmul.f32 %v1509, %v1574
        %v1578 = vmul.f32 %v1511, %v1574
        %v1579 = vmul.f32 %v1513, %v1574
        %v1580 = vmul.f32 %v1515, %v1574
        %v1581 = vmul.f32 %v1517, %v1574
        %v1582 = vmul.f32 %v1519, %v1574
        %v1583 = vmul.f32 %v1521, %v1574
        %v1584 = vmul.f32 %v1523, %v1574
        %v1585 = vmul.f32 %v1525, %v1574
        %v1586 = vmul.f32 %v1527, %v1574
        %v1587 = vmul.f32 %v1529, %v1574
        %v1588 = vmul.f32 %v1531, %v1574
        %v1589 = vmul.f32 %v1533, %v1574
        %v1590 = vmul.f32 %v1535, %v1574
        %v1591 = vmul.f32 %v1537, %v1574
        %v1592 = vmul.f32 %v1539, %v1574
        %v1593 = vmul.f32 %v1541, %v1574
        %v1594 = vmul.f32 %v1543, %v1574
        %v1595 = vmul.f32 %v1545, %v1574
        %v1596 = vmul.f32 %v1547, %v1574
        %v1597 = vmul.f32 %v1549, %v1574
        %v1598 = vmul.f32 %v1551, %v1574
        %v1599 = vmul.f32 %v1553, %v1574
        %v1600 = vmul.f32 %v1555, %v1574
        %v1601 = vmul.f32 %v1557, %v1574
        %v1602 = vmul.f32 %v1559, %v1574
        %v1603 = vmul.f32 %v1561, %v1574
        %v1604 = vmul.f32 %v1563, %v1574
        %v1605 = vmul.f32 %v1565, %v1574
        %v1606 = vmul.f32 %v1567, %v1574
        %v1607 = vsub.f32 %v1472, %v1575
        %v1608 = vsub.f32 %v1473, %v1576
        %v1609 = vsub.f32 %v1474, %v1577
        %v1610 = vsub.f32 %v1475, %v1578
        %v1611 = vsub.f32 %v1476, %v1579
        %v1612 = vsub.f32 %v1477, %v1580
        %v1613 = vsub.f32 %v1478, %v1581
        %v1614 = vsub.f32 %v1479, %v1582
        %v1615 = vsub.f32 %v1480, %v1583
        %v1616 = vsub.f32 %v1481, %v1584
        %v1617 = vsub.f32 %v1482, %v1585
        %v1618 = vsub.f32 %v1483, %v1586
        %v1619 = vsub.f32 %v1484, %v1587
        %v1620 = vsub.f32 %v1485, %v1588
        %v1621 = vsub.f32 %v1486, %v1589
        %v1622 = vsub.f32 %v1487, %v1590
        %v1623 = vsub.f32 %v1488, %v1591
        %v1624 = vsub.f32 %v1489, %v1592
        %v1625 = vsub.f32 %v1490, %v1593
        %v1626 = vsub.f32 %v1491, %v1594
        %v1627 = vsub.f32 %v1492, %v1595
        %v1628 = vsub.f32 %v1493, %v1596
        %v1629 = vsub.f32 %v1494, %v1597
        %v1630 = vsub.f32 %v1495, %v1598
        %v1631 = vsub.f32 %v1496, %v1599
        %v1632 = vsub.f32 %v1497, %v1600
        %v1633 = vsub.f32 %v1498, %v1601
        %v1634 = vsub.f32 %v1499, %v1602
        %v1635 = vsub.f32 %v1500, %v1603
        %v1636 = vsub.f32 %v1501, %v1604
        %v1637 = vsub.f32 %v1502, %v1605
        %v1638 = vsub.f32 %v1503, %v1606
        %v1639 = vmul.f32 %v1607, %v1607
        %v1640 = vmul.f32 %v1608, %v1608
        %v1641 = vmul.f32 %v1609, %v1609
        %v1642 = vmul.f32 %v1610, %v1610
        %v1643 = vmul.f32 %v1611, %v1611
        %v1644 = vmul.f32 %v1612, %v1612
        %v1645 = vmul.f32 %v1613, %v1613
        %v1646 = vmul.f32 %v1614, %v1614
        %v1647 = vmul.f32 %v1615, %v1615
        %v1648 = vmul.f32 %v1616, %v1616
        %v1649 = vmul.f32 %v1617, %v1617
        %v1650 = vmul.f32 %v1618, %v1618
        %v1651 = vmul.f32 %v1619, %v1619
        %v1652 = vmul.f32 %v1620, %v1620
        %v1653 = vmul.f32 %v1621, %v1621
        %v1654 = vmul.f32 %v1622, %v1622
        %v1655 = vmul.f32 %v1623, %v1623
        %v1656 = vmul.f32 %v1624, %v1624
        %v1657 = vmul.f32 %v1625, %v1625
        %v1658 = vmul.f32 %v1626, %v1626
        %v1659 = vmul.f32 %v1627, %v1627
        %v1660 = vmul.f32 %v1628, %v1628
        %v1661 = vmul.f32 %v1629, %v1629
        %v1662 = vmul.f32 %v1630, %v1630
        %v1663 = vmul.f32 %v1631, %v1631
        %v1664 = vmul.f32 %v1632, %v1632
        %v1665 = vmul.f32 %v1633, %v1633
        %v1666 = vmul.f32 %v1634, %v1634
        %v1667 = vmul.f32 %v1635, %v1635
        %v1668 = vmul.f32 %v1636, %v1636
        %v1669 = vmul.f32 %v1637, %v1637
        %v1670 = vmul.f32 %v1638, %v1638
        %1671 = vadd.xlane.f32.xlu0 %v1639
        %v1672 = vpop.xlane.xlu0 %1671
        %1673 = vadd.xlane.f32.xlu0 %v1640
        %v1674 = vpop.xlane.xlu0 %1673
        %1675 = vadd.xlane.f32.xlu0 %v1641
        %v1676 = vpop.xlane.xlu0 %1675
        %1677 = vadd.xlane.f32.xlu0 %v1642
        %v1678 = vpop.xlane.xlu0 %1677
        %1679 = vadd.xlane.f32.xlu0 %v1643
        %v1680 = vpop.xlane.xlu0 %1679
        %1681 = vadd.xlane.f32.xlu0 %v1644
        %v1682 = vpop.xlane.xlu0 %1681
        %1683 = vadd.xlane.f32.xlu0 %v1645
        %v1684 = vpop.xlane.xlu0 %1683
        %1685 = vadd.xlane.f32.xlu0 %v1646
        %v1686 = vpop.xlane.xlu0 %1685
        %1687 = vadd.xlane.f32.xlu0 %v1647
        %v1688 = vpop.xlane.xlu0 %1687
        %1689 = vadd.xlane.f32.xlu0 %v1648
        %v1690 = vpop.xlane.xlu0 %1689
        %1691 = vadd.xlane.f32.xlu0 %v1649
        %v1692 = vpop.xlane.xlu0 %1691
        %1693 = vadd.xlane.f32.xlu0 %v1650
        %v1694 = vpop.xlane.xlu0 %1693
        %1695 = vadd.xlane.f32.xlu0 %v1651
        %v1696 = vpop.xlane.xlu0 %1695
        %1697 = vadd.xlane.f32.xlu0 %v1652
        %v1698 = vpop.xlane.xlu0 %1697
        %1699 = vadd.xlane.f32.xlu0 %v1653
        %v1700 = vpop.xlane.xlu0 %1699
        %1701 = vadd.xlane.f32.xlu0 %v1654
        %v1702 = vpop.xlane.xlu0 %1701
        %1703 = vadd.xlane.f32.xlu0 %v1655
        %v1704 = vpop.xlane.xlu0 %1703
        %1705 = vadd.xlane.f32.xlu0 %v1656
        %v1706 = vpop.xlane.xlu0 %1705
        %1707 = vadd.xlane.f32.xlu0 %v1657
        %v1708 = vpop.xlane.xlu0 %1707
        %1709 = vadd.xlane.f32.xlu0 %v1658
        %v1710 = vpop.xlane.xlu0 %1709
        %1711 = vadd.xlane.f32.xlu0 %v1659
        %v1712 = vpop.xlane.xlu0 %1711
        %1713 = vadd.xlane.f32.xlu0 %v1660
        %v1714 = vpop.xlane.xlu0 %1713
        %1715 = vadd.xlane.f32.xlu0 %v1661
        %v1716 = vpop.xlane.xlu0 %1715
        %1717 = vadd.xlane.f32.xlu0 %v1662
        %v1718 = vpop.xlane.xlu0 %1717
        %1719 = vadd.xlane.f32.xlu0 %v1663
        %v1720 = vpop.xlane.xlu0 %1719
        %1721 = vadd.xlane.f32.xlu0 %v1664
        %v1722 = vpop.xlane.xlu0 %1721
        %1723 = vadd.xlane.f32.xlu0 %v1665
        %v1724 = vpop.xlane.xlu0 %1723
        %1725 = vadd.xlane.f32.xlu0 %v1666
        %v1726 = vpop.xlane.xlu0 %1725
        %1727 = vadd.xlane.f32.xlu0 %v1667
        %v1728 = vpop.xlane.xlu0 %1727
        %1729 = vadd.xlane.f32.xlu0 %v1668
        %v1730 = vpop.xlane.xlu0 %1729
        %1731 = vadd.xlane.f32.xlu0 %v1669
        %v1732 = vpop.xlane.xlu0 %1731
        %1733 = vadd.xlane.f32.xlu0 %v1670
        %v1734 = vpop.xlane.xlu0 %1733
        %v1735 = vmul.f32 %v1672, %v1574
        %v1736 = vmul.f32 %v1674, %v1574
        %v1737 = vmul.f32 %v1676, %v1574
        %v1738 = vmul.f32 %v1678, %v1574
        %v1739 = vmul.f32 %v1680, %v1574
        %v1740 = vmul.f32 %v1682, %v1574
        %v1741 = vmul.f32 %v1684, %v1574
        %v1742 = vmul.f32 %v1686, %v1574
        %v1743 = vmul.f32 %v1688, %v1574
        %v1744 = vmul.f32 %v1690, %v1574
        %v1745 = vmul.f32 %v1692, %v1574
        %v1746 = vmul.f32 %v1694, %v1574
        %v1747 = vmul.f32 %v1696, %v1574
        %v1748 = vmul.f32 %v1698, %v1574
        %v1749 = vmul.f32 %v1700, %v1574
        %v1750 = vmul.f32 %v1702, %v1574
        %v1751 = vmul.f32 %v1704, %v1574
        %v1752 = vmul.f32 %v1706, %v1574
        %v1753 = vmul.f32 %v1708, %v1574
        %v1754 = vmul.f32 %v1710, %v1574
        %v1755 = vmul.f32 %v1712, %v1574
        %v1756 = vmul.f32 %v1714, %v1574
        %v1757 = vmul.f32 %v1716, %v1574
        %v1758 = vmul.f32 %v1718, %v1574
        %v1759 = vmul.f32 %v1720, %v1574
        %v1760 = vmul.f32 %v1722, %v1574
        %v1761 = vmul.f32 %v1724, %v1574
        %v1762 = vmul.f32 %v1726, %v1574
        %v1763 = vmul.f32 %v1728, %v1574
        %v1764 = vmul.f32 %v1730, %v1574
        %v1765 = vmul.f32 %v1732, %v1574
        %v1766 = vmul.f32 %v1734, %v1574
        %v1767 = vadd.f32 %v1735, 1e-06
        %v1768 = vadd.f32 %v1736, 1e-06
        %v1769 = vadd.f32 %v1737, 1e-06
        %v1770 = vadd.f32 %v1738, 1e-06
        %v1771 = vadd.f32 %v1739, 1e-06
        %v1772 = vadd.f32 %v1740, 1e-06
        %v1773 = vadd.f32 %v1741, 1e-06
        %v1774 = vadd.f32 %v1742, 1e-06
        %v1775 = vadd.f32 %v1743, 1e-06
        %v1776 = vadd.f32 %v1744, 1e-06
        %v1777 = vadd.f32 %v1745, 1e-06
        %v1778 = vadd.f32 %v1746, 1e-06
        %v1779 = vadd.f32 %v1747, 1e-06
        %v1780 = vadd.f32 %v1748, 1e-06
        %v1781 = vadd.f32 %v1749, 1e-06
        %v1782 = vadd.f32 %v1750, 1e-06
        %v1783 = vadd.f32 %v1751, 1e-06
        %v1784 = vadd.f32 %v1752, 1e-06
        %v1785 = vadd.f32 %v1753, 1e-06
        %v1786 = vadd.f32 %v1754, 1e-06
        %v1787 = vadd.f32 %v1755, 1e-06
        %v1788 = vadd.f32 %v1756, 1e-06
        %v1789 = vadd.f32 %v1757, 1e-06
        %v1790 = vadd.f32 %v1758, 1e-06
        %v1791 = vadd.f32 %v1759, 1e-06
        %v1792 = vadd.f32 %v1760, 1e-06
        %v1793 = vadd.f32 %v1761, 1e-06
        %v1794 = vadd.f32 %v1762, 1e-06
        %v1795 = vadd.f32 %v1763, 1e-06
        %v1796 = vadd.f32 %v1764, 1e-06
        %v1797 = vadd.f32 %v1765, 1e-06
        %v1798 = vadd.f32 %v1766, 1e-06
        %v1799 = vrsqrt.pop %v1767
        %v1800 = vmul.f32 %v1799, %v1767
        %v1801 = vmul.f32 %v1800, %v1799
        %v1802 = vmul.f32 0.5, %v1801
        %v1803 = vsub.f32 1.5, %v1802
        %v1804 = vmul.f32 %v1799, %v1803
        %vm1805 = vweird.f32 %v1767
        %vm1806 = vweird.f32 %v1799
        %vm1807 = vmor %vm1805, %vm1806
        %v1808 = vsel %vm1807, %v1799, %v1804
        %v1809 = vrsqrt.pop %v1768
        %v1810 = vmul.f32 %v1809, %v1768
        %v1811 = vmul.f32 %v1810, %v1809
        %v1812 = vmul.f32 0.5, %v1811
        %v1813 = vsub.f32 1.5, %v1812
        %v1814 = vmul.f32 %v1809, %v1813
        %vm1815 = vweird.f32 %v1768
        %vm1816 = vweird.f32 %v1809
        %vm1817 = vmor %vm1815, %vm1816
        %v1818 = vsel %vm1817, %v1809, %v1814
        %v1819 = vrsqrt.pop %v1769
        %v1820 = vmul.f32 %v1819, %v1769
        %v1821 = vmul.f32 %v1820, %v1819
        %v1822 = vmul.f32 0.5, %v1821
        %v1823 = vsub.f32 1.5, %v1822
        %v1824 = vmul.f32 %v1819, %v1823
        %vm1825 = vweird.f32 %v1769
        %vm1826 = vweird.f32 %v1819
        %vm1827 = vmor %vm1825, %vm1826
        %v1828 = vsel %vm1827, %v1819, %v1824
        %v1829 = vrsqrt.pop %v1770
        %v1830 = vmul.f32 %v1829, %v1770
        %v1831 = vmul.f32 %v1830, %v1829
        %v1832 = vmul.f32 0.5, %v1831
        %v1833 = vsub.f32 1.5, %v1832
        %v1834 = vmul.f32 %v1829, %v1833
        %vm1835 = vweird.f32 %v1770
        %vm1836 = vweird.f32 %v1829
        %vm1837 = vmor %vm1835, %vm1836
        %v1838 = vsel %vm1837, %v1829, %v1834
        %v1839 = vrsqrt.pop %v1771
        %v1840 = vmul.f32 %v1839, %v1771
        %v1841 = vmul.f32 %v1840, %v1839
        %v1842 = vmul.f32 0.5, %v1841
        %v1843 = vsub.f32 1.5, %v1842
        %v1844 = vmul.f32 %v1839, %v1843
        %vm1845 = vweird.f32 %v1771
        %vm1846 = vweird.f32 %v1839
        %vm1847 = vmor %vm1845, %vm1846
        %v1848 = vsel %vm1847, %v1839, %v1844
        %v1849 = vrsqrt.pop %v1772
        %v1850 = vmul.f32 %v1849, %v1772
        %v1851 = vmul.f32 %v1850, %v1849
        %v1852 = vmul.f32 0.5, %v1851
        %v1853 = vsub.f32 1.5, %v1852
        %v1854 = vmul.f32 %v1849, %v1853
        %vm1855 = vweird.f32 %v1772
        %vm1856 = vweird.f32 %v1849
        %vm1857 = vmor %vm1855, %vm1856
        %v1858 = vsel %vm1857, %v1849, %v1854
        %v1859 = vrsqrt.pop %v1773
        %v1860 = vmul.f32 %v1859, %v1773
        %v1861 = vmul.f32 %v1860, %v1859
        %v1862 = vmul.f32 0.5, %v1861
        %v1863 = vsub.f32 1.5, %v1862
        %v1864 = vmul.f32 %v1859, %v1863
        %vm1865 = vweird.f32 %v1773
        %vm1866 = vweird.f32 %v1859
        %vm1867 = vmor %vm1865, %vm1866
        %v1868 = vsel %vm1867, %v1859, %v1864
        %v1869 = vrsqrt.pop %v1774
        %v1870 = vmul.f32 %v1869, %v1774
        %v1871 = vmul.f32 %v1870, %v1869
        %v1872 = vmul.f32 0.5, %v1871
        %v1873 = vsub.f32 1.5, %v1872
        %v1874 = vmul.f32 %v1869, %v1873
        %vm1875 = vweird.f32 %v1774
        %vm1876 = vweird.f32 %v1869
        %vm1877 = vmor %vm1875, %vm1876
        %v1878 = vsel %vm1877, %v1869, %v1874
        %v1879 = vrsqrt.pop %v1775
        %v1880 = vmul.f32 %v1879, %v1775
        %v1881 = vmul.f32 %v1880, %v1879
        %v1882 = vmul.f32 0.5, %v1881
        %v1883 = vsub.f32 1.5, %v1882
        %v1884 = vmul.f32 %v1879, %v1883
        %vm1885 = vweird.f32 %v1775
        %vm1886 = vweird.f32 %v1879
        %vm1887 = vmor %vm1885, %vm1886
        %v1888 = vsel %vm1887, %v1879, %v1884
        %v1889 = vrsqrt.pop %v1776
        %v1890 = vmul.f32 %v1889, %v1776
        %v1891 = vmul.f32 %v1890, %v1889
        %v1892 = vmul.f32 0.5, %v1891
        %v1893 = vsub.f32 1.5, %v1892
        %v1894 = vmul.f32 %v1889, %v1893
        %vm1895 = vweird.f32 %v1776
        %vm1896 = vweird.f32 %v1889
        %vm1897 = vmor %vm1895, %vm1896
        %v1898 = vsel %vm1897, %v1889, %v1894
        %v1899 = vrsqrt.pop %v1777
        %v1900 = vmul.f32 %v1899, %v1777
        %v1901 = vmul.f32 %v1900, %v1899
        %v1902 = vmul.f32 0.5, %v1901
        %v1903 = vsub.f32 1.5, %v1902
        %v1904 = vmul.f32 %v1899, %v1903
        %vm1905 = vweird.f32 %v1777
        %vm1906 = vweird.f32 %v1899
        %vm1907 = vmor %vm1905, %vm1906
        %v1908 = vsel %vm1907, %v1899, %v1904
        %v1909 = vrsqrt.pop %v1778
        %v1910 = vmul.f32 %v1909, %v1778
        %v1911 = vmul.f32 %v1910, %v1909
        %v1912 = vmul.f32 0.5, %v1911
        %v1913 = vsub.f32 1.5, %v1912
        %v1914 = vmul.f32 %v1909, %v1913
        %vm1915 = vweird.f32 %v1778
        %vm1916 = vweird.f32 %v1909
        %vm1917 = vmor %vm1915, %vm1916
        %v1918 = vsel %vm1917, %v1909, %v1914
        %v1919 = vrsqrt.pop %v1779
        %v1920 = vmul.f32 %v1919, %v1779
        %v1921 = vmul.f32 %v1920, %v1919
        %v1922 = vmul.f32 0.5, %v1921
        %v1923 = vsub.f32 1.5, %v1922
        %v1924 = vmul.f32 %v1919, %v1923
        %vm1925 = vweird.f32 %v1779
        %vm1926 = vweird.f32 %v1919
        %vm1927 = vmor %vm1925, %vm1926
        %v1928 = vsel %vm1927, %v1919, %v1924
        %v1929 = vrsqrt.pop %v1780
        %v1930 = vmul.f32 %v1929, %v1780
        %v1931 = vmul.f32 %v1930, %v1929
        %v1932 = vmul.f32 0.5, %v1931
        %v1933 = vsub.f32 1.5, %v1932
        %v1934 = vmul.f32 %v1929, %v1933
        %vm1935 = vweird.f32 %v1780
        %vm1936 = vweird.f32 %v1929
        %vm1937 = vmor %vm1935, %vm1936
        %v1938 = vsel %vm1937, %v1929, %v1934
        %v1939 = vrsqrt.pop %v1781
        %v1940 = vmul.f32 %v1939, %v1781
        %v1941 = vmul.f32 %v1940, %v1939
        %v1942 = vmul.f32 0.5, %v1941
        %v1943 = vsub.f32 1.5, %v1942
        %v1944 = vmul.f32 %v1939, %v1943
        %vm1945 = vweird.f32 %v1781
        %vm1946 = vweird.f32 %v1939
        %vm1947 = vmor %vm1945, %vm1946
        %v1948 = vsel %vm1947, %v1939, %v1944
        %v1949 = vrsqrt.pop %v1782
        %v1950 = vmul.f32 %v1949, %v1782
        %v1951 = vmul.f32 %v1950, %v1949
        %v1952 = vmul.f32 0.5, %v1951
        %v1953 = vsub.f32 1.5, %v1952
        %v1954 = vmul.f32 %v1949, %v1953
        %vm1955 = vweird.f32 %v1782
        %vm1956 = vweird.f32 %v1949
        %vm1957 = vmor %vm1955, %vm1956
        %v1958 = vsel %vm1957, %v1949, %v1954
        %v1959 = vrsqrt.pop %v1783
        %v1960 = vmul.f32 %v1959, %v1783
        %v1961 = vmul.f32 %v1960, %v1959
        %v1962 = vmul.f32 0.5, %v1961
        %v1963 = vsub.f32 1.5, %v1962
        %v1964 = vmul.f32 %v1959, %v1963
        %vm1965 = vweird.f32 %v1783
        %vm1966 = vweird.f32 %v1959
        %vm1967 = vmor %vm1965, %vm1966
        %v1968 = vsel %vm1967, %v1959, %v1964
        %v1969 = vrsqrt.pop %v1784
        %v1970 = vmul.f32 %v1969, %v1784
        %v1971 = vmul.f32 %v1970, %v1969
        %v1972 = vmul.f32 0.5, %v1971
        %v1973 = vsub.f32 1.5, %v1972
        %v1974 = vmul.f32 %v1969, %v1973
        %vm1975 = vweird.f32 %v1784
        %vm1976 = vweird.f32 %v1969
        %vm1977 = vmor %vm1975, %vm1976
        %v1978 = vsel %vm1977, %v1969, %v1974
        %v1979 = vrsqrt.pop %v1785
        %v1980 = vmul.f32 %v1979, %v1785
        %v1981 = vmul.f32 %v1980, %v1979
        %v1982 = vmul.f32 0.5, %v1981
        %v1983 = vsub.f32 1.5, %v1982
        %v1984 = vmul.f32 %v1979, %v1983
        %vm1985 = vweird.f32 %v1785
        %vm1986 = vweird.f32 %v1979
        %vm1987 = vmor %vm1985, %vm1986
        %v1988 = vsel %vm1987, %v1979, %v1984
        %v1989 = vrsqrt.pop %v1786
        %v1990 = vmul.f32 %v1989, %v1786
        %v1991 = vmul.f32 %v1990, %v1989
        %v1992 = vmul.f32 0.5, %v1991
        %v1993 = vsub.f32 1.5, %v1992
        %v1994 = vmul.f32 %v1989, %v1993
        %vm1995 = vweird.f32 %v1786
        %vm1996 = vweird.f32 %v1989
        %vm1997 = vmor %vm1995, %vm1996
        %v1998 = vsel %vm1997, %v1989, %v1994
        %v1999 = vrsqrt.pop %v1787
        %v2000 = vmul.f32 %v1999, %v1787
        %v2001 = vmul.f32 %v2000, %v1999
        %v2002 = vmul.f32 0.5, %v2001
        %v2003 = vsub.f32 1.5, %v2002
        %v2004 = vmul.f32 %v1999, %v2003
        %vm2005 = vweird.f32 %v1787
        %vm2006 = vweird.f32 %v1999
        %vm2007 = vmor %vm2005, %vm2006
        %v2008 = vsel %vm2007, %v1999, %v2004
        %v2009 = vrsqrt.pop %v1788
        %v2010 = vmul.f32 %v2009, %v1788
        %v2011 = vmul.f32 %v2010, %v2009
        %v2012 = vmul.f32 0.5, %v2011
        %v2013 = vsub.f32 1.5, %v2012
        %v2014 = vmul.f32 %v2009, %v2013
        %vm2015 = vweird.f32 %v1788
        %vm2016 = vweird.f32 %v2009
        %vm2017 = vmor %vm2015, %vm2016
        %v2018 = vsel %vm2017, %v2009, %v2014
        %v2019 = vrsqrt.pop %v1789
        %v2020 = vmul.f32 %v2019, %v1789
        %v2021 = vmul.f32 %v2020, %v2019
        %v2022 = vmul.f32 0.5, %v2021
        %v2023 = vsub.f32 1.5, %v2022
        %v2024 = vmul.f32 %v2019, %v2023
        %vm2025 = vweird.f32 %v1789
        %vm2026 = vweird.f32 %v2019
        %vm2027 = vmor %vm2025, %vm2026
        %v2028 = vsel %vm2027, %v2019, %v2024
        %v2029 = vrsqrt.pop %v1790
        %v2030 = vmul.f32 %v2029, %v1790
        %v2031 = vmul.f32 %v2030, %v2029
        %v2032 = vmul.f32 0.5, %v2031
        %v2033 = vsub.f32 1.5, %v2032
        %v2034 = vmul.f32 %v2029, %v2033
        %vm2035 = vweird.f32 %v1790
        %vm2036 = vweird.f32 %v2029
        %vm2037 = vmor %vm2035, %vm2036
        %v2038 = vsel %vm2037, %v2029, %v2034
        %v2039 = vrsqrt.pop %v1791
        %v2040 = vmul.f32 %v2039, %v1791
        %v2041 = vmul.f32 %v2040, %v2039
        %v2042 = vmul.f32 0.5, %v2041
        %v2043 = vsub.f32 1.5, %v2042
        %v2044 = vmul.f32 %v2039, %v2043
        %vm2045 = vweird.f32 %v1791
        %vm2046 = vweird.f32 %v2039
        %vm2047 = vmor %vm2045, %vm2046
        %v2048 = vsel %vm2047, %v2039, %v2044
        %v2049 = vrsqrt.pop %v1792
        %v2050 = vmul.f32 %v2049, %v1792
        %v2051 = vmul.f32 %v2050, %v2049
        %v2052 = vmul.f32 0.5, %v2051
        %v2053 = vsub.f32 1.5, %v2052
        %v2054 = vmul.f32 %v2049, %v2053
        %vm2055 = vweird.f32 %v1792
        %vm2056 = vweird.f32 %v2049
        %vm2057 = vmor %vm2055, %vm2056
        %v2058 = vsel %vm2057, %v2049, %v2054
        %v2059 = vrsqrt.pop %v1793
        %v2060 = vmul.f32 %v2059, %v1793
        %v2061 = vmul.f32 %v2060, %v2059
        %v2062 = vmul.f32 0.5, %v2061
        %v2063 = vsub.f32 1.5, %v2062
        %v2064 = vmul.f32 %v2059, %v2063
        %vm2065 = vweird.f32 %v1793
        %vm2066 = vweird.f32 %v2059
        %vm2067 = vmor %vm2065, %vm2066
        %v2068 = vsel %vm2067, %v2059, %v2064
        %v2069 = vrsqrt.pop %v1794
        %v2070 = vmul.f32 %v2069, %v1794
        %v2071 = vmul.f32 %v2070, %v2069
        %v2072 = vmul.f32 0.5, %v2071
        %v2073 = vsub.f32 1.5, %v2072
        %v2074 = vmul.f32 %v2069, %v2073
        %vm2075 = vweird.f32 %v1794
        %vm2076 = vweird.f32 %v2069
        %vm2077 = vmor %vm2075, %vm2076
        %v2078 = vsel %vm2077, %v2069, %v2074
        %v2079 = vrsqrt.pop %v1795
        %v2080 = vmul.f32 %v2079, %v1795
        %v2081 = vmul.f32 %v2080, %v2079
        %v2082 = vmul.f32 0.5, %v2081
        %v2083 = vsub.f32 1.5, %v2082
        %v2084 = vmul.f32 %v2079, %v2083
        %vm2085 = vweird.f32 %v1795
        %vm2086 = vweird.f32 %v2079
        %vm2087 = vmor %vm2085, %vm2086
        %v2088 = vsel %vm2087, %v2079, %v2084
        %v2089 = vrsqrt.pop %v1796
        %v2090 = vmul.f32 %v2089, %v1796
        %v2091 = vmul.f32 %v2090, %v2089
        %v2092 = vmul.f32 0.5, %v2091
        %v2093 = vsub.f32 1.5, %v2092
        %v2094 = vmul.f32 %v2089, %v2093
        %vm2095 = vweird.f32 %v1796
        %vm2096 = vweird.f32 %v2089
        %vm2097 = vmor %vm2095, %vm2096
        %v2098 = vsel %vm2097, %v2089, %v2094
        %v2099 = vrsqrt.pop %v1797
        %v2100 = vmul.f32 %v2099, %v1797
        %v2101 = vmul.f32 %v2100, %v2099
        %v2102 = vmul.f32 0.5, %v2101
        %v2103 = vsub.f32 1.5, %v2102
        %v2104 = vmul.f32 %v2099, %v2103
        %vm2105 = vweird.f32 %v1797
        %vm2106 = vweird.f32 %v2099
        %vm2107 = vmor %vm2105, %vm2106
        %v2108 = vsel %vm2107, %v2099, %v2104
        %v2109 = vrsqrt.pop %v1798
        %v2110 = vmul.f32 %v2109, %v1798
        %v2111 = vmul.f32 %v2110, %v2109
        %v2112 = vmul.f32 0.5, %v2111
        %v2113 = vsub.f32 1.5, %v2112
        %v2114 = vmul.f32 %v2109, %v2113
        %vm2115 = vweird.f32 %v1798
        %vm2116 = vweird.f32 %v2109
        %vm2117 = vmor %vm2115, %vm2116
        %v2118 = vsel %vm2117, %v2109, %v2114
        %v2119 = vmul.f32 %v1607, %v1808
        %v2120 = vmul.f32 %v1608, %v1818
        %v2121 = vmul.f32 %v1609, %v1828
        %v2122 = vmul.f32 %v1610, %v1838
        %v2123 = vmul.f32 %v1611, %v1848
        %v2124 = vmul.f32 %v1612, %v1858
        %v2125 = vmul.f32 %v1613, %v1868
        %v2126 = vmul.f32 %v1614, %v1878
        %v2127 = vmul.f32 %v1615, %v1888
        %v2128 = vmul.f32 %v1616, %v1898
        %v2129 = vmul.f32 %v1617, %v1908
        %v2130 = vmul.f32 %v1618, %v1918
        %v2131 = vmul.f32 %v1619, %v1928
        %v2132 = vmul.f32 %v1620, %v1938
        %v2133 = vmul.f32 %v1621, %v1948
        %v2134 = vmul.f32 %v1622, %v1958
        %v2135 = vmul.f32 %v1623, %v1968
        %v2136 = vmul.f32 %v1624, %v1978
        %v2137 = vmul.f32 %v1625, %v1988
        %v2138 = vmul.f32 %v1626, %v1998
        %v2139 = vmul.f32 %v1627, %v2008
        %v2140 = vmul.f32 %v1628, %v2018
        %v2141 = vmul.f32 %v1629, %v2028
        %v2142 = vmul.f32 %v1630, %v2038
        %v2143 = vmul.f32 %v1631, %v2048
        %v2144 = vmul.f32 %v1632, %v2058
        %v2145 = vmul.f32 %v1633, %v2068
        %v2146 = vmul.f32 %v1634, %v2078
        %v2147 = vmul.f32 %v1635, %v2088
        %v2148 = vmul.f32 %v1636, %v2098
        %v2149 = vmul.f32 %v1637, %v2108
        %v2150 = vmul.f32 %v1638, %v2118
        %v2151 = vperm.slane %v383, 3
        %v2152 = vmul.f32 %v2119, %v2151
        %v2153 = vmul.f32 %v2120, %v2151
        %v2154 = vmul.f32 %v2121, %v2151
        %v2155 = vmul.f32 %v2122, %v2151
        %v2156 = vmul.f32 %v2123, %v2151
        %v2157 = vmul.f32 %v2124, %v2151
        %v2158 = vmul.f32 %v2125, %v2151
        %v2159 = vmul.f32 %v2126, %v2151
        %v2160 = vmul.f32 %v2127, %v2151
        %v2161 = vmul.f32 %v2128, %v2151
        %v2162 = vmul.f32 %v2129, %v2151
        %v2163 = vmul.f32 %v2130, %v2151
        %v2164 = vmul.f32 %v2131, %v2151
        %v2165 = vmul.f32 %v2132, %v2151
        %v2166 = vmul.f32 %v2133, %v2151
        %v2167 = vmul.f32 %v2134, %v2151
        %v2168 = vmul.f32 %v2135, %v2151
        %v2169 = vmul.f32 %v2136, %v2151
        %v2170 = vmul.f32 %v2137, %v2151
        %v2171 = vmul.f32 %v2138, %v2151
        %v2172 = vmul.f32 %v2139, %v2151
        %v2173 = vmul.f32 %v2140, %v2151
        %v2174 = vmul.f32 %v2141, %v2151
        %v2175 = vmul.f32 %v2142, %v2151
        %v2176 = vmul.f32 %v2143, %v2151
        %v2177 = vmul.f32 %v2144, %v2151
        %v2178 = vmul.f32 %v2145, %v2151
        %v2179 = vmul.f32 %v2146, %v2151
        %v2180 = vmul.f32 %v2147, %v2151
        %v2181 = vmul.f32 %v2148, %v2151
        %v2182 = vmul.f32 %v2149, %v2151
        %v2183 = vmul.f32 %v2150, %v2151
        %v2184 = vperm.slane %v383, 4
        %v2185 = vadd.f32 %v2152, %v2184
        %v2186 = vadd.f32 %v2153, %v2184
        %v2187 = vadd.f32 %v2154, %v2184
        %v2188 = vadd.f32 %v2155, %v2184
        %v2189 = vadd.f32 %v2156, %v2184
        %v2190 = vadd.f32 %v2157, %v2184
        %v2191 = vadd.f32 %v2158, %v2184
        %v2192 = vadd.f32 %v2159, %v2184
        %v2193 = vadd.f32 %v2160, %v2184
        %v2194 = vadd.f32 %v2161, %v2184
        %v2195 = vadd.f32 %v2162, %v2184
        %v2196 = vadd.f32 %v2163, %v2184
        %v2197 = vadd.f32 %v2164, %v2184
        %v2198 = vadd.f32 %v2165, %v2184
        %v2199 = vadd.f32 %v2166, %v2184
        %v2200 = vadd.f32 %v2167, %v2184
        %v2201 = vadd.f32 %v2168, %v2184
        %v2202 = vadd.f32 %v2169, %v2184
        %v2203 = vadd.f32 %v2170, %v2184
        %v2204 = vadd.f32 %v2171, %v2184
        %v2205 = vadd.f32 %v2172, %v2184
        %v2206 = vadd.f32 %v2173, %v2184
        %v2207 = vadd.f32 %v2174, %v2184
        %v2208 = vadd.f32 %v2175, %v2184
        %v2209 = vadd.f32 %v2176, %v2184
        %v2210 = vadd.f32 %v2177, %v2184
        %v2211 = vadd.f32 %v2178, %v2184
        %v2212 = vadd.f32 %v2179, %v2184
        %v2213 = vadd.f32 %v2180, %v2184
        %v2214 = vadd.f32 %v2181, %v2184
        %v2215 = vadd.f32 %v2182, %v2184
        %v2216 = vadd.f32 %v2183, %v2184
        %v2217 = vpack.c.bf16 %v2185, %v2185
        %v2218 = vpack.c.bf16 %v2186, %v2186
        %v2219 = vpack.c.bf16 %v2187, %v2187
        %v2220 = vpack.c.bf16 %v2188, %v2188
        %v2221 = vpack.c.bf16 %v2189, %v2189
        %v2222 = vpack.c.bf16 %v2190, %v2190
        %v2223 = vpack.c.bf16 %v2191, %v2191
        %v2224 = vpack.c.bf16 %v2192, %v2192
        %v2225 = vpack.c.bf16 %v2193, %v2193
        %v2226 = vpack.c.bf16 %v2194, %v2194
        %v2227 = vpack.c.bf16 %v2195, %v2195
        %v2228 = vpack.c.bf16 %v2196, %v2196
        %v2229 = vpack.c.bf16 %v2197, %v2197
        %v2230 = vpack.c.bf16 %v2198, %v2198
        %v2231 = vpack.c.bf16 %v2199, %v2199
        %v2232 = vpack.c.bf16 %v2200, %v2200
        %v2233 = vpack.c.bf16 %v2201, %v2201
        %v2234 = vpack.c.bf16 %v2202, %v2202
        %v2235 = vpack.c.bf16 %v2203, %v2203
        %v2236 = vpack.c.bf16 %v2204, %v2204
        %v2237 = vpack.c.bf16 %v2205, %v2205
        %v2238 = vpack.c.bf16 %v2206, %v2206
        %v2239 = vpack.c.bf16 %v2207, %v2207
        %v2240 = vpack.c.bf16 %v2208, %v2208
        %v2241 = vpack.c.bf16 %v2209, %v2209
        %v2242 = vpack.c.bf16 %v2210, %v2210
        %v2243 = vpack.c.bf16 %v2211, %v2211
        %v2244 = vpack.c.bf16 %v2212, %v2212
        %v2245 = vpack.c.bf16 %v2213, %v2213
        %v2246 = vpack.c.bf16 %v2214, %v2214
        %v2247 = vpack.c.bf16 %v2215, %v2215
        %v2248 = vpack.c.bf16 %v2216, %v2216
        %v2249 = vld [vmem:[%s3] sm:$0xf]
        %v2250 = vld [vmem:[%s3 + $0x4] sm:$0xf]
        %v2251 = vld [vmem:[%s3 + $0x8] sm:$0xf]
        %v2252 = vld [vmem:[%s3 + $0xc] sm:$0xf]
        %v2253 = vld [vmem:[%s3 + $0x10] sm:$0xf]
        %v2254 = vld [vmem:[%s3 + $0x14] sm:$0xf]
        %v2255 = vld [vmem:[%s3 + $0x18] sm:$0xf]
        %v2256 = vld [vmem:[%s3 + $0x1c] sm:$0xf]
        %v2257 = vld [vmem:[%s3 + $0x20] sm:$0xf]
        %v2258 = vld [vmem:[%s3 + $0x24] sm:$0xf]
        %v2259 = vld [vmem:[%s3 + $0x28] sm:$0xf]
        %v2260 = vld [vmem:[%s3 + $0x2c] sm:$0xf]
        %v2261 = vld [vmem:[%s3 + $0x30] sm:$0xf]
        %v2262 = vld [vmem:[%s3 + $0x34] sm:$0xf]
        %v2263 = vld [vmem:[%s3 + $0x38] sm:$0xf]
        %v2264 = vld [vmem:[%s3 + $0x3c] sm:$0xf]
        %s2265 = scalar_lea.vmem %s3, 64
        %v2266 = vld [vmem:[%s2265] sm:$0xf]
        %v2267 = vld [vmem:[%s2265 + $0x4] sm:$0xf]
        %v2268 = vld [vmem:[%s2265 + $0x8] sm:$0xf]
        %v2269 = vld [vmem:[%s2265 + $0xc] sm:$0xf]
        %v2270 = vld [vmem:[%s2265 + $0x10] sm:$0xf]
        %v2271 = vld [vmem:[%s2265 + $0x14] sm:$0xf]
        %v2272 = vld [vmem:[%s2265 + $0x18] sm:$0xf]
        %v2273 = vld [vmem:[%s2265 + $0x1c] sm:$0xf]
        %v2274 = vld [vmem:[%s2265 + $0x20] sm:$0xf]
        %v2275 = vld [vmem:[%s2265 + $0x24] sm:$0xf]
        %v2276 = vld [vmem:[%s2265 + $0x28] sm:$0xf]
        %v2277 = vld [vmem:[%s2265 + $0x2c] sm:$0xf]
        %v2278 = vld [vmem:[%s2265 + $0x30] sm:$0xf]
        %v2279 = vld [vmem:[%s2265 + $0x34] sm:$0xf]
        %v2280 = vld [vmem:[%s2265 + $0x38] sm:$0xf]
        %v2281 = vld [vmem:[%s2265 + $0x3c] sm:$0xf]
        %v2286 = vunpack.c.l.b16 %v2221
        %v2287 = vunpack.c.l.b16 %v2222
        %v2288 = vunpack.c.l.b16 %v2223
        %v2289 = vunpack.c.l.b16 %v2224
        %v2290 = vpack.c.b16 %v2287, %v2286
        %v2291 = vpack.c.b16 %v2289, %v2288
        %v2310 = vunpack.c.l.b16 %v2266
        %v2311 = vunpack.c.l.b16 %v2267
        %v2312 = vunpack.c.l.b16 %v2268
        %v2313 = vunpack.c.l.b16 %v2269
        %v2314 = vunpack.c.l.b16 %v2270
        %v2315 = vunpack.c.l.b16 %v2271
        %v2316 = vunpack.c.l.b16 %v2272
        %v2317 = vunpack.c.l.b16 %v2273
        %v2318 = vunpack.c.l.b16 %v2274
        %v2319 = vunpack.c.l.b16 %v2275
        %v2320 = vunpack.c.l.b16 %v2276
        %v2321 = vunpack.c.l.b16 %v2277
        %v2322 = vunpack.c.l.b16 %v2278
        %v2323 = vunpack.c.l.b16 %v2279
        %v2324 = vunpack.c.l.b16 %v2280
        %v2325 = vunpack.c.l.b16 %v2281
        %v2326 = vpack.c.b16 %v2311, %v2310
        %v2327 = vpack.c.b16 %v2313, %v2312
        %v2328 = vpack.c.b16 %v2315, %v2314
        %v2329 = vpack.c.b16 %v2317, %v2316
        %v2330 = vpack.c.b16 %v2319, %v2318
        %v2331 = vpack.c.b16 %v2321, %v2320
        %v2332 = vpack.c.b16 %v2323, %v2322
        %v2333 = vpack.c.b16 %v2325, %v2324
        %2342 = vmatpush.bf16.msra.mxu0 %v2333
        %2343 = vmatpush.bf16.msra.mxu0 %v2332
        %2344 = vmatpush.bf16.msra.mxu0 %v2331
        %2345 = vmatpush.bf16.msra.mxu0 %v2330
        %2346 = vmatpush.bf16.msra.mxu0 %v2329
        %2347 = vmatpush.bf16.msra.mxu0 %v2328
        %2348 = vmatpush.bf16.msra.mxu0 %v2327
        %2349 = vmatpush.bf16.msra.mxu0 %v2326
        %2350 = vmatmul.bf16.gmra.mxu0 %v2290
        %v2351 = vpop.f32.mrf.mxu0
        %v2352 = vadd.f32 0.0, %v2351
        %v2353 = vpop.f32.mrf.mxu0
        %v2354 = vadd.f32 0.0, %v2353
        %2355 = vmatmul.bf16.gmra.mxu0 %v2291
        %v2356 = vpop.f32.mrf.mxu0
        %v2357 = vadd.f32 0.0, %v2356
        %v2358 = vpop.f32.mrf.mxu0
        %v2359 = vadd.f32 0.0, %v2358
        %2360 = vdwg.mxu0
        %v2365 = vunpack.c.l.b16 %v2217
        %v2366 = vunpack.c.l.b16 %v2218
        %v2367 = vunpack.c.l.b16 %v2219
        %v2368 = vunpack.c.l.b16 %v2220
        %v2369 = vpack.c.b16 %v2366, %v2365
        %v2370 = vpack.c.b16 %v2368, %v2367
        %v2389 = vunpack.c.l.b16 %v2249
        %v2390 = vunpack.c.l.b16 %v2250
        %v2391 = vunpack.c.l.b16 %v2251
        %v2392 = vunpack.c.l.b16 %v2252
        %v2393 = vunpack.c.l.b16 %v2253
        %v2394 = vunpack.c.l.b16 %v2254
        %v2395 = vunpack.c.l.b16 %v2255
        %v2396 = vunpack.c.l.b16 %v2256
        %v2397 = vunpack.c.l.b16 %v2257
        %v2398 = vunpack.c.l.b16 %v2258
        %v2399 = vunpack.c.l.b16 %v2259
        %v2400 = vunpack.c.l.b16 %v2260
        %v2401 = vunpack.c.l.b16 %v2261
        %v2402 = vunpack.c.l.b16 %v2262
        %v2403 = vunpack.c.l.b16 %v2263
        %v2404 = vunpack.c.l.b16 %v2264
        %v2405 = vpack.c.b16 %v2390, %v2389
        %v2406 = vpack.c.b16 %v2392, %v2391
        %v2407 = vpack.c.b16 %v2394, %v2393
        %v2408 = vpack.c.b16 %v2396, %v2395
        %v2409 = vpack.c.b16 %v2398, %v2397
        %v2410 = vpack.c.b16 %v2400, %v2399
        %v2411 = vpack.c.b16 %v2402, %v2401
        %v2412 = vpack.c.b16 %v2404, %v2403
        %2421 = vmatpush.bf16.msra.mxu0 %v2412
        %2422 = vmatpush.bf16.msra.mxu0 %v2411
        %2423 = vmatpush.bf16.msra.mxu0 %v2410
        %2424 = vmatpush.bf16.msra.mxu0 %v2409
        %2425 = vmatpush.bf16.msra.mxu0 %v2408
        %2426 = vmatpush.bf16.msra.mxu0 %v2407
        %2427 = vmatpush.bf16.msra.mxu0 %v2406
        %2428 = vmatpush.bf16.msra.mxu0 %v2405
        %2429 = vmatmul.bf16.gmra.mxu0 %v2369
        %v2430 = vpop.f32.mrf.mxu0
        %v2431 = vadd.f32 %v2352, %v2430
        %v2432 = vpop.f32.mrf.mxu0
        %v2433 = vadd.f32 %v2354, %v2432
        %2434 = vmatmul.bf16.gmra.mxu0 %v2370
        %v2435 = vpop.f32.mrf.mxu0
        %v2436 = vadd.f32 %v2357, %v2435
        %v2437 = vpop.f32.mrf.mxu0
        %v2438 = vadd.f32 %v2359, %v2437
        %2439 = vdwg.mxu0
        %s2440 = scalar_lea.vmem %s3, 128
        %v2441 = vld [vmem:[%s2440] sm:$0xf]
        %v2442 = vld [vmem:[%s2440 + $0x4] sm:$0xf]
        %v2443 = vld [vmem:[%s2440 + $0x8] sm:$0xf]
        %v2444 = vld [vmem:[%s2440 + $0xc] sm:$0xf]
        %v2445 = vld [vmem:[%s2440 + $0x10] sm:$0xf]
        %v2446 = vld [vmem:[%s2440 + $0x14] sm:$0xf]
        %v2447 = vld [vmem:[%s2440 + $0x18] sm:$0xf]
        %v2448 = vld [vmem:[%s2440 + $0x1c] sm:$0xf]
        %v2449 = vld [vmem:[%s2440 + $0x20] sm:$0xf]
        %v2450 = vld [vmem:[%s2440 + $0x24] sm:$0xf]
        %v2451 = vld [vmem:[%s2440 + $0x28] sm:$0xf]
        %v2452 = vld [vmem:[%s2440 + $0x2c] sm:$0xf]
        %v2453 = vld [vmem:[%s2440 + $0x30] sm:$0xf]
        %v2454 = vld [vmem:[%s2440 + $0x34] sm:$0xf]
        %v2455 = vld [vmem:[%s2440 + $0x38] sm:$0xf]
        %v2456 = vld [vmem:[%s2440 + $0x3c] sm:$0xf]
        %v2461 = vunpack.c.l.b16 %v2225
        %v2462 = vunpack.c.l.b16 %v2226
        %v2463 = vunpack.c.l.b16 %v2227
        %v2464 = vunpack.c.l.b16 %v2228
        %v2465 = vpack.c.b16 %v2462, %v2461
        %v2466 = vpack.c.b16 %v2464, %v2463
        %v2485 = vunpack.c.l.b16 %v2441
        %v2486 = vunpack.c.l.b16 %v2442
        %v2487 = vunpack.c.l.b16 %v2443
        %v2488 = vunpack.c.l.b16 %v2444
        %v2489 = vunpack.c.l.b16 %v2445
        %v2490 = vunpack.c.l.b16 %v2446
        %v2491 = vunpack.c.l.b16 %v2447
        %v2492 = vunpack.c.l.b16 %v2448
        %v2493 = vunpack.c.l.b16 %v2449
        %v2494 = vunpack.c.l.b16 %v2450
        %v2495 = vunpack.c.l.b16 %v2451
        %v2496 = vunpack.c.l.b16 %v2452
        %v2497 = vunpack.c.l.b16 %v2453
        %v2498 = vunpack.c.l.b16 %v2454
        %v2499 = vunpack.c.l.b16 %v2455
        %v2500 = vunpack.c.l.b16 %v2456
        %v2501 = vpack.c.b16 %v2486, %v2485
        %v2502 = vpack.c.b16 %v2488, %v2487
        %v2503 = vpack.c.b16 %v2490, %v2489
        %v2504 = vpack.c.b16 %v2492, %v2491
        %v2505 = vpack.c.b16 %v2494, %v2493
        %v2506 = vpack.c.b16 %v2496, %v2495
        %v2507 = vpack.c.b16 %v2498, %v2497
        %v2508 = vpack.c.b16 %v2500, %v2499
        %2517 = vmatpush.bf16.msra.mxu0 %v2508
        %2518 = vmatpush.bf16.msra.mxu0 %v2507
        %2519 = vmatpush.bf16.msra.mxu0 %v2506
        %2520 = vmatpush.bf16.msra.mxu0 %v2505
        %2521 = vmatpush.bf16.msra.mxu0 %v2504
        %2522 = vmatpush.bf16.msra.mxu0 %v2503
        %2523 = vmatpush.bf16.msra.mxu0 %v2502
        %2524 = vmatpush.bf16.msra.mxu0 %v2501
        %2525 = vmatmul.bf16.gmra.mxu0 %v2465
        %v2526 = vpop.f32.mrf.mxu0
        %v2527 = vadd.f32 0.0, %v2526
        %v2528 = vpop.f32.mrf.mxu0
        %v2529 = vadd.f32 0.0, %v2528
        %2530 = vmatmul.bf16.gmra.mxu0 %v2466
        %v2531 = vpop.f32.mrf.mxu0
        %v2532 = vadd.f32 0.0, %v2531
        %v2533 = vpop.f32.mrf.mxu0
        %v2534 = vadd.f32 0.0, %v2533
        %2535 = vdwg.mxu0
        %v2536 = vadd.f32 %v2431, %v2527
        %v2537 = vadd.f32 %v2433, %v2529
        %v2538 = vadd.f32 %v2436, %v2532
        %v2539 = vadd.f32 %v2438, %v2534
        %s2540 = scalar_lea.vmem %s3, 192
        %v2541 = vld [vmem:[%s2540] sm:$0xf]
        %v2542 = vld [vmem:[%s2540 + $0x4] sm:$0xf]
        %v2543 = vld [vmem:[%s2540 + $0x8] sm:$0xf]
        %v2544 = vld [vmem:[%s2540 + $0xc] sm:$0xf]
        %v2545 = vld [vmem:[%s2540 + $0x10] sm:$0xf]
        %v2546 = vld [vmem:[%s2540 + $0x14] sm:$0xf]
        %v2547 = vld [vmem:[%s2540 + $0x18] sm:$0xf]
        %v2548 = vld [vmem:[%s2540 + $0x1c] sm:$0xf]
        %v2549 = vld [vmem:[%s2540 + $0x20] sm:$0xf]
        %v2550 = vld [vmem:[%s2540 + $0x24] sm:$0xf]
        %v2551 = vld [vmem:[%s2540 + $0x28] sm:$0xf]
        %v2552 = vld [vmem:[%s2540 + $0x2c] sm:$0xf]
        %v2553 = vld [vmem:[%s2540 + $0x30] sm:$0xf]
        %v2554 = vld [vmem:[%s2540 + $0x34] sm:$0xf]
        %v2555 = vld [vmem:[%s2540 + $0x38] sm:$0xf]
        %v2556 = vld [vmem:[%s2540 + $0x3c] sm:$0xf]
        %v2561 = vunpack.c.l.b16 %v2229
        %v2562 = vunpack.c.l.b16 %v2230
        %v2563 = vunpack.c.l.b16 %v2231
        %v2564 = vunpack.c.l.b16 %v2232
        %v2565 = vpack.c.b16 %v2562, %v2561
        %v2566 = vpack.c.b16 %v2564, %v2563
        %v2585 = vunpack.c.l.b16 %v2541
        %v2586 = vunpack.c.l.b16 %v2542
        %v2587 = vunpack.c.l.b16 %v2543
        %v2588 = vunpack.c.l.b16 %v2544
        %v2589 = vunpack.c.l.b16 %v2545
        %v2590 = vunpack.c.l.b16 %v2546
        %v2591 = vunpack.c.l.b16 %v2547
        %v2592 = vunpack.c.l.b16 %v2548
        %v2593 = vunpack.c.l.b16 %v2549
        %v2594 = vunpack.c.l.b16 %v2550
        %v2595 = vunpack.c.l.b16 %v2551
        %v2596 = vunpack.c.l.b16 %v2552
        %v2597 = vunpack.c.l.b16 %v2553
        %v2598 = vunpack.c.l.b16 %v2554
        %v2599 = vunpack.c.l.b16 %v2555
        %v2600 = vunpack.c.l.b16 %v2556
        %v2601 = vpack.c.b16 %v2586, %v2585
        %v2602 = vpack.c.b16 %v2588, %v2587
        %v2603 = vpack.c.b16 %v2590, %v2589
        %v2604 = vpack.c.b16 %v2592, %v2591
        %v2605 = vpack.c.b16 %v2594, %v2593
        %v2606 = vpack.c.b16 %v2596, %v2595
        %v2607 = vpack.c.b16 %v2598, %v2597
        %v2608 = vpack.c.b16 %v2600, %v2599
        %2617 = vmatpush.bf16.msra.mxu0 %v2608
        %2618 = vmatpush.bf16.msra.mxu0 %v2607
        %2619 = vmatpush.bf16.msra.mxu0 %v2606
        %2620 = vmatpush.bf16.msra.mxu0 %v2605
        %2621 = vmatpush.bf16.msra.mxu0 %v2604
        %2622 = vmatpush.bf16.msra.mxu0 %v2603
        %2623 = vmatpush.bf16.msra.mxu0 %v2602
        %2624 = vmatpush.bf16.msra.mxu0 %v2601
        %2625 = vmatmul.bf16.gmra.mxu0 %v2565
        %v2626 = vpop.f32.mrf.mxu0
        %v2627 = vadd.f32 0.0, %v2626
        %v2628 = vpop.f32.mrf.mxu0
        %v2629 = vadd.f32 0.0, %v2628
        %2630 = vmatmul.bf16.gmra.mxu0 %v2566
        %v2631 = vpop.f32.mrf.mxu0
        %v2632 = vadd.f32 0.0, %v2631
        %v2633 = vpop.f32.mrf.mxu0
        %v2634 = vadd.f32 0.0, %v2633
        %2635 = vdwg.mxu0
        %v2636 = vadd.f32 %v2536, %v2627
        %v2637 = vadd.f32 %v2537, %v2629
        %v2638 = vadd.f32 %v2538, %v2632
        %v2639 = vadd.f32 %v2539, %v2634
        %s2640 = scalar_lea.vmem %s3, 256
        %v2641 = vld [vmem:[%s2640] sm:$0xf]
        %v2642 = vld [vmem:[%s2640 + $0x4] sm:$0xf]
        %v2643 = vld [vmem:[%s2640 + $0x8] sm:$0xf]
        %v2644 = vld [vmem:[%s2640 + $0xc] sm:$0xf]
        %v2645 = vld [vmem:[%s2640 + $0x10] sm:$0xf]
        %v2646 = vld [vmem:[%s2640 + $0x14] sm:$0xf]
        %v2647 = vld [vmem:[%s2640 + $0x18] sm:$0xf]
        %v2648 = vld [vmem:[%s2640 + $0x1c] sm:$0xf]
        %v2649 = vld [vmem:[%s2640 + $0x20] sm:$0xf]
        %v2650 = vld [vmem:[%s2640 + $0x24] sm:$0xf]
        %v2651 = vld [vmem:[%s2640 + $0x28] sm:$0xf]
        %v2652 = vld [vmem:[%s2640 + $0x2c] sm:$0xf]
        %v2653 = vld [vmem:[%s2640 + $0x30] sm:$0xf]
        %v2654 = vld [vmem:[%s2640 + $0x34] sm:$0xf]
        %v2655 = vld [vmem:[%s2640 + $0x38] sm:$0xf]
        %v2656 = vld [vmem:[%s2640 + $0x3c] sm:$0xf]
        %v2661 = vunpack.c.l.b16 %v2233
        %v2662 = vunpack.c.l.b16 %v2234
        %v2663 = vunpack.c.l.b16 %v2235
        %v2664 = vunpack.c.l.b16 %v2236
        %v2665 = vpack.c.b16 %v2662, %v2661
        %v2666 = vpack.c.b16 %v2664, %v2663
        %v2685 = vunpack.c.l.b16 %v2641
        %v2686 = vunpack.c.l.b16 %v2642
        %v2687 = vunpack.c.l.b16 %v2643
        %v2688 = vunpack.c.l.b16 %v2644
        %v2689 = vunpack.c.l.b16 %v2645
        %v2690 = vunpack.c.l.b16 %v2646
        %v2691 = vunpack.c.l.b16 %v2647
        %v2692 = vunpack.c.l.b16 %v2648
        %v2693 = vunpack.c.l.b16 %v2649
        %v2694 = vunpack.c.l.b16 %v2650
        %v2695 = vunpack.c.l.b16 %v2651
        %v2696 = vunpack.c.l.b16 %v2652
        %v2697 = vunpack.c.l.b16 %v2653
        %v2698 = vunpack.c.l.b16 %v2654
        %v2699 = vunpack.c.l.b16 %v2655
        %v2700 = vunpack.c.l.b16 %v2656
        %v2701 = vpack.c.b16 %v2686, %v2685
        %v2702 = vpack.c.b16 %v2688, %v2687
        %v2703 = vpack.c.b16 %v2690, %v2689
        %v2704 = vpack.c.b16 %v2692, %v2691
        %v2705 = vpack.c.b16 %v2694, %v2693
        %v2706 = vpack.c.b16 %v2696, %v2695
        %v2707 = vpack.c.b16 %v2698, %v2697
        %v2708 = vpack.c.b16 %v2700, %v2699
        %2717 = vmatpush.bf16.msra.mxu0 %v2708
        %2718 = vmatpush.bf16.msra.mxu0 %v2707
        %2719 = vmatpush.bf16.msra.mxu0 %v2706
        %2720 = vmatpush.bf16.msra.mxu0 %v2705
        %2721 = vmatpush.bf16.msra.mxu0 %v2704
        %2722 = vmatpush.bf16.msra.mxu0 %v2703
        %2723 = vmatpush.bf16.msra.mxu0 %v2702
        %2724 = vmatpush.bf16.msra.mxu0 %v2701
        %2725 = vmatmul.bf16.gmra.mxu0 %v2665
        %v2726 = vpop.f32.mrf.mxu0
        %v2727 = vadd.f32 0.0, %v2726
        %v2728 = vpop.f32.mrf.mxu0
        %v2729 = vadd.f32 0.0, %v2728
        %2730 = vmatmul.bf16.gmra.mxu0 %v2666
        %v2731 = vpop.f32.mrf.mxu0
        %v2732 = vadd.f32 0.0, %v2731
        %v2733 = vpop.f32.mrf.mxu0
        %v2734 = vadd.f32 0.0, %v2733
        %2735 = vdwg.mxu0
        %v2736 = vadd.f32 %v2636, %v2727
        %v2737 = vadd.f32 %v2637, %v2729
        %v2738 = vadd.f32 %v2638, %v2732
        %v2739 = vadd.f32 %v2639, %v2734
        %s2740 = scalar_lea.vmem %s3, 320
        %v2741 = vld [vmem:[%s2740] sm:$0xf]
        %v2742 = vld [vmem:[%s2740 + $0x4] sm:$0xf]
        %v2743 = vld [vmem:[%s2740 + $0x8] sm:$0xf]
        %v2744 = vld [vmem:[%s2740 + $0xc] sm:$0xf]
        %v2745 = vld [vmem:[%s2740 + $0x10] sm:$0xf]
        %v2746 = vld [vmem:[%s2740 + $0x14] sm:$0xf]
        %v2747 = vld [vmem:[%s2740 + $0x18] sm:$0xf]
        %v2748 = vld [vmem:[%s2740 + $0x1c] sm:$0xf]
        %v2749 = vld [vmem:[%s2740 + $0x20] sm:$0xf]
        %v2750 = vld [vmem:[%s2740 + $0x24] sm:$0xf]
        %v2751 = vld [vmem:[%s2740 + $0x28] sm:$0xf]
        %v2752 = vld [vmem:[%s2740 + $0x2c] sm:$0xf]
        %v2753 = vld [vmem:[%s2740 + $0x30] sm:$0xf]
        %v2754 = vld [vmem:[%s2740 + $0x34] sm:$0xf]
        %v2755 = vld [vmem:[%s2740 + $0x38] sm:$0xf]
        %v2756 = vld [vmem:[%s2740 + $0x3c] sm:$0xf]
        %v2761 = vunpack.c.l.b16 %v2237
        %v2762 = vunpack.c.l.b16 %v2238
        %v2763 = vunpack.c.l.b16 %v2239
        %v2764 = vunpack.c.l.b16 %v2240
        %v2765 = vpack.c.b16 %v2762, %v2761
        %v2766 = vpack.c.b16 %v2764, %v2763
        %v2785 = vunpack.c.l.b16 %v2741
        %v2786 = vunpack.c.l.b16 %v2742
        %v2787 = vunpack.c.l.b16 %v2743
        %v2788 = vunpack.c.l.b16 %v2744
        %v2789 = vunpack.c.l.b16 %v2745
        %v2790 = vunpack.c.l.b16 %v2746
        %v2791 = vunpack.c.l.b16 %v2747
        %v2792 = vunpack.c.l.b16 %v2748
        %v2793 = vunpack.c.l.b16 %v2749
        %v2794 = vunpack.c.l.b16 %v2750
        %v2795 = vunpack.c.l.b16 %v2751
        %v2796 = vunpack.c.l.b16 %v2752
        %v2797 = vunpack.c.l.b16 %v2753
        %v2798 = vunpack.c.l.b16 %v2754
        %v2799 = vunpack.c.l.b16 %v2755
        %v2800 = vunpack.c.l.b16 %v2756
        %v2801 = vpack.c.b16 %v2786, %v2785
        %v2802 = vpack.c.b16 %v2788, %v2787
        %v2803 = vpack.c.b16 %v2790, %v2789
        %v2804 = vpack.c.b16 %v2792, %v2791
        %v2805 = vpack.c.b16 %v2794, %v2793
        %v2806 = vpack.c.b16 %v2796, %v2795
        %v2807 = vpack.c.b16 %v2798, %v2797
        %v2808 = vpack.c.b16 %v2800, %v2799
        %2817 = vmatpush.bf16.msra.mxu0 %v2808
        %2818 = vmatpush.bf16.msra.mxu0 %v2807
        %2819 = vmatpush.bf16.msra.mxu0 %v2806
        %2820 = vmatpush.bf16.msra.mxu0 %v2805
        %2821 = vmatpush.bf16.msra.mxu0 %v2804
        %2822 = vmatpush.bf16.msra.mxu0 %v2803
        %2823 = vmatpush.bf16.msra.mxu0 %v2802
        %2824 = vmatpush.bf16.msra.mxu0 %v2801
        %2825 = vmatmul.bf16.gmra.mxu0 %v2765
        %v2826 = vpop.f32.mrf.mxu0
        %v2827 = vadd.f32 0.0, %v2826
        %v2828 = vpop.f32.mrf.mxu0
        %v2829 = vadd.f32 0.0, %v2828
        %2830 = vmatmul.bf16.gmra.mxu0 %v2766
        %v2831 = vpop.f32.mrf.mxu0
        %v2832 = vadd.f32 0.0, %v2831
        %v2833 = vpop.f32.mrf.mxu0
        %v2834 = vadd.f32 0.0, %v2833
        %2835 = vdwg.mxu0
        %v2836 = vadd.f32 %v2736, %v2827
        %v2837 = vadd.f32 %v2737, %v2829
        %v2838 = vadd.f32 %v2738, %v2832
        %v2839 = vadd.f32 %v2739, %v2834
        %s2840 = scalar_lea.vmem %s3, 384
        %v2841 = vld [vmem:[%s2840] sm:$0xf]
        %v2842 = vld [vmem:[%s2840 + $0x4] sm:$0xf]
        %v2843 = vld [vmem:[%s2840 + $0x8] sm:$0xf]
        %v2844 = vld [vmem:[%s2840 + $0xc] sm:$0xf]
        %v2845 = vld [vmem:[%s2840 + $0x10] sm:$0xf]
        %v2846 = vld [vmem:[%s2840 + $0x14] sm:$0xf]
        %v2847 = vld [vmem:[%s2840 + $0x18] sm:$0xf]
        %v2848 = vld [vmem:[%s2840 + $0x1c] sm:$0xf]
        %v2849 = vld [vmem:[%s2840 + $0x20] sm:$0xf]
        %v2850 = vld [vmem:[%s2840 + $0x24] sm:$0xf]
        %v2851 = vld [vmem:[%s2840 + $0x28] sm:$0xf]
        %v2852 = vld [vmem:[%s2840 + $0x2c] sm:$0xf]
        %v2853 = vld [vmem:[%s2840 + $0x30] sm:$0xf]
        %v2854 = vld [vmem:[%s2840 + $0x34] sm:$0xf]
        %v2855 = vld [vmem:[%s2840 + $0x38] sm:$0xf]
        %v2856 = vld [vmem:[%s2840 + $0x3c] sm:$0xf]
        %v2861 = vunpack.c.l.b16 %v2241
        %v2862 = vunpack.c.l.b16 %v2242
        %v2863 = vunpack.c.l.b16 %v2243
        %v2864 = vunpack.c.l.b16 %v2244
        %v2865 = vpack.c.b16 %v2862, %v2861
        %v2866 = vpack.c.b16 %v2864, %v2863
        %v2885 = vunpack.c.l.b16 %v2841
        %v2886 = vunpack.c.l.b16 %v2842
        %v2887 = vunpack.c.l.b16 %v2843
        %v2888 = vunpack.c.l.b16 %v2844
        %v2889 = vunpack.c.l.b16 %v2845
        %v2890 = vunpack.c.l.b16 %v2846
        %v2891 = vunpack.c.l.b16 %v2847
        %v2892 = vunpack.c.l.b16 %v2848
        %v2893 = vunpack.c.l.b16 %v2849
        %v2894 = vunpack.c.l.b16 %v2850
        %v2895 = vunpack.c.l.b16 %v2851
        %v2896 = vunpack.c.l.b16 %v2852
        %v2897 = vunpack.c.l.b16 %v2853
        %v2898 = vunpack.c.l.b16 %v2854
        %v2899 = vunpack.c.l.b16 %v2855
        %v2900 = vunpack.c.l.b16 %v2856
        %v2901 = vpack.c.b16 %v2886, %v2885
        %v2902 = vpack.c.b16 %v2888, %v2887
        %v2903 = vpack.c.b16 %v2890, %v2889
        %v2904 = vpack.c.b16 %v2892, %v2891
        %v2905 = vpack.c.b16 %v2894, %v2893
        %v2906 = vpack.c.b16 %v2896, %v2895
        %v2907 = vpack.c.b16 %v2898, %v2897
        %v2908 = vpack.c.b16 %v2900, %v2899
        %2917 = vmatpush.bf16.msra.mxu0 %v2908
        %2918 = vmatpush.bf16.msra.mxu0 %v2907
        %2919 = vmatpush.bf16.msra.mxu0 %v2906
        %2920 = vmatpush.bf16.msra.mxu0 %v2905
        %2921 = vmatpush.bf16.msra.mxu0 %v2904
        %2922 = vmatpush.bf16.msra.mxu0 %v2903
        %2923 = vmatpush.bf16.msra.mxu0 %v2902
        %2924 = vmatpush.bf16.msra.mxu0 %v2901
        %2925 = vmatmul.bf16.gmra.mxu0 %v2865
        %v2926 = vpop.f32.mrf.mxu0
        %v2927 = vadd.f32 0.0, %v2926
        %v2928 = vpop.f32.mrf.mxu0
        %v2929 = vadd.f32 0.0, %v2928
        %2930 = vmatmul.bf16.gmra.mxu0 %v2866
        %v2931 = vpop.f32.mrf.mxu0
        %v2932 = vadd.f32 0.0, %v2931
        %v2933 = vpop.f32.mrf.mxu0
        %v2934 = vadd.f32 0.0, %v2933
        %2935 = vdwg.mxu0
        %v2936 = vadd.f32 %v2836, %v2927
        %v2937 = vadd.f32 %v2837, %v2929
        %v2938 = vadd.f32 %v2838, %v2932
        %v2939 = vadd.f32 %v2839, %v2934
        %s2940 = scalar_lea.vmem %s3, 448
        %v2941 = vld [vmem:[%s2940] sm:$0xf]
        %v2942 = vld [vmem:[%s2940 + $0x4] sm:$0xf]
        %v2943 = vld [vmem:[%s2940 + $0x8] sm:$0xf]
        %v2944 = vld [vmem:[%s2940 + $0xc] sm:$0xf]
        %v2945 = vld [vmem:[%s2940 + $0x10] sm:$0xf]
        %v2946 = vld [vmem:[%s2940 + $0x14] sm:$0xf]
        %v2947 = vld [vmem:[%s2940 + $0x18] sm:$0xf]
        %v2948 = vld [vmem:[%s2940 + $0x1c] sm:$0xf]
        %v2949 = vld [vmem:[%s2940 + $0x20] sm:$0xf]
        %v2950 = vld [vmem:[%s2940 + $0x24] sm:$0xf]
        %v2951 = vld [vmem:[%s2940 + $0x28] sm:$0xf]
        %v2952 = vld [vmem:[%s2940 + $0x2c] sm:$0xf]
        %v2953 = vld [vmem:[%s2940 + $0x30] sm:$0xf]
        %v2954 = vld [vmem:[%s2940 + $0x34] sm:$0xf]
        %v2955 = vld [vmem:[%s2940 + $0x38] sm:$0xf]
        %v2956 = vld [vmem:[%s2940 + $0x3c] sm:$0xf]
        %v2961 = vunpack.c.l.b16 %v2245
        %v2962 = vunpack.c.l.b16 %v2246
        %v2963 = vunpack.c.l.b16 %v2247
        %v2964 = vunpack.c.l.b16 %v2248
        %v2965 = vpack.c.b16 %v2962, %v2961
        %v2966 = vpack.c.b16 %v2964, %v2963
        %v2985 = vunpack.c.l.b16 %v2941
        %v2986 = vunpack.c.l.b16 %v2942
        %v2987 = vunpack.c.l.b16 %v2943
        %v2988 = vunpack.c.l.b16 %v2944
        %v2989 = vunpack.c.l.b16 %v2945
        %v2990 = vunpack.c.l.b16 %v2946
        %v2991 = vunpack.c.l.b16 %v2947
        %v2992 = vunpack.c.l.b16 %v2948
        %v2993 = vunpack.c.l.b16 %v2949
        %v2994 = vunpack.c.l.b16 %v2950
        %v2995 = vunpack.c.l.b16 %v2951
        %v2996 = vunpack.c.l.b16 %v2952
        %v2997 = vunpack.c.l.b16 %v2953
        %v2998 = vunpack.c.l.b16 %v2954
        %v2999 = vunpack.c.l.b16 %v2955
        %v3000 = vunpack.c.l.b16 %v2956
        %v3001 = vpack.c.b16 %v2986, %v2985
        %v3002 = vpack.c.b16 %v2988, %v2987
        %v3003 = vpack.c.b16 %v2990, %v2989
        %v3004 = vpack.c.b16 %v2992, %v2991
        %v3005 = vpack.c.b16 %v2994, %v2993
        %v3006 = vpack.c.b16 %v2996, %v2995
        %v3007 = vpack.c.b16 %v2998, %v2997
        %v3008 = vpack.c.b16 %v3000, %v2999
        %3017 = vmatpush.bf16.msra.mxu0 %v3008
        %3018 = vmatpush.bf16.msra.mxu0 %v3007
        %3019 = vmatpush.bf16.msra.mxu0 %v3006
        %3020 = vmatpush.bf16.msra.mxu0 %v3005
        %3021 = vmatpush.bf16.msra.mxu0 %v3004
        %3022 = vmatpush.bf16.msra.mxu0 %v3003
        %3023 = vmatpush.bf16.msra.mxu0 %v3002
        %3024 = vmatpush.bf16.msra.mxu0 %v3001
        %3025 = vmatmul.bf16.gmra.mxu0 %v2965
        %v3026 = vpop.f32.mrf.mxu0
        %v3027 = vadd.f32 0.0, %v3026
        %v3028 = vpop.f32.mrf.mxu0
        %v3029 = vadd.f32 0.0, %v3028
        %3030 = vmatmul.bf16.gmra.mxu0 %v2966
        %v3031 = vpop.f32.mrf.mxu0
        %v3032 = vadd.f32 0.0, %v3031
        %v3033 = vpop.f32.mrf.mxu0
        %v3034 = vadd.f32 0.0, %v3033
        %3035 = vdwg.mxu0
        %v3036 = vadd.f32 %v2936, %v3027
        %v3037 = vadd.f32 %v2937, %v3029
        %v3038 = vadd.f32 %v2938, %v3032
        %v3039 = vadd.f32 %v2939, %v3034
        %v3040 = vperm.slane %v383, 5
        %v3041 = vadd.f32 %v3036, %v3040
        %v3042 = vadd.f32 %v3037, %v3040
        %v3043 = vadd.f32 %v3038, %v3040
        %v3044 = vadd.f32 %v3039, %v3040
        %v3045 = vpack.c.bf16 %v3042, %v3041
        %v3046 = vpack.c.bf16 %v3044, %v3043
        %s3047 = scalar_lea.vmem %s2, 128
        %v3048 = vld [vmem:[%s3047] sm:$0xf]
        %v3049 = vld [vmem:[%s3047 + $0x4] sm:$0xf]
        %v3050 = vld [vmem:[%s3047 + $0x8] sm:$0xf]
        %v3051 = vld [vmem:[%s3047 + $0xc] sm:$0xf]
        %v3052 = vld [vmem:[%s3047 + $0x10] sm:$0xf]
        %v3053 = vld [vmem:[%s3047 + $0x14] sm:$0xf]
        %v3054 = vld [vmem:[%s3047 + $0x18] sm:$0xf]
        %v3055 = vld [vmem:[%s3047 + $0x1c] sm:$0xf]
        %v3056 = vld [vmem:[%s3047 + $0x20] sm:$0xf]
        %v3057 = vld [vmem:[%s3047 + $0x24] sm:$0xf]
        %v3058 = vld [vmem:[%s3047 + $0x28] sm:$0xf]
        %v3059 = vld [vmem:[%s3047 + $0x2c] sm:$0xf]
        %v3060 = vld [vmem:[%s3047 + $0x30] sm:$0xf]
        %v3061 = vld [vmem:[%s3047 + $0x34] sm:$0xf]
        %v3062 = vld [vmem:[%s3047 + $0x38] sm:$0xf]
        %v3063 = vld [vmem:[%s3047 + $0x3c] sm:$0xf]
        %v3064 = vperm.slane %v383, 6
        %v3081 = vunpack.c.l.b16 %v3048
        %v3082 = vunpack.c.l.b16 %v3049
        %v3083 = vunpack.c.l.b16 %v3050
        %v3084 = vunpack.c.l.b16 %v3051
        %v3085 = vunpack.c.l.b16 %v3052
        %v3086 = vunpack.c.l.b16 %v3053
        %v3087 = vunpack.c.l.b16 %v3054
        %v3088 = vunpack.c.l.b16 %v3055
        %v3089 = vunpack.c.l.b16 %v3056
        %v3090 = vunpack.c.l.b16 %v3057
        %v3091 = vunpack.c.l.b16 %v3058
        %v3092 = vunpack.c.l.b16 %v3059
        %v3093 = vunpack.c.l.b16 %v3060
        %v3094 = vunpack.c.l.b16 %v3061
        %v3095 = vunpack.c.l.b16 %v3062
        %v3096 = vunpack.c.l.b16 %v3063
        %v3097 = vpack.c.b16 %v3082, %v3081
        %v3098 = vpack.c.b16 %v3084, %v3083
        %v3099 = vpack.c.b16 %v3086, %v3085
        %v3100 = vpack.c.b16 %v3088, %v3087
        %v3101 = vpack.c.b16 %v3090, %v3089
        %v3102 = vpack.c.b16 %v3092, %v3091
        %v3103 = vpack.c.b16 %v3094, %v3093
        %v3104 = vpack.c.b16 %v3096, %v3095
        %3113 = vmatpush.bf16.msra.mxu0 %v3104
        %3114 = vmatpush.bf16.msra.mxu0 %v3103
        %3115 = vmatpush.bf16.msra.mxu0 %v3102
        %3116 = vmatpush.bf16.msra.mxu0 %v3101
        %3117 = vmatpush.bf16.msra.mxu0 %v3100
        %3118 = vmatpush.bf16.msra.mxu0 %v3099
        %3119 = vmatpush.bf16.msra.mxu0 %v3098
        %3120 = vmatpush.bf16.msra.mxu0 %v3097
        %3121 = vmatmul.bf16.gmra.mxu0 %v3045
        %v3122 = vpop.f32.mrf.mxu0
        %v3123 = vadd.f32 %v3064, %v3122
        %v3124 = vpop.f32.mrf.mxu0
        %v3125 = vadd.f32 %v3064, %v3124
        %3126 = vmatmul.bf16.gmra.mxu0 %v3046
        %v3127 = vpop.f32.mrf.mxu0
        %v3128 = vadd.f32 %v3064, %v3127
        %v3129 = vpop.f32.mrf.mxu0
        %v3130 = vadd.f32 %v3064, %v3129
        %3131 = vdwg.mxu0
        %v3132 = vtanh.pop %v3123
        %v3133 = vtanh.pop %v3125
        %v3134 = vtanh.pop %v3128
        %v3135 = vtanh.pop %v3130
        %v3136 = vpack.c.bf16 %v3133, %v3132
        %v3137 = vpack.c.bf16 %v3135, %v3134
        %s3138 = scalar_lea.vmem %s2, 192
        %v3139 = vld [vmem:[%s3138] sm:$0xf]
        %v3140 = vld [vmem:[%s3138 + $0x4] sm:$0xf]
        %v3141 = vld [vmem:[%s3138 + $0x8] sm:$0xf]
        %v3142 = vld [vmem:[%s3138 + $0xc] sm:$0xf]
        %v3143 = vld [vmem:[%s3138 + $0x10] sm:$0xf]
        %v3144 = vld [vmem:[%s3138 + $0x14] sm:$0xf]
        %v3145 = vld [vmem:[%s3138 + $0x18] sm:$0xf]
        %v3146 = vld [vmem:[%s3138 + $0x1c] sm:$0xf]
        %v3147 = vld [vmem:[%s3138 + $0x20] sm:$0xf]
        %v3148 = vld [vmem:[%s3138 + $0x24] sm:$0xf]
        %v3149 = vld [vmem:[%s3138 + $0x28] sm:$0xf]
        %v3150 = vld [vmem:[%s3138 + $0x2c] sm:$0xf]
        %v3151 = vld [vmem:[%s3138 + $0x30] sm:$0xf]
        %v3152 = vld [vmem:[%s3138 + $0x34] sm:$0xf]
        %v3153 = vld [vmem:[%s3138 + $0x38] sm:$0xf]
        %v3154 = vld [vmem:[%s3138 + $0x3c] sm:$0xf]
        %v3155 = vperm.slane %v383, 7
        %v3172 = vunpack.c.l.b16 %v3139
        %v3173 = vunpack.c.l.b16 %v3140
        %v3174 = vunpack.c.l.b16 %v3141
        %v3175 = vunpack.c.l.b16 %v3142
        %v3176 = vunpack.c.l.b16 %v3143
        %v3177 = vunpack.c.l.b16 %v3144
        %v3178 = vunpack.c.l.b16 %v3145
        %v3179 = vunpack.c.l.b16 %v3146
        %v3180 = vunpack.c.l.b16 %v3147
        %v3181 = vunpack.c.l.b16 %v3148
        %v3182 = vunpack.c.l.b16 %v3149
        %v3183 = vunpack.c.l.b16 %v3150
        %v3184 = vunpack.c.l.b16 %v3151
        %v3185 = vunpack.c.l.b16 %v3152
        %v3186 = vunpack.c.l.b16 %v3153
        %v3187 = vunpack.c.l.b16 %v3154
        %v3188 = vpack.c.b16 %v3173, %v3172
        %v3189 = vpack.c.b16 %v3175, %v3174
        %v3190 = vpack.c.b16 %v3177, %v3176
        %v3191 = vpack.c.b16 %v3179, %v3178
        %v3192 = vpack.c.b16 %v3181, %v3180
        %v3193 = vpack.c.b16 %v3183, %v3182
        %v3194 = vpack.c.b16 %v3185, %v3184
        %v3195 = vpack.c.b16 %v3187, %v3186
        %3204 = vmatpush.bf16.msra.mxu0 %v3195
        %3205 = vmatpush.bf16.msra.mxu0 %v3194
        %3206 = vmatpush.bf16.msra.mxu0 %v3193
        %3207 = vmatpush.bf16.msra.mxu0 %v3192
        %3208 = vmatpush.bf16.msra.mxu0 %v3191
        %3209 = vmatpush.bf16.msra.mxu0 %v3190
        %3210 = vmatpush.bf16.msra.mxu0 %v3189
        %3211 = vmatpush.bf16.msra.mxu0 %v3188
        %3212 = vmatmul.bf16.gmra.mxu0 %v3136
        %v3213 = vpop.f32.mrf.mxu0
        %v3214 = vadd.f32 %v3155, %v3213
        %v3215 = vpop.f32.mrf.mxu0
        %v3216 = vadd.f32 %v3155, %v3215
        %3217 = vmatmul.bf16.gmra.mxu0 %v3137
        %v3218 = vpop.f32.mrf.mxu0
        %v3219 = vadd.f32 %v3155, %v3218
        %v3220 = vpop.f32.mrf.mxu0
        %v3221 = vadd.f32 %v3155, %v3220
        %3222 = vdwg.mxu0
        %3223 = vadd.xlane.f32.xlu0 %v3214
        %v3224 = vpop.xlane.xlu0 %3223
        %3225 = vadd.xlane.f32.xlu0 %v3216
        %v3226 = vpop.xlane.xlu0 %3225
        %3227 = vadd.xlane.f32.xlu0 %v3219
        %v3228 = vpop.xlane.xlu0 %3227
        %3229 = vadd.xlane.f32.xlu0 %v3221
        %v3230 = vpop.xlane.xlu0 %3229
        %v3231 = vmul.f32 %v3224, %v1574
        %v3232 = vmul.f32 %v3226, %v1574
        %v3233 = vmul.f32 %v3228, %v1574
        %v3234 = vmul.f32 %v3230, %v1574
        %v3235 = vsub.f32 %v3214, %v3231
        %v3236 = vsub.f32 %v3216, %v3232
        %v3237 = vsub.f32 %v3219, %v3233
        %v3238 = vsub.f32 %v3221, %v3234
        %v3239 = vmul.f32 %v3235, %v3235
        %v3240 = vmul.f32 %v3236, %v3236
        %v3241 = vmul.f32 %v3237, %v3237
        %v3242 = vmul.f32 %v3238, %v3238
        %3243 = vadd.xlane.f32.xlu0 %v3239
        %v3244 = vpop.xlane.xlu0 %3243
        %3245 = vadd.xlane.f32.xlu0 %v3240
        %v3246 = vpop.xlane.xlu0 %3245
        %3247 = vadd.xlane.f32.xlu0 %v3241
        %v3248 = vpop.xlane.xlu0 %3247
        %3249 = vadd.xlane.f32.xlu0 %v3242
        %v3250 = vpop.xlane.xlu0 %3249
        %v3251 = vmul.f32 %v3244, %v1574
        %v3252 = vmul.f32 %v3246, %v1574
        %v3253 = vmul.f32 %v3248, %v1574
        %v3254 = vmul.f32 %v3250, %v1574
        %v3255 = vadd.f32 %v3251, 1e-06
        %v3256 = vadd.f32 %v3252, 1e-06
        %v3257 = vadd.f32 %v3253, 1e-06
        %v3258 = vadd.f32 %v3254, 1e-06
        %v3259 = vrsqrt.pop %v3255
        %v3260 = vmul.f32 %v3259, %v3255
        %v3261 = vmul.f32 %v3260, %v3259
        %v3262 = vmul.f32 0.5, %v3261
        %v3263 = vsub.f32 1.5, %v3262
        %v3264 = vmul.f32 %v3259, %v3263
        %vm3265 = vweird.f32 %v3255
        %vm3266 = vweird.f32 %v3259
        %vm3267 = vmor %vm3265, %vm3266
        %v3268 = vsel %vm3267, %v3259, %v3264
        %v3269 = vrsqrt.pop %v3256
        %v3270 = vmul.f32 %v3269, %v3256
        %v3271 = vmul.f32 %v3270, %v3269
        %v3272 = vmul.f32 0.5, %v3271
        %v3273 = vsub.f32 1.5, %v3272
        %v3274 = vmul.f32 %v3269, %v3273
        %vm3275 = vweird.f32 %v3256
        %vm3276 = vweird.f32 %v3269
        %vm3277 = vmor %vm3275, %vm3276
        %v3278 = vsel %vm3277, %v3269, %v3274
        %v3279 = vrsqrt.pop %v3257
        %v3280 = vmul.f32 %v3279, %v3257
        %v3281 = vmul.f32 %v3280, %v3279
        %v3282 = vmul.f32 0.5, %v3281
        %v3283 = vsub.f32 1.5, %v3282
        %v3284 = vmul.f32 %v3279, %v3283
        %vm3285 = vweird.f32 %v3257
        %vm3286 = vweird.f32 %v3279
        %vm3287 = vmor %vm3285, %vm3286
        %v3288 = vsel %vm3287, %v3279, %v3284
        %v3289 = vrsqrt.pop %v3258
        %v3290 = vmul.f32 %v3289, %v3258
        %v3291 = vmul.f32 %v3290, %v3289
        %v3292 = vmul.f32 0.5, %v3291
        %v3293 = vsub.f32 1.5, %v3292
        %v3294 = vmul.f32 %v3289, %v3293
        %vm3295 = vweird.f32 %v3258
        %vm3296 = vweird.f32 %v3289
        %vm3297 = vmor %vm3295, %vm3296
        %v3298 = vsel %vm3297, %v3289, %v3294
        %v3299 = vmul.f32 %v3235, %v3268
        %v3300 = vmul.f32 %v3236, %v3278
        %v3301 = vmul.f32 %v3237, %v3288
        %v3302 = vmul.f32 %v3238, %v3298
        %v3303 = vperm.slane %v384, 0
        %v3304 = vmul.f32 %v3299, %v3303
        %v3305 = vmul.f32 %v3300, %v3303
        %v3306 = vmul.f32 %v3301, %v3303
        %v3307 = vmul.f32 %v3302, %v3303
        %v3308 = vperm.slane %v384, 1
        %v3309 = vadd.f32 %v3304, %v3308
        %v3310 = vadd.f32 %v3305, %v3308
        %v3311 = vadd.f32 %v3306, %v3308
        %v3312 = vadd.f32 %v3307, %v3308
        %v3313 = vpack.c.bf16 %v384, %v384
        %v3314 = vpack.c.bf16 %v3310, %v3309
        %v3315 = vpack.c.bf16 %v3312, %v3311
        %3317 = vset.pattern.permute.xlu0 0
        %3318 = vperm.xlu0 %3317, %v384
        %v3319 = vpop.permute.xlu0 %3318
        %v3321 = vrot.slane %v3313, 1
        %v3323 = vrot.slane %v3319, 3
        %3325 = vmatpush.bf16.xpose.msra.mxu0 0
        %3326 = vmatpush.bf16.xpose.msra.mxu0 0
        %3327 = vmatpush.bf16.xpose.msra.mxu0 0
        %3328 = vmatpush.bf16.xpose.msra.mxu0 0
        %3329 = vmatpush.bf16.xpose.msra.mxu0 0
        %3330 = vmatpush.bf16.xpose.msra.mxu0 0
        %3331 = vmatpush.bf16.xpose.msra.mxu0 %v3315
        %3332 = vmatpush.bf16.xpose.msra.mxu0 %v3314
        %3333 = vmatmul.bf16.gmra.mxu0 %v3321
        %v3334 = vpop.f32.mrf.mxu0
        %v3335 = vadd.f32 %v3323, %v3334
        %v3336 = vpop.f32.mrf.mxu0
        %3337 = vdwg.mxu0
        %vm3338 = vcmask 253952
        %3339 = vst.msk [vmem:[%s381] sm:$0x1] %vm3338, %v3335
        %p3340 = scmp.lt.s32.totalorder %s16, 1
        %s3341 = scalar_select %p3340, %s16, 1
        %s3342 = scalar_lea.vmem %s5, %s3341
        // Predicated region
        $region79: #{critic_forward.1} parent=73 // pred_check
          %p3343 = pneg %p144
        $region80: #{critic_forward.1} parent=73 // pred_check_branch
          %3345 = sbr.rel (%p3343) target = $region82
        $region81: #{critic_forward.1} parent=73 // pred_region
          _
        $region82: #{critic_forward.1} parent=73 // pred_fallthru
          _
      $region74: #{critic_forward.1} parent=5 // pred_fallthru
        _
      %p3346 = scmp.le.s32.totalorder 2, %s11
      // Predicated region
      $region83: #{critic_forward.1} parent=5 // pred_check
        %p3347 = pneg %p3346
      $region84: #{critic_forward.1} parent=5 // pred_check_branch
        %3349 = sbr.rel (%p3347) target = $region86
      $region85: #{critic_forward.1} parent=5 // pred_region
        %s3350 = ssub.s32 %s11, 2
        // Predicated region
        $region87: #{critic_forward.1} parent=85 // pred_check
          %p3351 = pneg %p150
        $region88: #{critic_forward.1} parent=85 // pred_check_branch
          %3353 = sbr.rel (%p3351) target = $region90
        $region89: #{critic_forward.1} parent=85 // pred_region
          %p3354 = scmp.lt.s32.totalorder %s17, 1
          %s3355 = scalar_select %p3354, %s17, 1
          %s3356 = scalar_lea.vmem %s5, %s3355
        $region90: #{critic_forward.1} parent=85 // pred_fallthru
          _
      $region86: #{critic_forward.1} parent=5 // pred_fallthru
        _
    $region6: #{critic_forward.1} parent=1 // loop_footer
      %s15 = sadd.s32 1, %s11
    $region7: #{critic_forward.1} parent=1 // loop_footer_branch
      %10 = sbr.rel target = $region3
    $region8: #{critic_forward.1} parent=1 // loop_exit
      _

</llo_original>
